<compile_context>
chip_gen: v7x
topology: tpu7x:2x2x1
jax: 0.10.0
libtpu: 0.0.40
codegen_flags: <defaults>
</compile_context>

<pallas_src>
import functools

import jax
import jax.numpy as jnp
from jax.experimental import pallas as pl
from jax.experimental.pallas import tpu as pltpu  # noqa: F401

# ---------------- model hyper-parameters (small, consistent with the module) ----
VOCAB_SIZE = 50
EMBED_DIM = 32
HIDDEN_DIM = 32
N_LAYERS = 2
NUM_DIRECTIONS = 2          # bidirectional=True
OUTPUT_DIM = 4
SEQ_LEN = 10
BATCH = 4


# ---------------- fused Pallas kernel -------------------------------------------
def _text_classifier_kernel(T, B, H,
                            ids_ref, len_ref, emb_ref,
                            wih0_ref, whh0_ref, b0_ref,
                            wih1_ref, whh1_ref, b1_ref,
                            wlin_ref, blin_ref,
                            out_ref):
    G = 4 * H                       # gate width per direction (i, f, g, o)
    V = emb_ref.shape[0]            # lane-padded vocab size

    # ---- embedding lookup as a one-hot matmul (gather-free) --------------------
    ids = ids_ref[...]                                               # (T*B, 1) i32
    vocab_iota = jax.lax.broadcasted_iota(jnp.int32, (T * B, V), 1)
    onehot = (vocab_iota == ids).astype(jnp.float32)                 # (T*B, V)
    x0 = jnp.dot(onehot, emb_ref[...],
                 preferred_element_type=jnp.float32)                 # (T*B, E)

    # ---- packed-direction helpers ----------------------------------------------
    lengths = len_ref[...]                                           # (B, 1) i32
    len2 = jnp.concatenate([lengths, lengths], axis=0)               # (2B, 1)
    row = jax.lax.broadcasted_iota(jnp.int32, (2 * B, 1), 0)
    fwd_rows = row < B                                               # (2B, 1) bool

    def lstm_layer(x_flat, wih_ref, whh_ref, b_ref, keep_seq):
        # x_flat: (T*B, Din); weights packed [fwd | bwd] along lanes.
        # Hoisted input projection: all timesteps, both directions, one matmul.
        xp = jnp.dot(x_flat, wih_ref[...],
                     preferred_element_type=jnp.float32) + b_ref[...]   # (T*B, 2G)

        h = jnp.zeros((2 * B, H), jnp.float32)     # rows 0:B fwd, B:2B bwd
        c = jnp.zeros((2 * B, H), jnp.float32)
        out_fwd = [None] * T
        out_bwd = [None] * T

        for s in range(T):                         # fully unrolled (T static, small)
            t_f, t_b = s, T - 1 - s
            # per-step pre-projected gates, packed on sublanes
            xz = jnp.concatenate(
                [xp[t_f * B:t_f * B + B, 0:G],          # fwd rows, time t_f
                 xp[t_b * B:t_b * B + B, G:2 * G]],     # bwd rows, time t_b
                axis=0)                                                  # (2B, G)
            # one recurrent MXU push for both directions, then lane-select
            hz = jnp.dot(h, whh_ref[...],
                         preferred_element_type=jnp.float32)             # (2B, 2G)
            z = xz + jnp.where(fwd_rows, hz[:, 0:G], hz[:, G:2 * G])     # (2B, G)

            sig = jax.nn.sigmoid(z)                # full (8, 128) vreg
            tnh = jnp.tanh(z)
            c_new = sig[:, H:2 * H] * c + sig[:, 0:H] * tnh[:, 2 * H:3 * H]
            h_new = sig[:, 3 * H:4 * H] * jnp.tanh(c_new)

            # packed-sequence masking: only update state while t < length[b]
            t_vec = jnp.where(fwd_rows, t_f, t_b)                        # (2B, 1)
            valid = t_vec < len2
            h = jnp.where(valid, h_new, h)
            c = jnp.where(valid, c_new, c)

            if keep_seq:
                out_fwd[t_f] = h[0:B, :]
                out_bwd[t_b] = h[B:2 * B, :]

        if keep_seq:
            seq = jnp.concatenate(
                [jnp.concatenate([out_fwd[t], out_bwd[t]], axis=1)
                 for t in range(T)], axis=0)                             # (T*B, 2H)
        else:
            seq = None
        return seq, h[0:B, :], h[B:2 * B, :]

    # ---- layer 0 (keeps its output sequence, VMEM-resident, for layer 1) -------
    seq0, h0f, h0b = lstm_layer(x0, wih0_ref, whh0_ref, b0_ref, keep_seq=True)
    # TODO(synk): inter-layer LSTM dropout (training only) omitted - eval identity.
    _, h1f, h1b = lstm_layer(seq0, wih1_ref, whh1_ref, b1_ref, keep_seq=False)

    # ---- h_n assembly (PyTorch order [l0 fwd, l0 bwd, l1 fwd, l1 bwd]) + linear --
    h_cat = jnp.concatenate([h0f, h0b, h1f, h1b], axis=1)                # (B, 4H=128)
    # TODO(synk): self.dropout(h_n) (training only) omitted - eval identity.
    out_ref[...] = (jnp.dot(h_cat, wlin_ref[...],
                            preferred_element_type=jnp.float32) + blin_ref[...])


# ---------------- wrapper --------------------------------------------------------
def _pack_dir_weights(p_fwd, p_bwd):
    """Pack forward/backward weights of one layer along lanes: [fwd | bwd]."""
    w_ih = jnp.concatenate([p_fwd["w_ih"].T, p_bwd["w_ih"].T], axis=1)   # (Din, 8H)
    w_hh = jnp.concatenate([p_fwd["w_hh"].T, p_bwd["w_hh"].T], axis=1)   # (H, 8H)
    b = jnp.concatenate([p_fwd["b_ih"] + p_fwd["b_hh"],
                         p_bwd["b_ih"] + p_bwd["b_hh"]])[None, :]        # (1, 8H)
    return w_ih, w_hh, b


def text_classifier_forward(params, x_ids, x_len):
    """x_ids: (T, B) int32 token ids; x_len: (B,) int32 lengths (descending)."""
    T, B = x_ids.shape
    H = HIDDEN_DIM
    V, E = params["embedding"].shape
    O = params["linear_w"].shape[0]

    # pad vocab to a lane-friendly size for the in-kernel one-hot matmul
    V_pad = ((V + 127) // 128) * 128
    emb = jnp.zeros((V_pad, E), jnp.float32).at[:V].set(params["embedding"])

    wih0, whh0, b0 = _pack_dir_weights(params["lstm"][(0, 0)], params["lstm"][(0, 1)])
    wih1, whh1, b1 = _pack_dir_weights(params["lstm"][(1, 0)], params["lstm"][(1, 1)])

    ids = x_ids.reshape(T * B, 1).astype(jnp.int32)      # time-major, row = t*B + b
    lens = x_len.reshape(B, 1).astype(jnp.int32)
    wlin = params["linear_w"].T                          # (4H, O)
    blin = params["linear_b"].reshape(1, O)

    kernel = functools.partial(_text_classifier_kernel, T, B, H)
    return pl.pallas_call(
        kernel,
        out_shape=jax.ShapeDtypeStruct((B, O), jnp.float32),
    )(ids, lens, emb, wih0, whh0, b0, wih1, whh1, b1, wlin, blin)


# ---------------- deterministic parameter init ----------------------------------
def init_params(key):
    k = 1.0 / jnp.sqrt(jnp.float32(HIDDEN_DIM))
    keys = iter(jax.random.split(key, 64))

    def u(shape):
        return jax.random.uniform(next(keys), shape, jnp.float32, -k, k)

    params = {
        "embedding": jax.random.normal(next(keys), (VOCAB_SIZE, EMBED_DIM),
                                       jnp.float32),
        "lstm": {},
        "linear_w": u((OUTPUT_DIM, HIDDEN_DIM * N_LAYERS * NUM_DIRECTIONS)),
        "linear_b": u((OUTPUT_DIM,)),
    }
    for layer in range(N_LAYERS):
        in_dim = EMBED_DIM if layer == 0 else HIDDEN_DIM * NUM_DIRECTIONS
        for direction in range(NUM_DIRECTIONS):
            params["lstm"][(layer, direction)] = {
                "w_ih": u((4 * HIDDEN_DIM, in_dim)),
                "w_hh": u((4 * HIDDEN_DIM, HIDDEN_DIM)),
                "b_ih": u((4 * HIDDEN_DIM,)),
                "b_hh": u((4 * HIDDEN_DIM,)),
            }
    return params


# ---------------- main -----------------------------------------------------------
if __name__ == "__main__":
    key = jax.random.PRNGKey(0)
    pkey, xkey = jax.random.split(key)

    params = init_params(pkey)

    # token ids (T, B), lengths sorted descending (pack_padded_sequence requirement)
    x_ids = jax.random.randint(xkey, (SEQ_LEN, BATCH), 0, VOCAB_SIZE,
                               dtype=jnp.int32)
    x_len = jnp.array([10, 7, 5, 3], dtype=jnp.int32)

    forward = jax.jit(text_classifier_forward)
    logits = forward(params, x_ids, x_len)
    logits = jax.block_until_ready(logits)

    assert logits.shape == (BATCH, OUTPUT_DIM)
    assert bool(jnp.all(jnp.isfinite(logits)))
    print("KERNEL_OK")
</pallas_src>

<mosaic_0001>
module attributes {stable_mosaic.version = 11 : i64} {
  func.func @_text_classifier_kernel(%arg0: memref<40x1xi32, #tpu.memory_space<vmem>>, %arg1: memref<4x1xi32, #tpu.memory_space<vmem>>, %arg2: memref<128x32xf32, #tpu.memory_space<vmem>>, %arg3: memref<32x256xf32, #tpu.memory_space<vmem>>, %arg4: memref<32x256xf32, #tpu.memory_space<vmem>>, %arg5: memref<1x256xf32, #tpu.memory_space<vmem>>, %arg6: memref<64x256xf32, #tpu.memory_space<vmem>>, %arg7: memref<32x256xf32, #tpu.memory_space<vmem>>, %arg8: memref<1x256xf32, #tpu.memory_space<vmem>>, %arg9: memref<128x4xf32, #tpu.memory_space<vmem>>, %arg10: memref<1x4xf32, #tpu.memory_space<vmem>>, %arg11: memref<4x4xf32, #tpu.memory_space<vmem>>) attributes {dimension_semantics = [], scalar_prefetch = 0 : i64, scratch_operands = 0 : i64, tpu.core_type = #tpu.core_type<tc>} {
    %c0 = arith.constant 0 : index
    %c0_0 = arith.constant 0 : index
    %0 = vector.load %arg0[%c0, %c0_0] : memref<40x1xi32, #tpu.memory_space<vmem>>, vector<40x1xi32>
    %1 = tpu.iota {dimensions = array<i32: 1>} : vector<40x128xi32>
    %2 = vector.broadcast %0 : vector<40x1xi32> to vector<40x128xi32>
    %3 = arith.cmpi eq, %1, %2 : vector<40x128xi32>
    %4 = arith.extui %3 : vector<40x128xi1> to vector<40x128xi32>
    %5 = arith.sitofp %4 : vector<40x128xi32> to vector<40x128xf32>
    %c0_1 = arith.constant 0 : index
    %c0_2 = arith.constant 0 : index
    %6 = vector.load %arg2[%c0_1, %c0_2] : memref<128x32xf32, #tpu.memory_space<vmem>>, vector<128x32xf32>
    %cst = arith.constant dense<0.000000e+00> : vector<40x32xf32>
    %7 = tpu.matmul %5, %6, %cst {dimension_numbers = #tpu.dot_dimension_numbers<[1], [0], [0], [1], [0, 0, 1, 1], [], []>} : vector<40x128xf32>, vector<128x32xf32>, vector<40x32xf32> -> vector<40x32xf32>
    %c0_3 = arith.constant 0 : index
    %c0_4 = arith.constant 0 : index
    %8 = vector.load %arg1[%c0_3, %c0_4] : memref<4x1xi32, #tpu.memory_space<vmem>>, vector<4x1xi32>
    %9 = tpu.concatenate %8, %8 in 0 : vector<4x1xi32>, vector<4x1xi32> -> vector<8x1xi32>
    %10 = tpu.iota {dimensions = array<i32: 0>} : vector<8x1xi32>
    %c4_i32 = arith.constant 4 : i32
    %11 = vector.broadcast %c4_i32 : i32 to vector<8x1xi32>
    %12 = arith.cmpi slt, %10, %11 : vector<8x1xi32>
    %c0_5 = arith.constant 0 : index
    %c0_6 = arith.constant 0 : index
    %13 = vector.load %arg3[%c0_5, %c0_6] : memref<32x256xf32, #tpu.memory_space<vmem>>, vector<32x256xf32>
    %cst_7 = arith.constant dense<0.000000e+00> : vector<40x256xf32>
    %14 = tpu.matmul %7, %13, %cst_7 {dimension_numbers = #tpu.dot_dimension_numbers<[1], [0], [0], [1], [0, 0, 1, 1], [], []>} : vector<40x32xf32>, vector<32x256xf32>, vector<40x256xf32> -> vector<40x256xf32>
    %c0_8 = arith.constant 0 : index
    %c0_9 = arith.constant 0 : index
    %15 = vector.load %arg5[%c0_8, %c0_9] : memref<1x256xf32, #tpu.memory_space<vmem>>, vector<1x256xf32>
    %16 = vector.broadcast %15 : vector<1x256xf32> to vector<40x256xf32>
    %17 = arith.addf %14, %16 : vector<40x256xf32>
    %cst_10 = arith.constant 0.000000e+00 : f32
    %18 = vector.broadcast %cst_10 : f32 to vector<8x32xf32>
    %cst_11 = arith.constant 0.000000e+00 : f32
    %19 = vector.broadcast %cst_11 : f32 to vector<8x32xf32>
    %20 = vector.extract_strided_slice %17 {offsets = [0, 0], sizes = [4, 128], strides = [1, 1]} : vector<40x256xf32> to vector<4x128xf32>
    %21 = vector.extract_strided_slice %17 {offsets = [36, 128], sizes = [4, 128], strides = [1, 1]} : vector<40x256xf32> to vector<4x128xf32>
    %22 = tpu.concatenate %20, %21 in 0 : vector<4x128xf32>, vector<4x128xf32> -> vector<8x128xf32>
    %c0_12 = arith.constant 0 : index
    %c0_13 = arith.constant 0 : index
    %23 = vector.load %arg4[%c0_12, %c0_13] : memref<32x256xf32, #tpu.memory_space<vmem>>, vector<32x256xf32>
    %cst_14 = arith.constant dense<0.000000e+00> : vector<8x256xf32>
    %24 = tpu.matmul %18, %23, %cst_14 {dimension_numbers = #tpu.dot_dimension_numbers<[1], [0], [0], [1], [0, 0, 1, 1], [], []>} : vector<8x32xf32>, vector<32x256xf32>, vector<8x256xf32> -> vector<8x256xf32>
    %25 = vector.extract_strided_slice %24 {offsets = [0, 0], sizes = [8, 128], strides = [1, 1]} : vector<8x256xf32> to vector<8x128xf32>
    %26 = vector.extract_strided_slice %24 {offsets = [0, 128], sizes = [8, 128], strides = [1, 1]} : vector<8x256xf32> to vector<8x128xf32>
    %27 = vector.shape_cast %12 : vector<8x1xi1> to vector<8x1xi1>
    %28 = vector.broadcast %27 : vector<8x1xi1> to vector<8x128xi1>
    %29 = arith.select %28, %25, %26 : vector<8x128xi1>, vector<8x128xf32>
    %30 = arith.addf %22, %29 : vector<8x128xf32>
    %31 = arith.negf %30 : vector<8x128xf32>
    %32 = math.exp %31 : vector<8x128xf32>
    %cst_15 = arith.constant 1.000000e+00 : f32
    %33 = vector.broadcast %cst_15 : f32 to vector<8x128xf32>
    %34 = arith.addf %33, %32 : vector<8x128xf32>
    %35 = arith.divf %33, %34 : vector<8x128xf32>
    %36 = math.tanh %30 : vector<8x128xf32>
    %37 = vector.extract_strided_slice %35 {offsets = [0, 32], sizes = [8, 32], strides = [1, 1]} : vector<8x128xf32> to vector<8x32xf32>
    %38 = arith.mulf %37, %19 : vector<8x32xf32>
    %39 = vector.extract_strided_slice %35 {offsets = [0, 0], sizes = [8, 32], strides = [1, 1]} : vector<8x128xf32> to vector<8x32xf32>
    %40 = vector.extract_strided_slice %36 {offsets = [0, 64], sizes = [8, 32], strides = [1, 1]} : vector<8x128xf32> to vector<8x32xf32>
    %41 = arith.mulf %39, %40 : vector<8x32xf32>
    %42 = arith.addf %38, %41 : vector<8x32xf32>
    %43 = vector.extract_strided_slice %35 {offsets = [0, 96], sizes = [8, 32], strides = [1, 1]} : vector<8x128xf32> to vector<8x32xf32>
    %44 = math.tanh %42 : vector<8x32xf32>
    %45 = arith.mulf %43, %44 : vector<8x32xf32>
    %c0_i32 = arith.constant 0 : i32
    %c9_i32 = arith.constant 9 : i32
    %46 = vector.broadcast %c0_i32 : i32 to vector<8x1xi32>
    %47 = vector.broadcast %c9_i32 : i32 to vector<8x1xi32>
    %48 = arith.select %12, %46, %47 : vector<8x1xi1>, vector<8x1xi32>
    %49 = arith.cmpi slt, %48, %9 : vector<8x1xi32>
    %50 = vector.shape_cast %49 : vector<8x1xi1> to vector<8x1xi1>
    %51 = vector.broadcast %50 : vector<8x1xi1> to vector<8x32xi1>
    %52 = arith.select %51, %45, %18 : vector<8x32xi1>, vector<8x32xf32>
    %53 = vector.shape_cast %49 : vector<8x1xi1> to vector<8x1xi1>
    %54 = vector.broadcast %53 : vector<8x1xi1> to vector<8x32xi1>
    %55 = arith.select %54, %42, %19 : vector<8x32xi1>, vector<8x32xf32>
    %56 = vector.extract_strided_slice %52 {offsets = [0, 0], sizes = [4, 32], strides = [1, 1]} : vector<8x32xf32> to vector<4x32xf32>
    %57 = vector.extract_strided_slice %52 {offsets = [4, 0], sizes = [4, 32], strides = [1, 1]} : vector<8x32xf32> to vector<4x32xf32>
    %58 = vector.extract_strided_slice %17 {offsets = [4, 0], sizes = [4, 128], strides = [1, 1]} : vector<40x256xf32> to vector<4x128xf32>
    %59 = vector.extract_strided_slice %17 {offsets = [32, 128], sizes = [4, 128], strides = [1, 1]} : vector<40x256xf32> to vector<4x128xf32>
    %60 = tpu.concatenate %58, %59 in 0 : vector<4x128xf32>, vector<4x128xf32> -> vector<8x128xf32>
    %c0_16 = arith.constant 0 : index
    %c0_17 = arith.constant 0 : index
    %61 = vector.load %arg4[%c0_16, %c0_17] : memref<32x256xf32, #tpu.memory_space<vmem>>, vector<32x256xf32>
    %cst_18 = arith.constant dense<0.000000e+00> : vector<8x256xf32>
    %62 = tpu.matmul %52, %61, %cst_18 {dimension_numbers = #tpu.dot_dimension_numbers<[1], [0], [0], [1], [0, 0, 1, 1], [], []>} : vector<8x32xf32>, vector<32x256xf32>, vector<8x256xf32> -> vector<8x256xf32>
    %63 = vector.extract_strided_slice %62 {offsets = [0, 0], sizes = [8, 128], strides = [1, 1]} : vector<8x256xf32> to vector<8x128xf32>
    %64 = vector.extract_strided_slice %62 {offsets = [0, 128], sizes = [8, 128], strides = [1, 1]} : vector<8x256xf32> to vector<8x128xf32>
    %65 = vector.shape_cast %12 : vector<8x1xi1> to vector<8x1xi1>
    %66 = vector.broadcast %65 : vector<8x1xi1> to vector<8x128xi1>
    %67 = arith.select %66, %63, %64 : vector<8x128xi1>, vector<8x128xf32>
    %68 = arith.addf %60, %67 : vector<8x128xf32>
    %69 = arith.negf %68 : vector<8x128xf32>
    %70 = math.exp %69 : vector<8x128xf32>
    %cst_19 = arith.constant 1.000000e+00 : f32
    %71 = vector.broadcast %cst_19 : f32 to vector<8x128xf32>
    %72 = arith.addf %71, %70 : vector<8x128xf32>
    %73 = arith.divf %71, %72 : vector<8x128xf32>
    %74 = math.tanh %68 : vector<8x128xf32>
    %75 = vector.extract_strided_slice %73 {offsets = [0, 32], sizes = [8, 32], strides = [1, 1]} : vector<8x128xf32> to vector<8x32xf32>
    %76 = arith.mulf %75, %55 : vector<8x32xf32>
    %77 = vector.extract_strided_slice %73 {offsets = [0, 0], sizes = [8, 32], strides = [1, 1]} : vector<8x128xf32> to vector<8x32xf32>
    %78 = vector.extract_strided_slice %74 {offsets = [0, 64], sizes = [8, 32], strides = [1, 1]} : vector<8x128xf32> to vector<8x32xf32>
    %79 = arith.mulf %77, %78 : vector<8x32xf32>
    %80 = arith.addf %76, %79 : vector<8x32xf32>
    %81 = vector.extract_strided_slice %73 {offsets = [0, 96], sizes = [8, 32], strides = [1, 1]} : vector<8x128xf32> to vector<8x32xf32>
    %82 = math.tanh %80 : vector<8x32xf32>
    %83 = arith.mulf %81, %82 : vector<8x32xf32>
    %c1_i32 = arith.constant 1 : i32
    %c8_i32 = arith.constant 8 : i32
    %84 = vector.broadcast %c1_i32 : i32 to vector<8x1xi32>
    %85 = vector.broadcast %c8_i32 : i32 to vector<8x1xi32>
    %86 = arith.select %12, %84, %85 : vector<8x1xi1>, vector<8x1xi32>
    %87 = arith.cmpi slt, %86, %9 : vector<8x1xi32>
    %88 = vector.shape_cast %87 : vector<8x1xi1> to vector<8x1xi1>
    %89 = vector.broadcast %88 : vector<8x1xi1> to vector<8x32xi1>
    %90 = arith.select %89, %83, %52 : vector<8x32xi1>, vector<8x32xf32>
    %91 = vector.shape_cast %87 : vector<8x1xi1> to vector<8x1xi1>
    %92 = vector.broadcast %91 : vector<8x1xi1> to vector<8x32xi1>
    %93 = arith.select %92, %80, %55 : vector<8x32xi1>, vector<8x32xf32>
    %94 = vector.extract_strided_slice %90 {offsets = [0, 0], sizes = [4, 32], strides = [1, 1]} : vector<8x32xf32> to vector<4x32xf32>
    %95 = vector.extract_strided_slice %90 {offsets = [4, 0], sizes = [4, 32], strides = [1, 1]} : vector<8x32xf32> to vector<4x32xf32>
    %96 = vector.extract_strided_slice %17 {offsets = [8, 0], sizes = [4, 128], strides = [1, 1]} : vector<40x256xf32> to vector<4x128xf32>
    %97 = vector.extract_strided_slice %17 {offsets = [28, 128], sizes = [4, 128], strides = [1, 1]} : vector<40x256xf32> to vector<4x128xf32>
    %98 = tpu.concatenate %96, %97 in 0 : vector<4x128xf32>, vector<4x128xf32> -> vector<8x128xf32>
    %c0_20 = arith.constant 0 : index
    %c0_21 = arith.constant 0 : index
    %99 = vector.load %arg4[%c0_20, %c0_21] : memref<32x256xf32, #tpu.memory_space<vmem>>, vector<32x256xf32>
    %cst_22 = arith.constant dense<0.000000e+00> : vector<8x256xf32>
    %100 = tpu.matmul %90, %99, %cst_22 {dimension_numbers = #tpu.dot_dimension_numbers<[1], [0], [0], [1], [0, 0, 1, 1], [], []>} : vector<8x32xf32>, vector<32x256xf32>, vector<8x256xf32> -> vector<8x256xf32>
    %101 = vector.extract_strided_slice %100 {offsets = [0, 0], sizes = [8, 128], strides = [1, 1]} : vector<8x256xf32> to vector<8x128xf32>
    %102 = vector.extract_strided_slice %100 {offsets = [0, 128], sizes = [8, 128], strides = [1, 1]} : vector<8x256xf32> to vector<8x128xf32>
    %103 = vector.shape_cast %12 : vector<8x1xi1> to vector<8x1xi1>
    %104 = vector.broadcast %103 : vector<8x1xi1> to vector<8x128xi1>
    %105 = arith.select %104, %101, %102 : vector<8x128xi1>, vector<8x128xf32>
    %106 = arith.addf %98, %105 : vector<8x128xf32>
    %107 = arith.negf %106 : vector<8x128xf32>
    %108 = math.exp %107 : vector<8x128xf32>
    %cst_23 = arith.constant 1.000000e+00 : f32
    %109 = vector.broadcast %cst_23 : f32 to vector<8x128xf32>
    %110 = arith.addf %109, %108 : vector<8x128xf32>
    %111 = arith.divf %109, %110 : vector<8x128xf32>
    %112 = math.tanh %106 : vector<8x128xf32>
    %113 = vector.extract_strided_slice %111 {offsets = [0, 32], sizes = [8, 32], strides = [1, 1]} : vector<8x128xf32> to vector<8x32xf32>
    %114 = arith.mulf %113, %93 : vector<8x32xf32>
    %115 = vector.extract_strided_slice %111 {offsets = [0, 0], sizes = [8, 32], strides = [1, 1]} : vector<8x128xf32> to vector<8x32xf32>
    %116 = vector.extract_strided_slice %112 {offsets = [0, 64], sizes = [8, 32], strides = [1, 1]} : vector<8x128xf32> to vector<8x32xf32>
    %117 = arith.mulf %115, %116 : vector<8x32xf32>
    %118 = arith.addf %114, %117 : vector<8x32xf32>
    %119 = vector.extract_strided_slice %111 {offsets = [0, 96], sizes = [8, 32], strides = [1, 1]} : vector<8x128xf32> to vector<8x32xf32>
    %120 = math.tanh %118 : vector<8x32xf32>
    %121 = arith.mulf %119, %120 : vector<8x32xf32>
    %c2_i32 = arith.constant 2 : i32
    %c7_i32 = arith.constant 7 : i32
    %122 = vector.broadcast %c2_i32 : i32 to vector<8x1xi32>
    %123 = vector.broadcast %c7_i32 : i32 to vector<8x1xi32>
    %124 = arith.select %12, %122, %123 : vector<8x1xi1>, vector<8x1xi32>
    %125 = arith.cmpi slt, %124, %9 : vector<8x1xi32>
    %126 = vector.shape_cast %125 : vector<8x1xi1> to vector<8x1xi1>
    %127 = vector.broadcast %126 : vector<8x1xi1> to vector<8x32xi1>
    %128 = arith.select %127, %121, %90 : vector<8x32xi1>, vector<8x32xf32>
    %129 = vector.shape_cast %125 : vector<8x1xi1> to vector<8x1xi1>
    %130 = vector.broadcast %129 : vector<8x1xi1> to vector<8x32xi1>
    %131 = arith.select %130, %118, %93 : vector<8x32xi1>, vector<8x32xf32>
    %132 = vector.extract_strided_slice %128 {offsets = [0, 0], sizes = [4, 32], strides = [1, 1]} : vector<8x32xf32> to vector<4x32xf32>
    %133 = vector.extract_strided_slice %128 {offsets = [4, 0], sizes = [4, 32], strides = [1, 1]} : vector<8x32xf32> to vector<4x32xf32>
    %134 = vector.extract_strided_slice %17 {offsets = [12, 0], sizes = [4, 128], strides = [1, 1]} : vector<40x256xf32> to vector<4x128xf32>
    %135 = vector.extract_strided_slice %17 {offsets = [24, 128], sizes = [4, 128], strides = [1, 1]} : vector<40x256xf32> to vector<4x128xf32>
    %136 = tpu.concatenate %134, %135 in 0 : vector<4x128xf32>, vector<4x128xf32> -> vector<8x128xf32>
    %c0_24 = arith.constant 0 : index
    %c0_25 = arith.constant 0 : index
    %137 = vector.load %arg4[%c0_24, %c0_25] : memref<32x256xf32, #tpu.memory_space<vmem>>, vector<32x256xf32>
    %cst_26 = arith.constant dense<0.000000e+00> : vector<8x256xf32>
    %138 = tpu.matmul %128, %137, %cst_26 {dimension_numbers = #tpu.dot_dimension_numbers<[1], [0], [0], [1], [0, 0, 1, 1], [], []>} : vector<8x32xf32>, vector<32x256xf32>, vector<8x256xf32> -> vector<8x256xf32>
    %139 = vector.extract_strided_slice %138 {offsets = [0, 0], sizes = [8, 128], strides = [1, 1]} : vector<8x256xf32> to vector<8x128xf32>
    %140 = vector.extract_strided_slice %138 {offsets = [0, 128], sizes = [8, 128], strides = [1, 1]} : vector<8x256xf32> to vector<8x128xf32>
    %141 = vector.shape_cast %12 : vector<8x1xi1> to vector<8x1xi1>
    %142 = vector.broadcast %141 : vector<8x1xi1> to vector<8x128xi1>
    %143 = arith.select %142, %139, %140 : vector<8x128xi1>, vector<8x128xf32>
    %144 = arith.addf %136, %143 : vector<8x128xf32>
    %145 = arith.negf %144 : vector<8x128xf32>
    %146 = math.exp %145 : vector<8x128xf32>
    %cst_27 = arith.constant 1.000000e+00 : f32
    %147 = vector.broadcast %cst_27 : f32 to vector<8x128xf32>
    %148 = arith.addf %147, %146 : vector<8x128xf32>
    %149 = arith.divf %147, %148 : vector<8x128xf32>
    %150 = math.tanh %144 : vector<8x128xf32>
    %151 = vector.extract_strided_slice %149 {offsets = [0, 32], sizes = [8, 32], strides = [1, 1]} : vector<8x128xf32> to vector<8x32xf32>
    %152 = arith.mulf %151, %131 : vector<8x32xf32>
    %153 = vector.extract_strided_slice %149 {offsets = [0, 0], sizes = [8, 32], strides = [1, 1]} : vector<8x128xf32> to vector<8x32xf32>
    %154 = vector.extract_strided_slice %150 {offsets = [0, 64], sizes = [8, 32], strides = [1, 1]} : vector<8x128xf32> to vector<8x32xf32>
    %155 = arith.mulf %153, %154 : vector<8x32xf32>
    %156 = arith.addf %152, %155 : vector<8x32xf32>
    %157 = vector.extract_strided_slice %149 {offsets = [0, 96], sizes = [8, 32], strides = [1, 1]} : vector<8x128xf32> to vector<8x32xf32>
    %158 = math.tanh %156 : vector<8x32xf32>
    %159 = arith.mulf %157, %158 : vector<8x32xf32>
    %c3_i32 = arith.constant 3 : i32
    %c6_i32 = arith.constant 6 : i32
    %160 = vector.broadcast %c3_i32 : i32 to vector<8x1xi32>
    %161 = vector.broadcast %c6_i32 : i32 to vector<8x1xi32>
    %162 = arith.select %12, %160, %161 : vector<8x1xi1>, vector<8x1xi32>
    %163 = arith.cmpi slt, %162, %9 : vector<8x1xi32>
    %164 = vector.shape_cast %163 : vector<8x1xi1> to vector<8x1xi1>
    %165 = vector.broadcast %164 : vector<8x1xi1> to vector<8x32xi1>
    %166 = arith.select %165, %159, %128 : vector<8x32xi1>, vector<8x32xf32>
    %167 = vector.shape_cast %163 : vector<8x1xi1> to vector<8x1xi1>
    %168 = vector.broadcast %167 : vector<8x1xi1> to vector<8x32xi1>
    %169 = arith.select %168, %156, %131 : vector<8x32xi1>, vector<8x32xf32>
    %170 = vector.extract_strided_slice %166 {offsets = [0, 0], sizes = [4, 32], strides = [1, 1]} : vector<8x32xf32> to vector<4x32xf32>
    %171 = vector.extract_strided_slice %166 {offsets = [4, 0], sizes = [4, 32], strides = [1, 1]} : vector<8x32xf32> to vector<4x32xf32>
    %172 = vector.extract_strided_slice %17 {offsets = [16, 0], sizes = [4, 128], strides = [1, 1]} : vector<40x256xf32> to vector<4x128xf32>
    %173 = vector.extract_strided_slice %17 {offsets = [20, 128], sizes = [4, 128], strides = [1, 1]} : vector<40x256xf32> to vector<4x128xf32>
    %174 = tpu.concatenate %172, %173 in 0 : vector<4x128xf32>, vector<4x128xf32> -> vector<8x128xf32>
    %c0_28 = arith.constant 0 : index
    %c0_29 = arith.constant 0 : index
    %175 = vector.load %arg4[%c0_28, %c0_29] : memref<32x256xf32, #tpu.memory_space<vmem>>, vector<32x256xf32>
    %cst_30 = arith.constant dense<0.000000e+00> : vector<8x256xf32>
    %176 = tpu.matmul %166, %175, %cst_30 {dimension_numbers = #tpu.dot_dimension_numbers<[1], [0], [0], [1], [0, 0, 1, 1], [], []>} : vector<8x32xf32>, vector<32x256xf32>, vector<8x256xf32> -> vector<8x256xf32>
    %177 = vector.extract_strided_slice %176 {offsets = [0, 0], sizes = [8, 128], strides = [1, 1]} : vector<8x256xf32> to vector<8x128xf32>
    %178 = vector.extract_strided_slice %176 {offsets = [0, 128], sizes = [8, 128], strides = [1, 1]} : vector<8x256xf32> to vector<8x128xf32>
    %179 = vector.shape_cast %12 : vector<8x1xi1> to vector<8x1xi1>
    %180 = vector.broadcast %179 : vector<8x1xi1> to vector<8x128xi1>
    %181 = arith.select %180, %177, %178 : vector<8x128xi1>, vector<8x128xf32>
    %182 = arith.addf %174, %181 : vector<8x128xf32>
    %183 = arith.negf %182 : vector<8x128xf32>
    %184 = math.exp %183 : vector<8x128xf32>
    %cst_31 = arith.constant 1.000000e+00 : f32
    %185 = vector.broadcast %cst_31 : f32 to vector<8x128xf32>
    %186 = arith.addf %185, %184 : vector<8x128xf32>
    %187 = arith.divf %185, %186 : vector<8x128xf32>
    %188 = math.tanh %182 : vector<8x128xf32>
    %189 = vector.extract_strided_slice %187 {offsets = [0, 32], sizes = [8, 32], strides = [1, 1]} : vector<8x128xf32> to vector<8x32xf32>
    %190 = arith.mulf %189, %169 : vector<8x32xf32>
    %191 = vector.extract_strided_slice %187 {offsets = [0, 0], sizes = [8, 32], strides = [1, 1]} : vector<8x128xf32> to vector<8x32xf32>
    %192 = vector.extract_strided_slice %188 {offsets = [0, 64], sizes = [8, 32], strides = [1, 1]} : vector<8x128xf32> to vector<8x32xf32>
    %193 = arith.mulf %191, %192 : vector<8x32xf32>
    %194 = arith.addf %190, %193 : vector<8x32xf32>
    %195 = vector.extract_strided_slice %187 {offsets = [0, 96], sizes = [8, 32], strides = [1, 1]} : vector<8x128xf32> to vector<8x32xf32>
    %196 = math.tanh %194 : vector<8x32xf32>
    %197 = arith.mulf %195, %196 : vector<8x32xf32>
    %c4_i32_32 = arith.constant 4 : i32
    %c5_i32 = arith.constant 5 : i32
    %198 = vector.broadcast %c4_i32_32 : i32 to vector<8x1xi32>
    %199 = vector.broadcast %c5_i32 : i32 to vector<8x1xi32>
    %200 = arith.select %12, %198, %199 : vector<8x1xi1>, vector<8x1xi32>
    %201 = arith.cmpi slt, %200, %9 : vector<8x1xi32>
    %202 = vector.shape_cast %201 : vector<8x1xi1> to vector<8x1xi1>
    %203 = vector.broadcast %202 : vector<8x1xi1> to vector<8x32xi1>
    %204 = arith.select %203, %197, %166 : vector<8x32xi1>, vector<8x32xf32>
    %205 = vector.shape_cast %201 : vector<8x1xi1> to vector<8x1xi1>
    %206 = vector.broadcast %205 : vector<8x1xi1> to vector<8x32xi1>
    %207 = arith.select %206, %194, %169 : vector<8x32xi1>, vector<8x32xf32>
    %208 = vector.extract_strided_slice %204 {offsets = [0, 0], sizes = [4, 32], strides = [1, 1]} : vector<8x32xf32> to vector<4x32xf32>
    %209 = vector.extract_strided_slice %204 {offsets = [4, 0], sizes = [4, 32], strides = [1, 1]} : vector<8x32xf32> to vector<4x32xf32>
    %210 = vector.extract_strided_slice %17 {offsets = [20, 0], sizes = [4, 128], strides = [1, 1]} : vector<40x256xf32> to vector<4x128xf32>
    %211 = vector.extract_strided_slice %17 {offsets = [16, 128], sizes = [4, 128], strides = [1, 1]} : vector<40x256xf32> to vector<4x128xf32>
    %212 = tpu.concatenate %210, %211 in 0 : vector<4x128xf32>, vector<4x128xf32> -> vector<8x128xf32>
    %c0_33 = arith.constant 0 : index
    %c0_34 = arith.constant 0 : index
    %213 = vector.load %arg4[%c0_33, %c0_34] : memref<32x256xf32, #tpu.memory_space<vmem>>, vector<32x256xf32>
    %cst_35 = arith.constant dense<0.000000e+00> : vector<8x256xf32>
    %214 = tpu.matmul %204, %213, %cst_35 {dimension_numbers = #tpu.dot_dimension_numbers<[1], [0], [0], [1], [0, 0, 1, 1], [], []>} : vector<8x32xf32>, vector<32x256xf32>, vector<8x256xf32> -> vector<8x256xf32>
    %215 = vector.extract_strided_slice %214 {offsets = [0, 0], sizes = [8, 128], strides = [1, 1]} : vector<8x256xf32> to vector<8x128xf32>
    %216 = vector.extract_strided_slice %214 {offsets = [0, 128], sizes = [8, 128], strides = [1, 1]} : vector<8x256xf32> to vector<8x128xf32>
    %217 = vector.shape_cast %12 : vector<8x1xi1> to vector<8x1xi1>
    %218 = vector.broadcast %217 : vector<8x1xi1> to vector<8x128xi1>
    %219 = arith.select %218, %215, %216 : vector<8x128xi1>, vector<8x128xf32>
    %220 = arith.addf %212, %219 : vector<8x128xf32>
    %221 = arith.negf %220 : vector<8x128xf32>
    %222 = math.exp %221 : vector<8x128xf32>
    %cst_36 = arith.constant 1.000000e+00 : f32
    %223 = vector.broadcast %cst_36 : f32 to vector<8x128xf32>
    %224 = arith.addf %223, %222 : vector<8x128xf32>
    %225 = arith.divf %223, %224 : vector<8x128xf32>
    %226 = math.tanh %220 : vector<8x128xf32>
    %227 = vector.extract_strided_slice %225 {offsets = [0, 32], sizes = [8, 32], strides = [1, 1]} : vector<8x128xf32> to vector<8x32xf32>
    %228 = arith.mulf %227, %207 : vector<8x32xf32>
    %229 = vector.extract_strided_slice %225 {offsets = [0, 0], sizes = [8, 32], strides = [1, 1]} : vector<8x128xf32> to vector<8x32xf32>
    %230 = vector.extract_strided_slice %226 {offsets = [0, 64], sizes = [8, 32], strides = [1, 1]} : vector<8x128xf32> to vector<8x32xf32>
    %231 = arith.mulf %229, %230 : vector<8x32xf32>
    %232 = arith.addf %228, %231 : vector<8x32xf32>
    %233 = vector.extract_strided_slice %225 {offsets = [0, 96], sizes = [8, 32], strides = [1, 1]} : vector<8x128xf32> to vector<8x32xf32>
    %234 = math.tanh %232 : vector<8x32xf32>
    %235 = arith.mulf %233, %234 : vector<8x32xf32>
    %c5_i32_37 = arith.constant 5 : i32
    %c4_i32_38 = arith.constant 4 : i32
    %236 = vector.broadcast %c5_i32_37 : i32 to vector<8x1xi32>
    %237 = vector.broadcast %c4_i32_38 : i32 to vector<8x1xi32>
    %238 = arith.select %12, %236, %237 : vector<8x1xi1>, vector<8x1xi32>
    %239 = arith.cmpi slt, %238, %9 : vector<8x1xi32>
    %240 = vector.shape_cast %239 : vector<8x1xi1> to vector<8x1xi1>
    %241 = vector.broadcast %240 : vector<8x1xi1> to vector<8x32xi1>
    %242 = arith.select %241, %235, %204 : vector<8x32xi1>, vector<8x32xf32>
    %243 = vector.shape_cast %239 : vector<8x1xi1> to vector<8x1xi1>
    %244 = vector.broadcast %243 : vector<8x1xi1> to vector<8x32xi1>
    %245 = arith.select %244, %232, %207 : vector<8x32xi1>, vector<8x32xf32>
    %246 = vector.extract_strided_slice %242 {offsets = [0, 0], sizes = [4, 32], strides = [1, 1]} : vector<8x32xf32> to vector<4x32xf32>
    %247 = vector.extract_strided_slice %242 {offsets = [4, 0], sizes = [4, 32], strides = [1, 1]} : vector<8x32xf32> to vector<4x32xf32>
    %248 = vector.extract_strided_slice %17 {offsets = [24, 0], sizes = [4, 128], strides = [1, 1]} : vector<40x256xf32> to vector<4x128xf32>
    %249 = vector.extract_strided_slice %17 {offsets = [12, 128], sizes = [4, 128], strides = [1, 1]} : vector<40x256xf32> to vector<4x128xf32>
    %250 = tpu.concatenate %248, %249 in 0 : vector<4x128xf32>, vector<4x128xf32> -> vector<8x128xf32>
    %c0_39 = arith.constant 0 : index
    %c0_40 = arith.constant 0 : index
    %251 = vector.load %arg4[%c0_39, %c0_40] : memref<32x256xf32, #tpu.memory_space<vmem>>, vector<32x256xf32>
    %cst_41 = arith.constant dense<0.000000e+00> : vector<8x256xf32>
    %252 = tpu.matmul %242, %251, %cst_41 {dimension_numbers = #tpu.dot_dimension_numbers<[1], [0], [0], [1], [0, 0, 1, 1], [], []>} : vector<8x32xf32>, vector<32x256xf32>, vector<8x256xf32> -> vector<8x256xf32>
    %253 = vector.extract_strided_slice %252 {offsets = [0, 0], sizes = [8, 128], strides = [1, 1]} : vector<8x256xf32> to vector<8x128xf32>
    %254 = vector.extract_strided_slice %252 {offsets = [0, 128], sizes = [8, 128], strides = [1, 1]} : vector<8x256xf32> to vector<8x128xf32>
    %255 = vector.shape_cast %12 : vector<8x1xi1> to vector<8x1xi1>
    %256 = vector.broadcast %255 : vector<8x1xi1> to vector<8x128xi1>
    %257 = arith.select %256, %253, %254 : vector<8x128xi1>, vector<8x128xf32>
    %258 = arith.addf %250, %257 : vector<8x128xf32>
    %259 = arith.negf %258 : vector<8x128xf32>
    %260 = math.exp %259 : vector<8x128xf32>
    %cst_42 = arith.constant 1.000000e+00 : f32
    %261 = vector.broadcast %cst_42 : f32 to vector<8x128xf32>
    %262 = arith.addf %261, %260 : vector<8x128xf32>
    %263 = arith.divf %261, %262 : vector<8x128xf32>
    %264 = math.tanh %258 : vector<8x128xf32>
    %265 = vector.extract_strided_slice %263 {offsets = [0, 32], sizes = [8, 32], strides = [1, 1]} : vector<8x128xf32> to vector<8x32xf32>
    %266 = arith.mulf %265, %245 : vector<8x32xf32>
    %267 = vector.extract_strided_slice %263 {offsets = [0, 0], sizes = [8, 32], strides = [1, 1]} : vector<8x128xf32> to vector<8x32xf32>
    %268 = vector.extract_strided_slice %264 {offsets = [0, 64], sizes = [8, 32], strides = [1, 1]} : vector<8x128xf32> to vector<8x32xf32>
    %269 = arith.mulf %267, %268 : vector<8x32xf32>
    %270 = arith.addf %266, %269 : vector<8x32xf32>
    %271 = vector.extract_strided_slice %263 {offsets = [0, 96], sizes = [8, 32], strides = [1, 1]} : vector<8x128xf32> to vector<8x32xf32>
    %272 = math.tanh %270 : vector<8x32xf32>
    %273 = arith.mulf %271, %272 : vector<8x32xf32>
    %c6_i32_43 = arith.constant 6 : i32
    %c3_i32_44 = arith.constant 3 : i32
    %274 = vector.broadcast %c6_i32_43 : i32 to vector<8x1xi32>
    %275 = vector.broadcast %c3_i32_44 : i32 to vector<8x1xi32>
    %276 = arith.select %12, %274, %275 : vector<8x1xi1>, vector<8x1xi32>
    %277 = arith.cmpi slt, %276, %9 : vector<8x1xi32>
    %278 = vector.shape_cast %277 : vector<8x1xi1> to vector<8x1xi1>
    %279 = vector.broadcast %278 : vector<8x1xi1> to vector<8x32xi1>
    %280 = arith.select %279, %273, %242 : vector<8x32xi1>, vector<8x32xf32>
    %281 = vector.shape_cast %277 : vector<8x1xi1> to vector<8x1xi1>
    %282 = vector.broadcast %281 : vector<8x1xi1> to vector<8x32xi1>
    %283 = arith.select %282, %270, %245 : vector<8x32xi1>, vector<8x32xf32>
    %284 = vector.extract_strided_slice %280 {offsets = [0, 0], sizes = [4, 32], strides = [1, 1]} : vector<8x32xf32> to vector<4x32xf32>
    %285 = vector.extract_strided_slice %280 {offsets = [4, 0], sizes = [4, 32], strides = [1, 1]} : vector<8x32xf32> to vector<4x32xf32>
    %286 = vector.extract_strided_slice %17 {offsets = [28, 0], sizes = [4, 128], strides = [1, 1]} : vector<40x256xf32> to vector<4x128xf32>
    %287 = vector.extract_strided_slice %17 {offsets = [8, 128], sizes = [4, 128], strides = [1, 1]} : vector<40x256xf32> to vector<4x128xf32>
    %288 = tpu.concatenate %286, %287 in 0 : vector<4x128xf32>, vector<4x128xf32> -> vector<8x128xf32>
    %c0_45 = arith.constant 0 : index
    %c0_46 = arith.constant 0 : index
    %289 = vector.load %arg4[%c0_45, %c0_46] : memref<32x256xf32, #tpu.memory_space<vmem>>, vector<32x256xf32>
    %cst_47 = arith.constant dense<0.000000e+00> : vector<8x256xf32>
    %290 = tpu.matmul %280, %289, %cst_47 {dimension_numbers = #tpu.dot_dimension_numbers<[1], [0], [0], [1], [0, 0, 1, 1], [], []>} : vector<8x32xf32>, vector<32x256xf32>, vector<8x256xf32> -> vector<8x256xf32>
    %291 = vector.extract_strided_slice %290 {offsets = [0, 0], sizes = [8, 128], strides = [1, 1]} : vector<8x256xf32> to vector<8x128xf32>
    %292 = vector.extract_strided_slice %290 {offsets = [0, 128], sizes = [8, 128], strides = [1, 1]} : vector<8x256xf32> to vector<8x128xf32>
    %293 = vector.shape_cast %12 : vector<8x1xi1> to vector<8x1xi1>
    %294 = vector.broadcast %293 : vector<8x1xi1> to vector<8x128xi1>
    %295 = arith.select %294, %291, %292 : vector<8x128xi1>, vector<8x128xf32>
    %296 = arith.addf %288, %295 : vector<8x128xf32>
    %297 = arith.negf %296 : vector<8x128xf32>
    %298 = math.exp %297 : vector<8x128xf32>
    %cst_48 = arith.constant 1.000000e+00 : f32
    %299 = vector.broadcast %cst_48 : f32 to vector<8x128xf32>
    %300 = arith.addf %299, %298 : vector<8x128xf32>
    %301 = arith.divf %299, %300 : vector<8x128xf32>
    %302 = math.tanh %296 : vector<8x128xf32>
    %303 = vector.extract_strided_slice %301 {offsets = [0, 32], sizes = [8, 32], strides = [1, 1]} : vector<8x128xf32> to vector<8x32xf32>
    %304 = arith.mulf %303, %283 : vector<8x32xf32>
    %305 = vector.extract_strided_slice %301 {offsets = [0, 0], sizes = [8, 32], strides = [1, 1]} : vector<8x128xf32> to vector<8x32xf32>
    %306 = vector.extract_strided_slice %302 {offsets = [0, 64], sizes = [8, 32], strides = [1, 1]} : vector<8x128xf32> to vector<8x32xf32>
    %307 = arith.mulf %305, %306 : vector<8x32xf32>
    %308 = arith.addf %304, %307 : vector<8x32xf32>
    %309 = vector.extract_strided_slice %301 {offsets = [0, 96], sizes = [8, 32], strides = [1, 1]} : vector<8x128xf32> to vector<8x32xf32>
    %310 = math.tanh %308 : vector<8x32xf32>
    %311 = arith.mulf %309, %310 : vector<8x32xf32>
    %c7_i32_49 = arith.constant 7 : i32
    %c2_i32_50 = arith.constant 2 : i32
    %312 = vector.broadcast %c7_i32_49 : i32 to vector<8x1xi32>
    %313 = vector.broadcast %c2_i32_50 : i32 to vector<8x1xi32>
    %314 = arith.select %12, %312, %313 : vector<8x1xi1>, vector<8x1xi32>
    %315 = arith.cmpi slt, %314, %9 : vector<8x1xi32>
    %316 = vector.shape_cast %315 : vector<8x1xi1> to vector<8x1xi1>
    %317 = vector.broadcast %316 : vector<8x1xi1> to vector<8x32xi1>
    %318 = arith.select %317, %311, %280 : vector<8x32xi1>, vector<8x32xf32>
    %319 = vector.shape_cast %315 : vector<8x1xi1> to vector<8x1xi1>
    %320 = vector.broadcast %319 : vector<8x1xi1> to vector<8x32xi1>
    %321 = arith.select %320, %308, %283 : vector<8x32xi1>, vector<8x32xf32>
    %322 = vector.extract_strided_slice %318 {offsets = [0, 0], sizes = [4, 32], strides = [1, 1]} : vector<8x32xf32> to vector<4x32xf32>
    %323 = vector.extract_strided_slice %318 {offsets = [4, 0], sizes = [4, 32], strides = [1, 1]} : vector<8x32xf32> to vector<4x32xf32>
    %324 = vector.extract_strided_slice %17 {offsets = [32, 0], sizes = [4, 128], strides = [1, 1]} : vector<40x256xf32> to vector<4x128xf32>
    %325 = vector.extract_strided_slice %17 {offsets = [4, 128], sizes = [4, 128], strides = [1, 1]} : vector<40x256xf32> to vector<4x128xf32>
    %326 = tpu.concatenate %324, %325 in 0 : vector<4x128xf32>, vector<4x128xf32> -> vector<8x128xf32>
    %c0_51 = arith.constant 0 : index
    %c0_52 = arith.constant 0 : index
    %327 = vector.load %arg4[%c0_51, %c0_52] : memref<32x256xf32, #tpu.memory_space<vmem>>, vector<32x256xf32>
    %cst_53 = arith.constant dense<0.000000e+00> : vector<8x256xf32>
    %328 = tpu.matmul %318, %327, %cst_53 {dimension_numbers = #tpu.dot_dimension_numbers<[1], [0], [0], [1], [0, 0, 1, 1], [], []>} : vector<8x32xf32>, vector<32x256xf32>, vector<8x256xf32> -> vector<8x256xf32>
    %329 = vector.extract_strided_slice %328 {offsets = [0, 0], sizes = [8, 128], strides = [1, 1]} : vector<8x256xf32> to vector<8x128xf32>
    %330 = vector.extract_strided_slice %328 {offsets = [0, 128], sizes = [8, 128], strides = [1, 1]} : vector<8x256xf32> to vector<8x128xf32>
    %331 = vector.shape_cast %12 : vector<8x1xi1> to vector<8x1xi1>
    %332 = vector.broadcast %331 : vector<8x1xi1> to vector<8x128xi1>
    %333 = arith.select %332, %329, %330 : vector<8x128xi1>, vector<8x128xf32>
    %334 = arith.addf %326, %333 : vector<8x128xf32>
    %335 = arith.negf %334 : vector<8x128xf32>
    %336 = math.exp %335 : vector<8x128xf32>
    %cst_54 = arith.constant 1.000000e+00 : f32
    %337 = vector.broadcast %cst_54 : f32 to vector<8x128xf32>
    %338 = arith.addf %337, %336 : vector<8x128xf32>
    %339 = arith.divf %337, %338 : vector<8x128xf32>
    %340 = math.tanh %334 : vector<8x128xf32>
    %341 = vector.extract_strided_slice %339 {offsets = [0, 32], sizes = [8, 32], strides = [1, 1]} : vector<8x128xf32> to vector<8x32xf32>
    %342 = arith.mulf %341, %321 : vector<8x32xf32>
    %343 = vector.extract_strided_slice %339 {offsets = [0, 0], sizes = [8, 32], strides = [1, 1]} : vector<8x128xf32> to vector<8x32xf32>
    %344 = vector.extract_strided_slice %340 {offsets = [0, 64], sizes = [8, 32], strides = [1, 1]} : vector<8x128xf32> to vector<8x32xf32>
    %345 = arith.mulf %343, %344 : vector<8x32xf32>
    %346 = arith.addf %342, %345 : vector<8x32xf32>
    %347 = vector.extract_strided_slice %339 {offsets = [0, 96], sizes = [8, 32], strides = [1, 1]} : vector<8x128xf32> to vector<8x32xf32>
    %348 = math.tanh %346 : vector<8x32xf32>
    %349 = arith.mulf %347, %348 : vector<8x32xf32>
    %c8_i32_55 = arith.constant 8 : i32
    %c1_i32_56 = arith.constant 1 : i32
    %350 = vector.broadcast %c8_i32_55 : i32 to vector<8x1xi32>
    %351 = vector.broadcast %c1_i32_56 : i32 to vector<8x1xi32>
    %352 = arith.select %12, %350, %351 : vector<8x1xi1>, vector<8x1xi32>
    %353 = arith.cmpi slt, %352, %9 : vector<8x1xi32>
    %354 = vector.shape_cast %353 : vector<8x1xi1> to vector<8x1xi1>
    %355 = vector.broadcast %354 : vector<8x1xi1> to vector<8x32xi1>
    %356 = arith.select %355, %349, %318 : vector<8x32xi1>, vector<8x32xf32>
    %357 = vector.shape_cast %353 : vector<8x1xi1> to vector<8x1xi1>
    %358 = vector.broadcast %357 : vector<8x1xi1> to vector<8x32xi1>
    %359 = arith.select %358, %346, %321 : vector<8x32xi1>, vector<8x32xf32>
    %360 = vector.extract_strided_slice %356 {offsets = [0, 0], sizes = [4, 32], strides = [1, 1]} : vector<8x32xf32> to vector<4x32xf32>
    %361 = vector.extract_strided_slice %356 {offsets = [4, 0], sizes = [4, 32], strides = [1, 1]} : vector<8x32xf32> to vector<4x32xf32>
    %362 = vector.extract_strided_slice %17 {offsets = [36, 0], sizes = [4, 128], strides = [1, 1]} : vector<40x256xf32> to vector<4x128xf32>
    %363 = vector.extract_strided_slice %17 {offsets = [0, 128], sizes = [4, 128], strides = [1, 1]} : vector<40x256xf32> to vector<4x128xf32>
    %364 = tpu.concatenate %362, %363 in 0 : vector<4x128xf32>, vector<4x128xf32> -> vector<8x128xf32>
    %c0_57 = arith.constant 0 : index
    %c0_58 = arith.constant 0 : index
    %365 = vector.load %arg4[%c0_57, %c0_58] : memref<32x256xf32, #tpu.memory_space<vmem>>, vector<32x256xf32>
    %cst_59 = arith.constant dense<0.000000e+00> : vector<8x256xf32>
    %366 = tpu.matmul %356, %365, %cst_59 {dimension_numbers = #tpu.dot_dimension_numbers<[1], [0], [0], [1], [0, 0, 1, 1], [], []>} : vector<8x32xf32>, vector<32x256xf32>, vector<8x256xf32> -> vector<8x256xf32>
    %367 = vector.extract_strided_slice %366 {offsets = [0, 0], sizes = [8, 128], strides = [1, 1]} : vector<8x256xf32> to vector<8x128xf32>
    %368 = vector.extract_strided_slice %366 {offsets = [0, 128], sizes = [8, 128], strides = [1, 1]} : vector<8x256xf32> to vector<8x128xf32>
    %369 = vector.shape_cast %12 : vector<8x1xi1> to vector<8x1xi1>
    %370 = vector.broadcast %369 : vector<8x1xi1> to vector<8x128xi1>
    %371 = arith.select %370, %367, %368 : vector<8x128xi1>, vector<8x128xf32>
    %372 = arith.addf %364, %371 : vector<8x128xf32>
    %373 = arith.negf %372 : vector<8x128xf32>
    %374 = math.exp %373 : vector<8x128xf32>
    %cst_60 = arith.constant 1.000000e+00 : f32
    %375 = vector.broadcast %cst_60 : f32 to vector<8x128xf32>
    %376 = arith.addf %375, %374 : vector<8x128xf32>
    %377 = arith.divf %375, %376 : vector<8x128xf32>
    %378 = math.tanh %372 : vector<8x128xf32>
    %379 = vector.extract_strided_slice %377 {offsets = [0, 32], sizes = [8, 32], strides = [1, 1]} : vector<8x128xf32> to vector<8x32xf32>
    %380 = arith.mulf %379, %359 : vector<8x32xf32>
    %381 = vector.extract_strided_slice %377 {offsets = [0, 0], sizes = [8, 32], strides = [1, 1]} : vector<8x128xf32> to vector<8x32xf32>
    %382 = vector.extract_strided_slice %378 {offsets = [0, 64], sizes = [8, 32], strides = [1, 1]} : vector<8x128xf32> to vector<8x32xf32>
    %383 = arith.mulf %381, %382 : vector<8x32xf32>
    %384 = arith.addf %380, %383 : vector<8x32xf32>
    %385 = vector.extract_strided_slice %377 {offsets = [0, 96], sizes = [8, 32], strides = [1, 1]} : vector<8x128xf32> to vector<8x32xf32>
    %386 = math.tanh %384 : vector<8x32xf32>
    %387 = arith.mulf %385, %386 : vector<8x32xf32>
    %c9_i32_61 = arith.constant 9 : i32
    %c0_i32_62 = arith.constant 0 : i32
    %388 = vector.broadcast %c9_i32_61 : i32 to vector<8x1xi32>
    %389 = vector.broadcast %c0_i32_62 : i32 to vector<8x1xi32>
    %390 = arith.select %12, %388, %389 : vector<8x1xi1>, vector<8x1xi32>
    %391 = arith.cmpi slt, %390, %9 : vector<8x1xi32>
    %392 = vector.shape_cast %391 : vector<8x1xi1> to vector<8x1xi1>
    %393 = vector.broadcast %392 : vector<8x1xi1> to vector<8x32xi1>
    %394 = arith.select %393, %387, %356 : vector<8x32xi1>, vector<8x32xf32>
    %395 = vector.extract_strided_slice %394 {offsets = [0, 0], sizes = [4, 32], strides = [1, 1]} : vector<8x32xf32> to vector<4x32xf32>
    %396 = vector.extract_strided_slice %394 {offsets = [4, 0], sizes = [4, 32], strides = [1, 1]} : vector<8x32xf32> to vector<4x32xf32>
    %397 = tpu.concatenate %56, %396 in 1 : vector<4x32xf32>, vector<4x32xf32> -> vector<4x64xf32>
    %398 = tpu.concatenate %94, %361 in 1 : vector<4x32xf32>, vector<4x32xf32> -> vector<4x64xf32>
    %399 = tpu.concatenate %132, %323 in 1 : vector<4x32xf32>, vector<4x32xf32> -> vector<4x64xf32>
    %400 = tpu.concatenate %170, %285 in 1 : vector<4x32xf32>, vector<4x32xf32> -> vector<4x64xf32>
    %401 = tpu.concatenate %208, %247 in 1 : vector<4x32xf32>, vector<4x32xf32> -> vector<4x64xf32>
    %402 = tpu.concatenate %246, %209 in 1 : vector<4x32xf32>, vector<4x32xf32> -> vector<4x64xf32>
    %403 = tpu.concatenate %284, %171 in 1 : vector<4x32xf32>, vector<4x32xf32> -> vector<4x64xf32>
    %404 = tpu.concatenate %322, %133 in 1 : vector<4x32xf32>, vector<4x32xf32> -> vector<4x64xf32>
    %405 = tpu.concatenate %360, %95 in 1 : vector<4x32xf32>, vector<4x32xf32> -> vector<4x64xf32>
    %406 = tpu.concatenate %395, %57 in 1 : vector<4x32xf32>, vector<4x32xf32> -> vector<4x64xf32>
    %407 = tpu.concatenate %397, %398, %399, %400, %401, %402, %403, %404, %405, %406 in 0 : vector<4x64xf32>, vector<4x64xf32>, vector<4x64xf32>, vector<4x64xf32>, vector<4x64xf32>, vector<4x64xf32>, vector<4x64xf32>, vector<4x64xf32>, vector<4x64xf32>, vector<4x64xf32> -> vector<40x64xf32>
    %408 = vector.extract_strided_slice %394 {offsets = [0, 0], sizes = [4, 32], strides = [1, 1]} : vector<8x32xf32> to vector<4x32xf32>
    %409 = vector.extract_strided_slice %394 {offsets = [4, 0], sizes = [4, 32], strides = [1, 1]} : vector<8x32xf32> to vector<4x32xf32>
    %c0_63 = arith.constant 0 : index
    %c0_64 = arith.constant 0 : index
    %410 = vector.load %arg6[%c0_63, %c0_64] : memref<64x256xf32, #tpu.memory_space<vmem>>, vector<64x256xf32>
    %cst_65 = arith.constant dense<0.000000e+00> : vector<40x256xf32>
    %411 = tpu.matmul %407, %410, %cst_65 {dimension_numbers = #tpu.dot_dimension_numbers<[1], [0], [0], [1], [0, 0, 1, 1], [], []>} : vector<40x64xf32>, vector<64x256xf32>, vector<40x256xf32> -> vector<40x256xf32>
    %c0_66 = arith.constant 0 : index
    %c0_67 = arith.constant 0 : index
    %412 = vector.load %arg8[%c0_66, %c0_67] : memref<1x256xf32, #tpu.memory_space<vmem>>, vector<1x256xf32>
    %413 = vector.broadcast %412 : vector<1x256xf32> to vector<40x256xf32>
    %414 = arith.addf %411, %413 : vector<40x256xf32>
    %cst_68 = arith.constant 0.000000e+00 : f32
    %415 = vector.broadcast %cst_68 : f32 to vector<8x32xf32>
    %cst_69 = arith.constant 0.000000e+00 : f32
    %416 = vector.broadcast %cst_69 : f32 to vector<8x32xf32>
    %417 = vector.extract_strided_slice %414 {offsets = [0, 0], sizes = [4, 128], strides = [1, 1]} : vector<40x256xf32> to vector<4x128xf32>
    %418 = vector.extract_strided_slice %414 {offsets = [36, 128], sizes = [4, 128], strides = [1, 1]} : vector<40x256xf32> to vector<4x128xf32>
    %419 = tpu.concatenate %417, %418 in 0 : vector<4x128xf32>, vector<4x128xf32> -> vector<8x128xf32>
    %c0_70 = arith.constant 0 : index
    %c0_71 = arith.constant 0 : index
    %420 = vector.load %arg7[%c0_70, %c0_71] : memref<32x256xf32, #tpu.memory_space<vmem>>, vector<32x256xf32>
    %cst_72 = arith.constant dense<0.000000e+00> : vector<8x256xf32>
    %421 = tpu.matmul %415, %420, %cst_72 {dimension_numbers = #tpu.dot_dimension_numbers<[1], [0], [0], [1], [0, 0, 1, 1], [], []>} : vector<8x32xf32>, vector<32x256xf32>, vector<8x256xf32> -> vector<8x256xf32>
    %422 = vector.extract_strided_slice %421 {offsets = [0, 0], sizes = [8, 128], strides = [1, 1]} : vector<8x256xf32> to vector<8x128xf32>
    %423 = vector.extract_strided_slice %421 {offsets = [0, 128], sizes = [8, 128], strides = [1, 1]} : vector<8x256xf32> to vector<8x128xf32>
    %424 = vector.shape_cast %12 : vector<8x1xi1> to vector<8x1xi1>
    %425 = vector.broadcast %424 : vector<8x1xi1> to vector<8x128xi1>
    %426 = arith.select %425, %422, %423 : vector<8x128xi1>, vector<8x128xf32>
    %427 = arith.addf %419, %426 : vector<8x128xf32>
    %428 = arith.negf %427 : vector<8x128xf32>
    %429 = math.exp %428 : vector<8x128xf32>
    %cst_73 = arith.constant 1.000000e+00 : f32
    %430 = vector.broadcast %cst_73 : f32 to vector<8x128xf32>
    %431 = arith.addf %430, %429 : vector<8x128xf32>
    %432 = arith.divf %430, %431 : vector<8x128xf32>
    %433 = math.tanh %427 : vector<8x128xf32>
    %434 = vector.extract_strided_slice %432 {offsets = [0, 32], sizes = [8, 32], strides = [1, 1]} : vector<8x128xf32> to vector<8x32xf32>
    %435 = arith.mulf %434, %416 : vector<8x32xf32>
    %436 = vector.extract_strided_slice %432 {offsets = [0, 0], sizes = [8, 32], strides = [1, 1]} : vector<8x128xf32> to vector<8x32xf32>
    %437 = vector.extract_strided_slice %433 {offsets = [0, 64], sizes = [8, 32], strides = [1, 1]} : vector<8x128xf32> to vector<8x32xf32>
    %438 = arith.mulf %436, %437 : vector<8x32xf32>
    %439 = arith.addf %435, %438 : vector<8x32xf32>
    %440 = vector.extract_strided_slice %432 {offsets = [0, 96], sizes = [8, 32], strides = [1, 1]} : vector<8x128xf32> to vector<8x32xf32>
    %441 = math.tanh %439 : vector<8x32xf32>
    %442 = arith.mulf %440, %441 : vector<8x32xf32>
    %c0_i32_74 = arith.constant 0 : i32
    %c9_i32_75 = arith.constant 9 : i32
    %443 = vector.broadcast %c0_i32_74 : i32 to vector<8x1xi32>
    %444 = vector.broadcast %c9_i32_75 : i32 to vector<8x1xi32>
    %445 = arith.select %12, %443, %444 : vector<8x1xi1>, vector<8x1xi32>
    %446 = arith.cmpi slt, %445, %9 : vector<8x1xi32>
    %447 = vector.shape_cast %446 : vector<8x1xi1> to vector<8x1xi1>
    %448 = vector.broadcast %447 : vector<8x1xi1> to vector<8x32xi1>
    %449 = arith.select %448, %442, %415 : vector<8x32xi1>, vector<8x32xf32>
    %450 = vector.shape_cast %446 : vector<8x1xi1> to vector<8x1xi1>
    %451 = vector.broadcast %450 : vector<8x1xi1> to vector<8x32xi1>
    %452 = arith.select %451, %439, %416 : vector<8x32xi1>, vector<8x32xf32>
    %453 = vector.extract_strided_slice %414 {offsets = [4, 0], sizes = [4, 128], strides = [1, 1]} : vector<40x256xf32> to vector<4x128xf32>
    %454 = vector.extract_strided_slice %414 {offsets = [32, 128], sizes = [4, 128], strides = [1, 1]} : vector<40x256xf32> to vector<4x128xf32>
    %455 = tpu.concatenate %453, %454 in 0 : vector<4x128xf32>, vector<4x128xf32> -> vector<8x128xf32>
    %c0_76 = arith.constant 0 : index
    %c0_77 = arith.constant 0 : index
    %456 = vector.load %arg7[%c0_76, %c0_77] : memref<32x256xf32, #tpu.memory_space<vmem>>, vector<32x256xf32>
    %cst_78 = arith.constant dense<0.000000e+00> : vector<8x256xf32>
    %457 = tpu.matmul %449, %456, %cst_78 {dimension_numbers = #tpu.dot_dimension_numbers<[1], [0], [0], [1], [0, 0, 1, 1], [], []>} : vector<8x32xf32>, vector<32x256xf32>, vector<8x256xf32> -> vector<8x256xf32>
    %458 = vector.extract_strided_slice %457 {offsets = [0, 0], sizes = [8, 128], strides = [1, 1]} : vector<8x256xf32> to vector<8x128xf32>
    %459 = vector.extract_strided_slice %457 {offsets = [0, 128], sizes = [8, 128], strides = [1, 1]} : vector<8x256xf32> to vector<8x128xf32>
    %460 = vector.shape_cast %12 : vector<8x1xi1> to vector<8x1xi1>
    %461 = vector.broadcast %460 : vector<8x1xi1> to vector<8x128xi1>
    %462 = arith.select %461, %458, %459 : vector<8x128xi1>, vector<8x128xf32>
    %463 = arith.addf %455, %462 : vector<8x128xf32>
    %464 = arith.negf %463 : vector<8x128xf32>
    %465 = math.exp %464 : vector<8x128xf32>
    %cst_79 = arith.constant 1.000000e+00 : f32
    %466 = vector.broadcast %cst_79 : f32 to vector<8x128xf32>
    %467 = arith.addf %466, %465 : vector<8x128xf32>
    %468 = arith.divf %466, %467 : vector<8x128xf32>
    %469 = math.tanh %463 : vector<8x128xf32>
    %470 = vector.extract_strided_slice %468 {offsets = [0, 32], sizes = [8, 32], strides = [1, 1]} : vector<8x128xf32> to vector<8x32xf32>
    %471 = arith.mulf %470, %452 : vector<8x32xf32>
    %472 = vector.extract_strided_slice %468 {offsets = [0, 0], sizes = [8, 32], strides = [1, 1]} : vector<8x128xf32> to vector<8x32xf32>
    %473 = vector.extract_strided_slice %469 {offsets = [0, 64], sizes = [8, 32], strides = [1, 1]} : vector<8x128xf32> to vector<8x32xf32>
    %474 = arith.mulf %472, %473 : vector<8x32xf32>
    %475 = arith.addf %471, %474 : vector<8x32xf32>
    %476 = vector.extract_strided_slice %468 {offsets = [0, 96], sizes = [8, 32], strides = [1, 1]} : vector<8x128xf32> to vector<8x32xf32>
    %477 = math.tanh %475 : vector<8x32xf32>
    %478 = arith.mulf %476, %477 : vector<8x32xf32>
    %c1_i32_80 = arith.constant 1 : i32
    %c8_i32_81 = arith.constant 8 : i32
    %479 = vector.broadcast %c1_i32_80 : i32 to vector<8x1xi32>
    %480 = vector.broadcast %c8_i32_81 : i32 to vector<8x1xi32>
    %481 = arith.select %12, %479, %480 : vector<8x1xi1>, vector<8x1xi32>
    %482 = arith.cmpi slt, %481, %9 : vector<8x1xi32>
    %483 = vector.shape_cast %482 : vector<8x1xi1> to vector<8x1xi1>
    %484 = vector.broadcast %483 : vector<8x1xi1> to vector<8x32xi1>
    %485 = arith.select %484, %478, %449 : vector<8x32xi1>, vector<8x32xf32>
    %486 = vector.shape_cast %482 : vector<8x1xi1> to vector<8x1xi1>
    %487 = vector.broadcast %486 : vector<8x1xi1> to vector<8x32xi1>
    %488 = arith.select %487, %475, %452 : vector<8x32xi1>, vector<8x32xf32>
    %489 = vector.extract_strided_slice %414 {offsets = [8, 0], sizes = [4, 128], strides = [1, 1]} : vector<40x256xf32> to vector<4x128xf32>
    %490 = vector.extract_strided_slice %414 {offsets = [28, 128], sizes = [4, 128], strides = [1, 1]} : vector<40x256xf32> to vector<4x128xf32>
    %491 = tpu.concatenate %489, %490 in 0 : vector<4x128xf32>, vector<4x128xf32> -> vector<8x128xf32>
    %c0_82 = arith.constant 0 : index
    %c0_83 = arith.constant 0 : index
    %492 = vector.load %arg7[%c0_82, %c0_83] : memref<32x256xf32, #tpu.memory_space<vmem>>, vector<32x256xf32>
    %cst_84 = arith.constant dense<0.000000e+00> : vector<8x256xf32>
    %493 = tpu.matmul %485, %492, %cst_84 {dimension_numbers = #tpu.dot_dimension_numbers<[1], [0], [0], [1], [0, 0, 1, 1], [], []>} : vector<8x32xf32>, vector<32x256xf32>, vector<8x256xf32> -> vector<8x256xf32>
    %494 = vector.extract_strided_slice %493 {offsets = [0, 0], sizes = [8, 128], strides = [1, 1]} : vector<8x256xf32> to vector<8x128xf32>
    %495 = vector.extract_strided_slice %493 {offsets = [0, 128], sizes = [8, 128], strides = [1, 1]} : vector<8x256xf32> to vector<8x128xf32>
    %496 = vector.shape_cast %12 : vector<8x1xi1> to vector<8x1xi1>
    %497 = vector.broadcast %496 : vector<8x1xi1> to vector<8x128xi1>
    %498 = arith.select %497, %494, %495 : vector<8x128xi1>, vector<8x128xf32>
    %499 = arith.addf %491, %498 : vector<8x128xf32>
    %500 = arith.negf %499 : vector<8x128xf32>
    %501 = math.exp %500 : vector<8x128xf32>
    %cst_85 = arith.constant 1.000000e+00 : f32
    %502 = vector.broadcast %cst_85 : f32 to vector<8x128xf32>
    %503 = arith.addf %502, %501 : vector<8x128xf32>
    %504 = arith.divf %502, %503 : vector<8x128xf32>
    %505 = math.tanh %499 : vector<8x128xf32>
    %506 = vector.extract_strided_slice %504 {offsets = [0, 32], sizes = [8, 32], strides = [1, 1]} : vector<8x128xf32> to vector<8x32xf32>
    %507 = arith.mulf %506, %488 : vector<8x32xf32>
    %508 = vector.extract_strided_slice %504 {offsets = [0, 0], sizes = [8, 32], strides = [1, 1]} : vector<8x128xf32> to vector<8x32xf32>
    %509 = vector.extract_strided_slice %505 {offsets = [0, 64], sizes = [8, 32], strides = [1, 1]} : vector<8x128xf32> to vector<8x32xf32>
    %510 = arith.mulf %508, %509 : vector<8x32xf32>
    %511 = arith.addf %507, %510 : vector<8x32xf32>
    %512 = vector.extract_strided_slice %504 {offsets = [0, 96], sizes = [8, 32], strides = [1, 1]} : vector<8x128xf32> to vector<8x32xf32>
    %513 = math.tanh %511 : vector<8x32xf32>
    %514 = arith.mulf %512, %513 : vector<8x32xf32>
    %c2_i32_86 = arith.constant 2 : i32
    %c7_i32_87 = arith.constant 7 : i32
    %515 = vector.broadcast %c2_i32_86 : i32 to vector<8x1xi32>
    %516 = vector.broadcast %c7_i32_87 : i32 to vector<8x1xi32>
    %517 = arith.select %12, %515, %516 : vector<8x1xi1>, vector<8x1xi32>
    %518 = arith.cmpi slt, %517, %9 : vector<8x1xi32>
    %519 = vector.shape_cast %518 : vector<8x1xi1> to vector<8x1xi1>
    %520 = vector.broadcast %519 : vector<8x1xi1> to vector<8x32xi1>
    %521 = arith.select %520, %514, %485 : vector<8x32xi1>, vector<8x32xf32>
    %522 = vector.shape_cast %518 : vector<8x1xi1> to vector<8x1xi1>
    %523 = vector.broadcast %522 : vector<8x1xi1> to vector<8x32xi1>
    %524 = arith.select %523, %511, %488 : vector<8x32xi1>, vector<8x32xf32>
    %525 = vector.extract_strided_slice %414 {offsets = [12, 0], sizes = [4, 128], strides = [1, 1]} : vector<40x256xf32> to vector<4x128xf32>
    %526 = vector.extract_strided_slice %414 {offsets = [24, 128], sizes = [4, 128], strides = [1, 1]} : vector<40x256xf32> to vector<4x128xf32>
    %527 = tpu.concatenate %525, %526 in 0 : vector<4x128xf32>, vector<4x128xf32> -> vector<8x128xf32>
    %c0_88 = arith.constant 0 : index
    %c0_89 = arith.constant 0 : index
    %528 = vector.load %arg7[%c0_88, %c0_89] : memref<32x256xf32, #tpu.memory_space<vmem>>, vector<32x256xf32>
    %cst_90 = arith.constant dense<0.000000e+00> : vector<8x256xf32>
    %529 = tpu.matmul %521, %528, %cst_90 {dimension_numbers = #tpu.dot_dimension_numbers<[1], [0], [0], [1], [0, 0, 1, 1], [], []>} : vector<8x32xf32>, vector<32x256xf32>, vector<8x256xf32> -> vector<8x256xf32>
    %530 = vector.extract_strided_slice %529 {offsets = [0, 0], sizes = [8, 128], strides = [1, 1]} : vector<8x256xf32> to vector<8x128xf32>
    %531 = vector.extract_strided_slice %529 {offsets = [0, 128], sizes = [8, 128], strides = [1, 1]} : vector<8x256xf32> to vector<8x128xf32>
    %532 = vector.shape_cast %12 : vector<8x1xi1> to vector<8x1xi1>
    %533 = vector.broadcast %532 : vector<8x1xi1> to vector<8x128xi1>
    %534 = arith.select %533, %530, %531 : vector<8x128xi1>, vector<8x128xf32>
    %535 = arith.addf %527, %534 : vector<8x128xf32>
    %536 = arith.negf %535 : vector<8x128xf32>
    %537 = math.exp %536 : vector<8x128xf32>
    %cst_91 = arith.constant 1.000000e+00 : f32
    %538 = vector.broadcast %cst_91 : f32 to vector<8x128xf32>
    %539 = arith.addf %538, %537 : vector<8x128xf32>
    %540 = arith.divf %538, %539 : vector<8x128xf32>
    %541 = math.tanh %535 : vector<8x128xf32>
    %542 = vector.extract_strided_slice %540 {offsets = [0, 32], sizes = [8, 32], strides = [1, 1]} : vector<8x128xf32> to vector<8x32xf32>
    %543 = arith.mulf %542, %524 : vector<8x32xf32>
    %544 = vector.extract_strided_slice %540 {offsets = [0, 0], sizes = [8, 32], strides = [1, 1]} : vector<8x128xf32> to vector<8x32xf32>
    %545 = vector.extract_strided_slice %541 {offsets = [0, 64], sizes = [8, 32], strides = [1, 1]} : vector<8x128xf32> to vector<8x32xf32>
    %546 = arith.mulf %544, %545 : vector<8x32xf32>
    %547 = arith.addf %543, %546 : vector<8x32xf32>
    %548 = vector.extract_strided_slice %540 {offsets = [0, 96], sizes = [8, 32], strides = [1, 1]} : vector<8x128xf32> to vector<8x32xf32>
    %549 = math.tanh %547 : vector<8x32xf32>
    %550 = arith.mulf %548, %549 : vector<8x32xf32>
    %c3_i32_92 = arith.constant 3 : i32
    %c6_i32_93 = arith.constant 6 : i32
    %551 = vector.broadcast %c3_i32_92 : i32 to vector<8x1xi32>
    %552 = vector.broadcast %c6_i32_93 : i32 to vector<8x1xi32>
    %553 = arith.select %12, %551, %552 : vector<8x1xi1>, vector<8x1xi32>
    %554 = arith.cmpi slt, %553, %9 : vector<8x1xi32>
    %555 = vector.shape_cast %554 : vector<8x1xi1> to vector<8x1xi1>
    %556 = vector.broadcast %555 : vector<8x1xi1> to vector<8x32xi1>
    %557 = arith.select %556, %550, %521 : vector<8x32xi1>, vector<8x32xf32>
    %558 = vector.shape_cast %554 : vector<8x1xi1> to vector<8x1xi1>
    %559 = vector.broadcast %558 : vector<8x1xi1> to vector<8x32xi1>
    %560 = arith.select %559, %547, %524 : vector<8x32xi1>, vector<8x32xf32>
    %561 = vector.extract_strided_slice %414 {offsets = [16, 0], sizes = [4, 128], strides = [1, 1]} : vector<40x256xf32> to vector<4x128xf32>
    %562 = vector.extract_strided_slice %414 {offsets = [20, 128], sizes = [4, 128], strides = [1, 1]} : vector<40x256xf32> to vector<4x128xf32>
    %563 = tpu.concatenate %561, %562 in 0 : vector<4x128xf32>, vector<4x128xf32> -> vector<8x128xf32>
    %c0_94 = arith.constant 0 : index
    %c0_95 = arith.constant 0 : index
    %564 = vector.load %arg7[%c0_94, %c0_95] : memref<32x256xf32, #tpu.memory_space<vmem>>, vector<32x256xf32>
    %cst_96 = arith.constant dense<0.000000e+00> : vector<8x256xf32>
    %565 = tpu.matmul %557, %564, %cst_96 {dimension_numbers = #tpu.dot_dimension_numbers<[1], [0], [0], [1], [0, 0, 1, 1], [], []>} : vector<8x32xf32>, vector<32x256xf32>, vector<8x256xf32> -> vector<8x256xf32>
    %566 = vector.extract_strided_slice %565 {offsets = [0, 0], sizes = [8, 128], strides = [1, 1]} : vector<8x256xf32> to vector<8x128xf32>
    %567 = vector.extract_strided_slice %565 {offsets = [0, 128], sizes = [8, 128], strides = [1, 1]} : vector<8x256xf32> to vector<8x128xf32>
    %568 = vector.shape_cast %12 : vector<8x1xi1> to vector<8x1xi1>
    %569 = vector.broadcast %568 : vector<8x1xi1> to vector<8x128xi1>
    %570 = arith.select %569, %566, %567 : vector<8x128xi1>, vector<8x128xf32>
    %571 = arith.addf %563, %570 : vector<8x128xf32>
    %572 = arith.negf %571 : vector<8x128xf32>
    %573 = math.exp %572 : vector<8x128xf32>
    %cst_97 = arith.constant 1.000000e+00 : f32
    %574 = vector.broadcast %cst_97 : f32 to vector<8x128xf32>
    %575 = arith.addf %574, %573 : vector<8x128xf32>
    %576 = arith.divf %574, %575 : vector<8x128xf32>
    %577 = math.tanh %571 : vector<8x128xf32>
    %578 = vector.extract_strided_slice %576 {offsets = [0, 32], sizes = [8, 32], strides = [1, 1]} : vector<8x128xf32> to vector<8x32xf32>
    %579 = arith.mulf %578, %560 : vector<8x32xf32>
    %580 = vector.extract_strided_slice %576 {offsets = [0, 0], sizes = [8, 32], strides = [1, 1]} : vector<8x128xf32> to vector<8x32xf32>
    %581 = vector.extract_strided_slice %577 {offsets = [0, 64], sizes = [8, 32], strides = [1, 1]} : vector<8x128xf32> to vector<8x32xf32>
    %582 = arith.mulf %580, %581 : vector<8x32xf32>
    %583 = arith.addf %579, %582 : vector<8x32xf32>
    %584 = vector.extract_strided_slice %576 {offsets = [0, 96], sizes = [8, 32], strides = [1, 1]} : vector<8x128xf32> to vector<8x32xf32>
    %585 = math.tanh %583 : vector<8x32xf32>
    %586 = arith.mulf %584, %585 : vector<8x32xf32>
    %c4_i32_98 = arith.constant 4 : i32
    %c5_i32_99 = arith.constant 5 : i32
    %587 = vector.broadcast %c4_i32_98 : i32 to vector<8x1xi32>
    %588 = vector.broadcast %c5_i32_99 : i32 to vector<8x1xi32>
    %589 = arith.select %12, %587, %588 : vector<8x1xi1>, vector<8x1xi32>
    %590 = arith.cmpi slt, %589, %9 : vector<8x1xi32>
    %591 = vector.shape_cast %590 : vector<8x1xi1> to vector<8x1xi1>
    %592 = vector.broadcast %591 : vector<8x1xi1> to vector<8x32xi1>
    %593 = arith.select %592, %586, %557 : vector<8x32xi1>, vector<8x32xf32>
    %594 = vector.shape_cast %590 : vector<8x1xi1> to vector<8x1xi1>
    %595 = vector.broadcast %594 : vector<8x1xi1> to vector<8x32xi1>
    %596 = arith.select %595, %583, %560 : vector<8x32xi1>, vector<8x32xf32>
    %597 = vector.extract_strided_slice %414 {offsets = [20, 0], sizes = [4, 128], strides = [1, 1]} : vector<40x256xf32> to vector<4x128xf32>
    %598 = vector.extract_strided_slice %414 {offsets = [16, 128], sizes = [4, 128], strides = [1, 1]} : vector<40x256xf32> to vector<4x128xf32>
    %599 = tpu.concatenate %597, %598 in 0 : vector<4x128xf32>, vector<4x128xf32> -> vector<8x128xf32>
    %c0_100 = arith.constant 0 : index
    %c0_101 = arith.constant 0 : index
    %600 = vector.load %arg7[%c0_100, %c0_101] : memref<32x256xf32, #tpu.memory_space<vmem>>, vector<32x256xf32>
    %cst_102 = arith.constant dense<0.000000e+00> : vector<8x256xf32>
    %601 = tpu.matmul %593, %600, %cst_102 {dimension_numbers = #tpu.dot_dimension_numbers<[1], [0], [0], [1], [0, 0, 1, 1], [], []>} : vector<8x32xf32>, vector<32x256xf32>, vector<8x256xf32> -> vector<8x256xf32>
    %602 = vector.extract_strided_slice %601 {offsets = [0, 0], sizes = [8, 128], strides = [1, 1]} : vector<8x256xf32> to vector<8x128xf32>
    %603 = vector.extract_strided_slice %601 {offsets = [0, 128], sizes = [8, 128], strides = [1, 1]} : vector<8x256xf32> to vector<8x128xf32>
    %604 = vector.shape_cast %12 : vector<8x1xi1> to vector<8x1xi1>
    %605 = vector.broadcast %604 : vector<8x1xi1> to vector<8x128xi1>
    %606 = arith.select %605, %602, %603 : vector<8x128xi1>, vector<8x128xf32>
    %607 = arith.addf %599, %606 : vector<8x128xf32>
    %608 = arith.negf %607 : vector<8x128xf32>
    %609 = math.exp %608 : vector<8x128xf32>
    %cst_103 = arith.constant 1.000000e+00 : f32
    %610 = vector.broadcast %cst_103 : f32 to vector<8x128xf32>
    %611 = arith.addf %610, %609 : vector<8x128xf32>
    %612 = arith.divf %610, %611 : vector<8x128xf32>
    %613 = math.tanh %607 : vector<8x128xf32>
    %614 = vector.extract_strided_slice %612 {offsets = [0, 32], sizes = [8, 32], strides = [1, 1]} : vector<8x128xf32> to vector<8x32xf32>
    %615 = arith.mulf %614, %596 : vector<8x32xf32>
    %616 = vector.extract_strided_slice %612 {offsets = [0, 0], sizes = [8, 32], strides = [1, 1]} : vector<8x128xf32> to vector<8x32xf32>
    %617 = vector.extract_strided_slice %613 {offsets = [0, 64], sizes = [8, 32], strides = [1, 1]} : vector<8x128xf32> to vector<8x32xf32>
    %618 = arith.mulf %616, %617 : vector<8x32xf32>
    %619 = arith.addf %615, %618 : vector<8x32xf32>
    %620 = vector.extract_strided_slice %612 {offsets = [0, 96], sizes = [8, 32], strides = [1, 1]} : vector<8x128xf32> to vector<8x32xf32>
    %621 = math.tanh %619 : vector<8x32xf32>
    %622 = arith.mulf %620, %621 : vector<8x32xf32>
    %c5_i32_104 = arith.constant 5 : i32
    %c4_i32_105 = arith.constant 4 : i32
    %623 = vector.broadcast %c5_i32_104 : i32 to vector<8x1xi32>
    %624 = vector.broadcast %c4_i32_105 : i32 to vector<8x1xi32>
    %625 = arith.select %12, %623, %624 : vector<8x1xi1>, vector<8x1xi32>
    %626 = arith.cmpi slt, %625, %9 : vector<8x1xi32>
    %627 = vector.shape_cast %626 : vector<8x1xi1> to vector<8x1xi1>
    %628 = vector.broadcast %627 : vector<8x1xi1> to vector<8x32xi1>
    %629 = arith.select %628, %622, %593 : vector<8x32xi1>, vector<8x32xf32>
    %630 = vector.shape_cast %626 : vector<8x1xi1> to vector<8x1xi1>
    %631 = vector.broadcast %630 : vector<8x1xi1> to vector<8x32xi1>
    %632 = arith.select %631, %619, %596 : vector<8x32xi1>, vector<8x32xf32>
    %633 = vector.extract_strided_slice %414 {offsets = [24, 0], sizes = [4, 128], strides = [1, 1]} : vector<40x256xf32> to vector<4x128xf32>
    %634 = vector.extract_strided_slice %414 {offsets = [12, 128], sizes = [4, 128], strides = [1, 1]} : vector<40x256xf32> to vector<4x128xf32>
    %635 = tpu.concatenate %633, %634 in 0 : vector<4x128xf32>, vector<4x128xf32> -> vector<8x128xf32>
    %c0_106 = arith.constant 0 : index
    %c0_107 = arith.constant 0 : index
    %636 = vector.load %arg7[%c0_106, %c0_107] : memref<32x256xf32, #tpu.memory_space<vmem>>, vector<32x256xf32>
    %cst_108 = arith.constant dense<0.000000e+00> : vector<8x256xf32>
    %637 = tpu.matmul %629, %636, %cst_108 {dimension_numbers = #tpu.dot_dimension_numbers<[1], [0], [0], [1], [0, 0, 1, 1], [], []>} : vector<8x32xf32>, vector<32x256xf32>, vector<8x256xf32> -> vector<8x256xf32>
    %638 = vector.extract_strided_slice %637 {offsets = [0, 0], sizes = [8, 128], strides = [1, 1]} : vector<8x256xf32> to vector<8x128xf32>
    %639 = vector.extract_strided_slice %637 {offsets = [0, 128], sizes = [8, 128], strides = [1, 1]} : vector<8x256xf32> to vector<8x128xf32>
    %640 = vector.shape_cast %12 : vector<8x1xi1> to vector<8x1xi1>
    %641 = vector.broadcast %640 : vector<8x1xi1> to vector<8x128xi1>
    %642 = arith.select %641, %638, %639 : vector<8x128xi1>, vector<8x128xf32>
    %643 = arith.addf %635, %642 : vector<8x128xf32>
    %644 = arith.negf %643 : vector<8x128xf32>
    %645 = math.exp %644 : vector<8x128xf32>
    %cst_109 = arith.constant 1.000000e+00 : f32
    %646 = vector.broadcast %cst_109 : f32 to vector<8x128xf32>
    %647 = arith.addf %646, %645 : vector<8x128xf32>
    %648 = arith.divf %646, %647 : vector<8x128xf32>
    %649 = math.tanh %643 : vector<8x128xf32>
    %650 = vector.extract_strided_slice %648 {offsets = [0, 32], sizes = [8, 32], strides = [1, 1]} : vector<8x128xf32> to vector<8x32xf32>
    %651 = arith.mulf %650, %632 : vector<8x32xf32>
    %652 = vector.extract_strided_slice %648 {offsets = [0, 0], sizes = [8, 32], strides = [1, 1]} : vector<8x128xf32> to vector<8x32xf32>
    %653 = vector.extract_strided_slice %649 {offsets = [0, 64], sizes = [8, 32], strides = [1, 1]} : vector<8x128xf32> to vector<8x32xf32>
    %654 = arith.mulf %652, %653 : vector<8x32xf32>
    %655 = arith.addf %651, %654 : vector<8x32xf32>
    %656 = vector.extract_strided_slice %648 {offsets = [0, 96], sizes = [8, 32], strides = [1, 1]} : vector<8x128xf32> to vector<8x32xf32>
    %657 = math.tanh %655 : vector<8x32xf32>
    %658 = arith.mulf %656, %657 : vector<8x32xf32>
    %c6_i32_110 = arith.constant 6 : i32
    %c3_i32_111 = arith.constant 3 : i32
    %659 = vector.broadcast %c6_i32_110 : i32 to vector<8x1xi32>
    %660 = vector.broadcast %c3_i32_111 : i32 to vector<8x1xi32>
    %661 = arith.select %12, %659, %660 : vector<8x1xi1>, vector<8x1xi32>
    %662 = arith.cmpi slt, %661, %9 : vector<8x1xi32>
    %663 = vector.shape_cast %662 : vector<8x1xi1> to vector<8x1xi1>
    %664 = vector.broadcast %663 : vector<8x1xi1> to vector<8x32xi1>
    %665 = arith.select %664, %658, %629 : vector<8x32xi1>, vector<8x32xf32>
    %666 = vector.shape_cast %662 : vector<8x1xi1> to vector<8x1xi1>
    %667 = vector.broadcast %666 : vector<8x1xi1> to vector<8x32xi1>
    %668 = arith.select %667, %655, %632 : vector<8x32xi1>, vector<8x32xf32>
    %669 = vector.extract_strided_slice %414 {offsets = [28, 0], sizes = [4, 128], strides = [1, 1]} : vector<40x256xf32> to vector<4x128xf32>
    %670 = vector.extract_strided_slice %414 {offsets = [8, 128], sizes = [4, 128], strides = [1, 1]} : vector<40x256xf32> to vector<4x128xf32>
    %671 = tpu.concatenate %669, %670 in 0 : vector<4x128xf32>, vector<4x128xf32> -> vector<8x128xf32>
    %c0_112 = arith.constant 0 : index
    %c0_113 = arith.constant 0 : index
    %672 = vector.load %arg7[%c0_112, %c0_113] : memref<32x256xf32, #tpu.memory_space<vmem>>, vector<32x256xf32>
    %cst_114 = arith.constant dense<0.000000e+00> : vector<8x256xf32>
    %673 = tpu.matmul %665, %672, %cst_114 {dimension_numbers = #tpu.dot_dimension_numbers<[1], [0], [0], [1], [0, 0, 1, 1], [], []>} : vector<8x32xf32>, vector<32x256xf32>, vector<8x256xf32> -> vector<8x256xf32>
    %674 = vector.extract_strided_slice %673 {offsets = [0, 0], sizes = [8, 128], strides = [1, 1]} : vector<8x256xf32> to vector<8x128xf32>
    %675 = vector.extract_strided_slice %673 {offsets = [0, 128], sizes = [8, 128], strides = [1, 1]} : vector<8x256xf32> to vector<8x128xf32>
    %676 = vector.shape_cast %12 : vector<8x1xi1> to vector<8x1xi1>
    %677 = vector.broadcast %676 : vector<8x1xi1> to vector<8x128xi1>
    %678 = arith.select %677, %674, %675 : vector<8x128xi1>, vector<8x128xf32>
    %679 = arith.addf %671, %678 : vector<8x128xf32>
    %680 = arith.negf %679 : vector<8x128xf32>
    %681 = math.exp %680 : vector<8x128xf32>
    %cst_115 = arith.constant 1.000000e+00 : f32
    %682 = vector.broadcast %cst_115 : f32 to vector<8x128xf32>
    %683 = arith.addf %682, %681 : vector<8x128xf32>
    %684 = arith.divf %682, %683 : vector<8x128xf32>
    %685 = math.tanh %679 : vector<8x128xf32>
    %686 = vector.extract_strided_slice %684 {offsets = [0, 32], sizes = [8, 32], strides = [1, 1]} : vector<8x128xf32> to vector<8x32xf32>
    %687 = arith.mulf %686, %668 : vector<8x32xf32>
    %688 = vector.extract_strided_slice %684 {offsets = [0, 0], sizes = [8, 32], strides = [1, 1]} : vector<8x128xf32> to vector<8x32xf32>
    %689 = vector.extract_strided_slice %685 {offsets = [0, 64], sizes = [8, 32], strides = [1, 1]} : vector<8x128xf32> to vector<8x32xf32>
    %690 = arith.mulf %688, %689 : vector<8x32xf32>
    %691 = arith.addf %687, %690 : vector<8x32xf32>
    %692 = vector.extract_strided_slice %684 {offsets = [0, 96], sizes = [8, 32], strides = [1, 1]} : vector<8x128xf32> to vector<8x32xf32>
    %693 = math.tanh %691 : vector<8x32xf32>
    %694 = arith.mulf %692, %693 : vector<8x32xf32>
    %c7_i32_116 = arith.constant 7 : i32
    %c2_i32_117 = arith.constant 2 : i32
    %695 = vector.broadcast %c7_i32_116 : i32 to vector<8x1xi32>
    %696 = vector.broadcast %c2_i32_117 : i32 to vector<8x1xi32>
    %697 = arith.select %12, %695, %696 : vector<8x1xi1>, vector<8x1xi32>
    %698 = arith.cmpi slt, %697, %9 : vector<8x1xi32>
    %699 = vector.shape_cast %698 : vector<8x1xi1> to vector<8x1xi1>
    %700 = vector.broadcast %699 : vector<8x1xi1> to vector<8x32xi1>
    %701 = arith.select %700, %694, %665 : vector<8x32xi1>, vector<8x32xf32>
    %702 = vector.shape_cast %698 : vector<8x1xi1> to vector<8x1xi1>
    %703 = vector.broadcast %702 : vector<8x1xi1> to vector<8x32xi1>
    %704 = arith.select %703, %691, %668 : vector<8x32xi1>, vector<8x32xf32>
    %705 = vector.extract_strided_slice %414 {offsets = [32, 0], sizes = [4, 128], strides = [1, 1]} : vector<40x256xf32> to vector<4x128xf32>
    %706 = vector.extract_strided_slice %414 {offsets = [4, 128], sizes = [4, 128], strides = [1, 1]} : vector<40x256xf32> to vector<4x128xf32>
    %707 = tpu.concatenate %705, %706 in 0 : vector<4x128xf32>, vector<4x128xf32> -> vector<8x128xf32>
    %c0_118 = arith.constant 0 : index
    %c0_119 = arith.constant 0 : index
    %708 = vector.load %arg7[%c0_118, %c0_119] : memref<32x256xf32, #tpu.memory_space<vmem>>, vector<32x256xf32>
    %cst_120 = arith.constant dense<0.000000e+00> : vector<8x256xf32>
    %709 = tpu.matmul %701, %708, %cst_120 {dimension_numbers = #tpu.dot_dimension_numbers<[1], [0], [0], [1], [0, 0, 1, 1], [], []>} : vector<8x32xf32>, vector<32x256xf32>, vector<8x256xf32> -> vector<8x256xf32>
    %710 = vector.extract_strided_slice %709 {offsets = [0, 0], sizes = [8, 128], strides = [1, 1]} : vector<8x256xf32> to vector<8x128xf32>
    %711 = vector.extract_strided_slice %709 {offsets = [0, 128], sizes = [8, 128], strides = [1, 1]} : vector<8x256xf32> to vector<8x128xf32>
    %712 = vector.shape_cast %12 : vector<8x1xi1> to vector<8x1xi1>
    %713 = vector.broadcast %712 : vector<8x1xi1> to vector<8x128xi1>
    %714 = arith.select %713, %710, %711 : vector<8x128xi1>, vector<8x128xf32>
    %715 = arith.addf %707, %714 : vector<8x128xf32>
    %716 = arith.negf %715 : vector<8x128xf32>
    %717 = math.exp %716 : vector<8x128xf32>
    %cst_121 = arith.constant 1.000000e+00 : f32
    %718 = vector.broadcast %cst_121 : f32 to vector<8x128xf32>
    %719 = arith.addf %718, %717 : vector<8x128xf32>
    %720 = arith.divf %718, %719 : vector<8x128xf32>
    %721 = math.tanh %715 : vector<8x128xf32>
    %722 = vector.extract_strided_slice %720 {offsets = [0, 32], sizes = [8, 32], strides = [1, 1]} : vector<8x128xf32> to vector<8x32xf32>
    %723 = arith.mulf %722, %704 : vector<8x32xf32>
    %724 = vector.extract_strided_slice %720 {offsets = [0, 0], sizes = [8, 32], strides = [1, 1]} : vector<8x128xf32> to vector<8x32xf32>
    %725 = vector.extract_strided_slice %721 {offsets = [0, 64], sizes = [8, 32], strides = [1, 1]} : vector<8x128xf32> to vector<8x32xf32>
    %726 = arith.mulf %724, %725 : vector<8x32xf32>
    %727 = arith.addf %723, %726 : vector<8x32xf32>
    %728 = vector.extract_strided_slice %720 {offsets = [0, 96], sizes = [8, 32], strides = [1, 1]} : vector<8x128xf32> to vector<8x32xf32>
    %729 = math.tanh %727 : vector<8x32xf32>
    %730 = arith.mulf %728, %729 : vector<8x32xf32>
    %c8_i32_122 = arith.constant 8 : i32
    %c1_i32_123 = arith.constant 1 : i32
    %731 = vector.broadcast %c8_i32_122 : i32 to vector<8x1xi32>
    %732 = vector.broadcast %c1_i32_123 : i32 to vector<8x1xi32>
    %733 = arith.select %12, %731, %732 : vector<8x1xi1>, vector<8x1xi32>
    %734 = arith.cmpi slt, %733, %9 : vector<8x1xi32>
    %735 = vector.shape_cast %734 : vector<8x1xi1> to vector<8x1xi1>
    %736 = vector.broadcast %735 : vector<8x1xi1> to vector<8x32xi1>
    %737 = arith.select %736, %730, %701 : vector<8x32xi1>, vector<8x32xf32>
    %738 = vector.shape_cast %734 : vector<8x1xi1> to vector<8x1xi1>
    %739 = vector.broadcast %738 : vector<8x1xi1> to vector<8x32xi1>
    %740 = arith.select %739, %727, %704 : vector<8x32xi1>, vector<8x32xf32>
    %741 = vector.extract_strided_slice %414 {offsets = [36, 0], sizes = [4, 128], strides = [1, 1]} : vector<40x256xf32> to vector<4x128xf32>
    %742 = vector.extract_strided_slice %414 {offsets = [0, 128], sizes = [4, 128], strides = [1, 1]} : vector<40x256xf32> to vector<4x128xf32>
    %743 = tpu.concatenate %741, %742 in 0 : vector<4x128xf32>, vector<4x128xf32> -> vector<8x128xf32>
    %c0_124 = arith.constant 0 : index
    %c0_125 = arith.constant 0 : index
    %744 = vector.load %arg7[%c0_124, %c0_125] : memref<32x256xf32, #tpu.memory_space<vmem>>, vector<32x256xf32>
    %cst_126 = arith.constant dense<0.000000e+00> : vector<8x256xf32>
    %745 = tpu.matmul %737, %744, %cst_126 {dimension_numbers = #tpu.dot_dimension_numbers<[1], [0], [0], [1], [0, 0, 1, 1], [], []>} : vector<8x32xf32>, vector<32x256xf32>, vector<8x256xf32> -> vector<8x256xf32>
    %746 = vector.extract_strided_slice %745 {offsets = [0, 0], sizes = [8, 128], strides = [1, 1]} : vector<8x256xf32> to vector<8x128xf32>
    %747 = vector.extract_strided_slice %745 {offsets = [0, 128], sizes = [8, 128], strides = [1, 1]} : vector<8x256xf32> to vector<8x128xf32>
    %748 = vector.shape_cast %12 : vector<8x1xi1> to vector<8x1xi1>
    %749 = vector.broadcast %748 : vector<8x1xi1> to vector<8x128xi1>
    %750 = arith.select %749, %746, %747 : vector<8x128xi1>, vector<8x128xf32>
    %751 = arith.addf %743, %750 : vector<8x128xf32>
    %752 = arith.negf %751 : vector<8x128xf32>
    %753 = math.exp %752 : vector<8x128xf32>
    %cst_127 = arith.constant 1.000000e+00 : f32
    %754 = vector.broadcast %cst_127 : f32 to vector<8x128xf32>
    %755 = arith.addf %754, %753 : vector<8x128xf32>
    %756 = arith.divf %754, %755 : vector<8x128xf32>
    %757 = math.tanh %751 : vector<8x128xf32>
    %758 = vector.extract_strided_slice %756 {offsets = [0, 32], sizes = [8, 32], strides = [1, 1]} : vector<8x128xf32> to vector<8x32xf32>
    %759 = arith.mulf %758, %740 : vector<8x32xf32>
    %760 = vector.extract_strided_slice %756 {offsets = [0, 0], sizes = [8, 32], strides = [1, 1]} : vector<8x128xf32> to vector<8x32xf32>
    %761 = vector.extract_strided_slice %757 {offsets = [0, 64], sizes = [8, 32], strides = [1, 1]} : vector<8x128xf32> to vector<8x32xf32>
    %762 = arith.mulf %760, %761 : vector<8x32xf32>
    %763 = arith.addf %759, %762 : vector<8x32xf32>
    %764 = vector.extract_strided_slice %756 {offsets = [0, 96], sizes = [8, 32], strides = [1, 1]} : vector<8x128xf32> to vector<8x32xf32>
    %765 = math.tanh %763 : vector<8x32xf32>
    %766 = arith.mulf %764, %765 : vector<8x32xf32>
    %c9_i32_128 = arith.constant 9 : i32
    %c0_i32_129 = arith.constant 0 : i32
    %767 = vector.broadcast %c9_i32_128 : i32 to vector<8x1xi32>
    %768 = vector.broadcast %c0_i32_129 : i32 to vector<8x1xi32>
    %769 = arith.select %12, %767, %768 : vector<8x1xi1>, vector<8x1xi32>
    %770 = arith.cmpi slt, %769, %9 : vector<8x1xi32>
    %771 = vector.shape_cast %770 : vector<8x1xi1> to vector<8x1xi1>
    %772 = vector.broadcast %771 : vector<8x1xi1> to vector<8x32xi1>
    %773 = arith.select %772, %766, %737 : vector<8x32xi1>, vector<8x32xf32>
    %774 = vector.extract_strided_slice %773 {offsets = [0, 0], sizes = [4, 32], strides = [1, 1]} : vector<8x32xf32> to vector<4x32xf32>
    %775 = vector.extract_strided_slice %773 {offsets = [4, 0], sizes = [4, 32], strides = [1, 1]} : vector<8x32xf32> to vector<4x32xf32>
    %776 = tpu.concatenate %408, %409, %774, %775 in 1 : vector<4x32xf32>, vector<4x32xf32>, vector<4x32xf32>, vector<4x32xf32> -> vector<4x128xf32>
    %c0_130 = arith.constant 0 : index
    %c0_131 = arith.constant 0 : index
    %777 = vector.load %arg9[%c0_130, %c0_131] : memref<128x4xf32, #tpu.memory_space<vmem>>, vector<128x4xf32>
    %cst_132 = arith.constant dense<0.000000e+00> : vector<4x4xf32>
    %778 = tpu.matmul %776, %777, %cst_132 {dimension_numbers = #tpu.dot_dimension_numbers<[1], [0], [0], [1], [0, 0, 1, 1], [], []>} : vector<4x128xf32>, vector<128x4xf32>, vector<4x4xf32> -> vector<4x4xf32>
    %c0_133 = arith.constant 0 : index
    %c0_134 = arith.constant 0 : index
    %779 = vector.load %arg10[%c0_133, %c0_134] : memref<1x4xf32, #tpu.memory_space<vmem>>, vector<1x4xf32>
    %780 = vector.broadcast %779 : vector<1x4xf32> to vector<4x4xf32>
    %781 = arith.addf %778, %780 : vector<4x4xf32>
    %c0_135 = arith.constant 0 : index
    %c0_136 = arith.constant 0 : index
    %782 = vector.load %arg11[%c0_135, %c0_136] : memref<4x4xf32, #tpu.memory_space<vmem>>, vector<4x4xf32>
    tpu.vector_store %arg11[%c0_135, %c0_136], %781 {strides = array<i32>} : memref<4x4xf32, #tpu.memory_space<vmem>>, vector<4x4xf32>,
    return
  }
}

</mosaic_0001>

<llo_original>
// kernel: text_classifier_forward.1
$region0: #{text_classifier_forward.1}
  #allocation0 [shape = 'u32[]', space=smem, size = 0x4, offset = 0x4, fixed_abs, tag = 'smem constant byte address 0x4 - core index']
  #allocation1 [shape = 'u32[144,128]{1,0:T(1,128)}', space=vmem, size = 0x12000, scoped, tag = 'internal scratch']
  %s0 = inlined_call_operand.vmem [shape: s32[40,1], index: 0, kind: input, shape index: {}]
  %s1 = inlined_call_operand.vmem [shape: s32[4,1], index: 1, kind: input, shape index: {}]
  %s2 = inlined_call_operand.vmem [shape: f32[128,32], index: 2, kind: input, shape index: {}]
  %s3 = inlined_call_operand.vmem [shape: f32[32,256], index: 3, kind: input, shape index: {}]
  %s4 = inlined_call_operand.vmem [shape: f32[32,256], index: 4, kind: input, shape index: {}]
  %s5 = inlined_call_operand.vmem [shape: f32[1,256], index: 5, kind: input, shape index: {}]
  %s6 = inlined_call_operand.vmem [shape: f32[64,256], index: 6, kind: input, shape index: {}]
  %s7 = inlined_call_operand.vmem [shape: f32[32,256], index: 7, kind: input, shape index: {}]
  %s8 = inlined_call_operand.vmem [shape: f32[1,256], index: 8, kind: input, shape index: {}]
  %s9 = inlined_call_operand.vmem [shape: f32[128,4], index: 9, kind: input, shape index: {}]
  %s10 = inlined_call_operand.vmem [shape: f32[1,4], index: 10, kind: input, shape index: {}]
  %s11 = inlined_call_operand.hbm [shape: f32[4,4], index: 11, kind: output, shape index: {}]
  %s12 = sld [smem:[#allocation0]]
  $region54: #{text_classifier_forward.1} parent=0
    _
  %s14 = ssub.s32 1, %s12
  %s15 = scalar_select 0, %s14, %s12
  $region1: #{text_classifier_forward.1} parent=0
    #allocation2 [shape = 'u8[2048]{0}', space=vmem, size = 0x800, scoped, tag = 'output window, operand 0, single buffered']
    #allocation3 [shape = 's32[1]{0}', space=sflag, size = 0x4, scoped, tag = 'scoped memory for text_classifier_forward.1']
    %16 = vsyncpa [#allocation3], 0
    // Predicated region
    $region2: #{text_classifier_forward.1} parent=1 // pred_check
      _
    $region3: #{text_classifier_forward.1} parent=1 // pred_check_branch
      %18 = sbr.rel (0) target = $region5
    $region4: #{text_classifier_forward.1} parent=1 // pred_region
      _
    $region5: #{text_classifier_forward.1} parent=1 // pred_fallthru
      _
    // Predicated region
    $region6: #{text_classifier_forward.1} parent=1 // pred_check
      _
    $region7: #{text_classifier_forward.1} parent=1 // pred_check_branch
      %20 = sbr.rel (0) target = $region9
    $region8: #{text_classifier_forward.1} parent=1 // pred_region
      _
    $region9: #{text_classifier_forward.1} parent=1 // pred_fallthru
      _
    // Predicated region
    $region10: #{text_classifier_forward.1} parent=1 // pred_check
      _
    $region11: #{text_classifier_forward.1} parent=1 // pred_check_branch
      %22 = sbr.rel (0) target = $region13
    $region12: #{text_classifier_forward.1} parent=1 // pred_region
      _
    $region13: #{text_classifier_forward.1} parent=1 // pred_fallthru
      _
    // Predicated region
    $region14: #{text_classifier_forward.1} parent=1 // pred_check
      _
    $region15: #{text_classifier_forward.1} parent=1 // pred_check_branch
      %24 = sbr.rel (0) target = $region17
    $region16: #{text_classifier_forward.1} parent=1 // pred_region
      _
    $region17: #{text_classifier_forward.1} parent=1 // pred_fallthru
      _
    // Predicated region
    $region18: #{text_classifier_forward.1} parent=1 // pred_check
      _
    $region19: #{text_classifier_forward.1} parent=1 // pred_check_branch
      %26 = sbr.rel (0) target = $region21
    $region20: #{text_classifier_forward.1} parent=1 // pred_region
      _
    $region21: #{text_classifier_forward.1} parent=1 // pred_fallthru
      _
    // Predicated region
    $region22: #{text_classifier_forward.1} parent=1 // pred_check
      _
    $region23: #{text_classifier_forward.1} parent=1 // pred_check_branch
      %28 = sbr.rel (0) target = $region25
    $region24: #{text_classifier_forward.1} parent=1 // pred_region
      _
    $region25: #{text_classifier_forward.1} parent=1 // pred_fallthru
      _
    // Predicated region
    $region26: #{text_classifier_forward.1} parent=1 // pred_check
      _
    $region27: #{text_classifier_forward.1} parent=1 // pred_check_branch
      %30 = sbr.rel (0) target = $region29
    $region28: #{text_classifier_forward.1} parent=1 // pred_region
      _
    $region29: #{text_classifier_forward.1} parent=1 // pred_fallthru
      _
    // Predicated region
    $region30: #{text_classifier_forward.1} parent=1 // pred_check
      _
    $region31: #{text_classifier_forward.1} parent=1 // pred_check_branch
      %32 = sbr.rel (0) target = $region33
    $region32: #{text_classifier_forward.1} parent=1 // pred_region
      _
    $region33: #{text_classifier_forward.1} parent=1 // pred_fallthru
      _
    // Predicated region
    $region34: #{text_classifier_forward.1} parent=1 // pred_check
      _
    $region35: #{text_classifier_forward.1} parent=1 // pred_check_branch
      %34 = sbr.rel (0) target = $region37
    $region36: #{text_classifier_forward.1} parent=1 // pred_region
      _
    $region37: #{text_classifier_forward.1} parent=1 // pred_fallthru
      _
    // Predicated region
    $region38: #{text_classifier_forward.1} parent=1 // pred_check
      _
    $region39: #{text_classifier_forward.1} parent=1 // pred_check_branch
      %36 = sbr.rel (0) target = $region41
    $region40: #{text_classifier_forward.1} parent=1 // pred_region
      _
    $region41: #{text_classifier_forward.1} parent=1 // pred_fallthru
      _
    // Predicated region
    $region42: #{text_classifier_forward.1} parent=1 // pred_check
      _
    $region43: #{text_classifier_forward.1} parent=1 // pred_check_branch
      %38 = sbr.rel (0) target = $region45
    $region44: #{text_classifier_forward.1} parent=1 // pred_region
      _
    $region45: #{text_classifier_forward.1} parent=1 // pred_fallthru
      _
    %v39 = vld [vmem:[%s0] sm:$0xff]
    %v40 = vld [vmem:[%s0 + $0x8] sm:$0xff]
    %v41 = vld [vmem:[%s0 + $0x10] sm:$0xff]
    %v42 = vld [vmem:[%s0 + $0x18] sm:$0xff]
    %v43 = vld [vmem:[%s0 + $0x20] sm:$0xff]
    %v44 = vlaneseq
    %v45 = vand.u32 %v44, 127
    %46 = vset.pattern.permute.xlu0 0
    %47 = vperm.xlu0 %46, %v39
    %v48 = vpop.permute.xlu0 %47
    %49 = vset.pattern.permute.xlu0 0
    %50 = vperm.xlu0 %49, %v40
    %v51 = vpop.permute.xlu0 %50
    %52 = vset.pattern.permute.xlu0 0
    %53 = vperm.xlu0 %52, %v41
    %v54 = vpop.permute.xlu0 %53
    %55 = vset.pattern.permute.xlu0 0
    %56 = vperm.xlu0 %55, %v42
    %v57 = vpop.permute.xlu0 %56
    %58 = vset.pattern.permute.xlu0 0
    %59 = vperm.xlu0 %58, %v43
    %v60 = vpop.permute.xlu0 %59
    %vm61 = vcmp.eq.s32.totalorder %v45, %v48
    %vm62 = vcmp.eq.s32.totalorder %v45, %v51
    %vm63 = vcmp.eq.s32.totalorder %v45, %v54
    %vm64 = vcmp.eq.s32.totalorder %v45, %v57
    %vm65 = vcmp.eq.s32.totalorder %v45, %v60
    %v66 = vsel %vm61, 1, 0
    %v67 = vsel %vm62, 1, 0
    %v68 = vsel %vm63, 1, 0
    %v69 = vsel %vm64, 1, 0
    %v70 = vsel %vm65, 1, 0
    %v71 = vcvt.s32.f32 %v66
    %v72 = vcvt.s32.f32 %v67
    %v73 = vcvt.s32.f32 %v68
    %v74 = vcvt.s32.f32 %v69
    %v75 = vcvt.s32.f32 %v70
    %v76 = vld [vmem:[%s2] sm:$0xff]
    %v77 = vld [vmem:[%s2 + $0x8] sm:$0xff]
    %v78 = vld [vmem:[%s2 + $0x10] sm:$0xff]
    %v79 = vld [vmem:[%s2 + $0x18] sm:$0xff]
    %v80 = vld [vmem:[%s2 + $0x20] sm:$0xff]
    %v81 = vld [vmem:[%s2 + $0x28] sm:$0xff]
    %v82 = vld [vmem:[%s2 + $0x30] sm:$0xff]
    %v83 = vld [vmem:[%s2 + $0x38] sm:$0xff]
    %v84 = vld [vmem:[%s2 + $0x40] sm:$0xff]
    %v85 = vld [vmem:[%s2 + $0x48] sm:$0xff]
    %v86 = vld [vmem:[%s2 + $0x50] sm:$0xff]
    %v87 = vld [vmem:[%s2 + $0x58] sm:$0xff]
    %v88 = vld [vmem:[%s2 + $0x60] sm:$0xff]
    %v89 = vld [vmem:[%s2 + $0x68] sm:$0xff]
    %v90 = vld [vmem:[%s2 + $0x70] sm:$0xff]
    %v91 = vld [vmem:[%s2 + $0x78] sm:$0xff]
    %92 = vmatprep.subr.mxu0 0.0
    %93 = vmatpush1.msra.mxu0 %v76
    %94 = vmatprep.subr.mxu0 0.0
    %95 = vmatpush1.msra.mxu0 %v77
    %96 = vmatprep.subr.mxu0 0.0
    %97 = vmatpush1.msra.mxu0 %v78
    %98 = vmatprep.subr.mxu0 0.0
    %99 = vmatpush1.msra.mxu0 %v79
    %100 = vmatprep.subr.mxu0 0.0
    %101 = vmatpush1.msra.mxu0 %v80
    %102 = vmatprep.subr.mxu0 0.0
    %103 = vmatpush1.msra.mxu0 %v81
    %104 = vmatprep.subr.mxu0 0.0
    %105 = vmatpush1.msra.mxu0 %v82
    %106 = vmatprep.subr.mxu0 0.0
    %107 = vmatpush1.msra.mxu0 %v83
    %108 = vmatprep.subr.mxu0 0.0
    %109 = vmatpush1.msra.mxu0 %v84
    %110 = vmatprep.subr.mxu0 0.0
    %111 = vmatpush1.msra.mxu0 %v85
    %112 = vmatprep.subr.mxu0 0.0
    %113 = vmatpush1.msra.mxu0 %v86
    %114 = vmatprep.subr.mxu0 0.0
    %115 = vmatpush1.msra.mxu0 %v87
    %116 = vmatprep.subr.mxu0 0.0
    %117 = vmatpush1.msra.mxu0 %v88
    %118 = vmatprep.subr.mxu0 0.0
    %119 = vmatpush1.msra.mxu0 %v89
    %120 = vmatprep.subr.mxu0 0.0
    %121 = vmatpush1.msra.mxu0 %v90
    %122 = vmatprep.subr.mxu0 0.0
    %123 = vmatpush1.msra.mxu0 %v91
    %124 = vmatprep.subr.mxu0 0.0
    %125 = vmatpush1.msra.mxu0 0.0
    %126 = vmatprep.subr.mxu0 0.0
    %127 = vmatpush1.msra.mxu0 0.0
    %128 = vmatprep.subr.mxu0 0.0
    %129 = vmatpush1.msra.mxu0 0.0
    %130 = vmatprep.subr.mxu0 0.0
    %131 = vmatpush1.msra.mxu0 0.0
    %132 = vmatprep.subr.mxu0 0.0
    %133 = vmatpush1.msra.mxu0 0.0
    %134 = vmatprep.subr.mxu0 0.0
    %135 = vmatpush1.msra.mxu0 0.0
    %136 = vmatprep.subr.mxu0 0.0
    %137 = vmatpush1.msra.mxu0 0.0
    %138 = vmatprep.subr.mxu0 0.0
    %139 = vmatpush1.msra.mxu0 0.0
    %140 = vmatprep.subr.mxu0 0.0
    %141 = vmatpush1.msra.mxu0 0.0
    %142 = vmatprep.subr.mxu0 0.0
    %143 = vmatpush1.msra.mxu0 0.0
    %144 = vmatprep.subr.mxu0 0.0
    %145 = vmatpush1.msra.mxu0 0.0
    %146 = vmatprep.subr.mxu0 0.0
    %147 = vmatpush1.msra.mxu0 0.0
    %148 = vmatprep.subr.mxu0 0.0
    %149 = vmatpush1.msra.mxu0 0.0
    %150 = vmatprep.subr.mxu0 0.0
    %151 = vmatpush1.msra.mxu0 0.0
    %152 = vmatprep.subr.mxu0 0.0
    %153 = vmatpush1.msra.mxu0 0.0
    %154 = vmatprep.subr.mxu0 0.0
    %155 = vmatpush1.msra.mxu0 0.0
    %156 = vmatprep.mubr.f32.mxu0 0.0
    %157 = vmatmul.mubr.f32.gmra.mrb[0].mxu0 %v71
    %v158 = vpop.f32.mrb[0].mxu0
    %v159 = vadd.f32 0.0, %v158
    %v160 = vpop.f32.mrb[0].mxu0
    %161 = vmatprep.mubr.f32.mxu0 0.0
    %162 = vmatmul.mubr.f32.gmra.mrb[0].mxu0 %v72
    %v163 = vpop.f32.mrb[0].mxu0
    %v164 = vadd.f32 0.0, %v163
    %v165 = vpop.f32.mrb[0].mxu0
    %166 = vmatprep.mubr.f32.mxu0 0.0
    %167 = vmatmul.mubr.f32.gmra.mrb[0].mxu0 %v73
    %v168 = vpop.f32.mrb[0].mxu0
    %v169 = vadd.f32 0.0, %v168
    %v170 = vpop.f32.mrb[0].mxu0
    %171 = vmatprep.mubr.f32.mxu0 0.0
    %172 = vmatmul.mubr.f32.gmra.mrb[0].mxu0 %v74
    %v173 = vpop.f32.mrb[0].mxu0
    %v174 = vadd.f32 0.0, %v173
    %v175 = vpop.f32.mrb[0].mxu0
    %176 = vmatprep.mubr.f32.mxu0 0.0
    %177 = vmatmul.mubr.f32.gmra.mrb[0].mxu0 %v75
    %v178 = vpop.f32.mrb[0].mxu0
    %v179 = vadd.f32 0.0, %v178
    %v180 = vpop.f32.mrb[0].mxu0
    %181 = vdwg.mxu0
    %v182 = vld [vmem:[%s1] sm:$0xf]
    %v183 = vrot.slane %v182, 4
    %vm184 = vcmask 1043456
    %v185 = vsel %vm184, %v182, %v183
    %v186 = vlaneseq
    %v187 = vshrl.u32 %v186, 7
    %vm188 = vcmp.lt.s32.totalorder %v187, 4
    %v189 = vld [vmem:[%s3] sm:$0xff]
    %v190 = vld [vmem:[%s3 + $0x8] sm:$0xff]
    %v191 = vld [vmem:[%s3 + $0x10] sm:$0xff]
    %v192 = vld [vmem:[%s3 + $0x18] sm:$0xff]
    %v193 = vld [vmem:[%s3 + $0x20] sm:$0xff]
    %v194 = vld [vmem:[%s3 + $0x28] sm:$0xff]
    %v195 = vld [vmem:[%s3 + $0x30] sm:$0xff]
    %v196 = vld [vmem:[%s3 + $0x38] sm:$0xff]
    %v197 = vld [vmem:[%s5] sm:$0x3]
    %v199 = vlaneseq
    %v200 = vshrl.u32 %v199, 7
    %v201 = vsub.s32 0, %v200
    %v202 = vrot.slane %v197, %v201
    %v203 = vlaneseq
    %v204 = vshrl.u32 %v203, 7
    %v205 = vsub.s32 1, %v204
    %v206 = vrot.slane %v197, %v205
    %vm209 = vcmask 261120
    %v211 = vsel %vm209, %v159, 0
    %v214 = vsel %vm209, %v164, 0
    %v217 = vsel %vm209, %v169, 0
    %v220 = vsel %vm209, %v174, 0
    %v223 = vsel %vm209, %v179, 0
    %225 = vmatprep.subr.mxu0 %v190
    %226 = vmatpush1.msra.mxu0 %v189
    %227 = vmatprep.subr.mxu0 %v192
    %228 = vmatpush1.msra.mxu0 %v191
    %229 = vmatprep.subr.mxu0 %v194
    %230 = vmatpush1.msra.mxu0 %v193
    %231 = vmatprep.subr.mxu0 %v196
    %232 = vmatpush1.msra.mxu0 %v195
    %233 = vmatprep.subr.mxu0 0.0
    %234 = vmatpush1.msra.mxu0 0.0
    %235 = vmatprep.subr.mxu0 0.0
    %236 = vmatpush1.msra.mxu0 0.0
    %237 = vmatprep.subr.mxu0 0.0
    %238 = vmatpush1.msra.mxu0 0.0
    %239 = vmatprep.subr.mxu0 0.0
    %240 = vmatpush1.msra.mxu0 0.0
    %241 = vmatprep.subr.mxu0 0.0
    %242 = vmatpush1.msra.mxu0 0.0
    %243 = vmatprep.subr.mxu0 0.0
    %244 = vmatpush1.msra.mxu0 0.0
    %245 = vmatprep.subr.mxu0 0.0
    %246 = vmatpush1.msra.mxu0 0.0
    %247 = vmatprep.subr.mxu0 0.0
    %248 = vmatpush1.msra.mxu0 0.0
    %249 = vmatprep.subr.mxu0 0.0
    %250 = vmatpush1.msra.mxu0 0.0
    %251 = vmatprep.subr.mxu0 0.0
    %252 = vmatpush1.msra.mxu0 0.0
    %253 = vmatprep.subr.mxu0 0.0
    %254 = vmatpush1.msra.mxu0 0.0
    %255 = vmatprep.subr.mxu0 0.0
    %256 = vmatpush1.msra.mxu0 0.0
    %257 = vmatprep.subr.mxu0 0.0
    %258 = vmatpush1.msra.mxu0 0.0
    %259 = vmatprep.subr.mxu0 0.0
    %260 = vmatpush1.msra.mxu0 0.0
    %261 = vmatprep.subr.mxu0 0.0
    %262 = vmatpush1.msra.mxu0 0.0
    %263 = vmatprep.subr.mxu0 0.0
    %264 = vmatpush1.msra.mxu0 0.0
    %265 = vmatprep.subr.mxu0 0.0
    %266 = vmatpush1.msra.mxu0 0.0
    %267 = vmatprep.subr.mxu0 0.0
    %268 = vmatpush1.msra.mxu0 0.0
    %269 = vmatprep.subr.mxu0 0.0
    %270 = vmatpush1.msra.mxu0 0.0
    %271 = vmatprep.subr.mxu0 0.0
    %272 = vmatpush1.msra.mxu0 0.0
    %273 = vmatprep.subr.mxu0 0.0
    %274 = vmatpush1.msra.mxu0 0.0
    %275 = vmatprep.subr.mxu0 0.0
    %276 = vmatpush1.msra.mxu0 0.0
    %277 = vmatprep.subr.mxu0 0.0
    %278 = vmatpush1.msra.mxu0 0.0
    %279 = vmatprep.subr.mxu0 0.0
    %280 = vmatpush1.msra.mxu0 0.0
    %281 = vmatprep.subr.mxu0 0.0
    %282 = vmatpush1.msra.mxu0 0.0
    %283 = vmatprep.subr.mxu0 0.0
    %284 = vmatpush1.msra.mxu0 0.0
    %285 = vmatprep.subr.mxu0 0.0
    %286 = vmatpush1.msra.mxu0 0.0
    %287 = vmatprep.subr.mxu0 0.0
    %288 = vmatpush1.msra.mxu0 0.0
    %289 = vmatprep.mubr.f32.mxu0 0.0
    %290 = vmatmul.mubr.f32.gmra.mrb[0].mxu0 %v211
    %v291 = vpop.f32.mrb[0].mxu0
    %v292 = vadd.f32 %v202, %v291
    %v293 = vpop.f32.mrb[0].mxu0
    %v294 = vadd.f32 %v206, %v293
    %295 = vmatprep.mubr.f32.mxu0 0.0
    %296 = vmatmul.mubr.f32.gmra.mrb[0].mxu0 %v214
    %v297 = vpop.f32.mrb[0].mxu0
    %v298 = vadd.f32 %v202, %v297
    %v299 = vpop.f32.mrb[0].mxu0
    %v300 = vadd.f32 %v206, %v299
    %301 = vmatprep.mubr.f32.mxu0 0.0
    %302 = vmatmul.mubr.f32.gmra.mrb[0].mxu0 %v217
    %v303 = vpop.f32.mrb[0].mxu0
    %v304 = vadd.f32 %v202, %v303
    %v305 = vpop.f32.mrb[0].mxu0
    %v306 = vadd.f32 %v206, %v305
    %307 = vmatprep.mubr.f32.mxu0 0.0
    %308 = vmatmul.mubr.f32.gmra.mrb[0].mxu0 %v220
    %v309 = vpop.f32.mrb[0].mxu0
    %v310 = vadd.f32 %v202, %v309
    %v311 = vpop.f32.mrb[0].mxu0
    %v312 = vadd.f32 %v206, %v311
    %313 = vmatprep.mubr.f32.mxu0 0.0
    %314 = vmatmul.mubr.f32.gmra.mrb[0].mxu0 %v223
    %v315 = vpop.f32.mrb[0].mxu0
    %v316 = vadd.f32 %v202, %v315
    %v317 = vpop.f32.mrb[0].mxu0
    %v318 = vadd.f32 %v206, %v317
    %319 = vdwg.mxu0
    %v320 = vsel %vm184, %v292, %v318
    %v321 = vld [vmem:[%s4] sm:$0xff]
    %v322 = vld [vmem:[%s4 + $0x8] sm:$0xff]
    %v323 = vld [vmem:[%s4 + $0x10] sm:$0xff]
    %v324 = vld [vmem:[%s4 + $0x18] sm:$0xff]
    %v325 = vld [vmem:[%s4 + $0x20] sm:$0xff]
    %v326 = vld [vmem:[%s4 + $0x28] sm:$0xff]
    %v327 = vld [vmem:[%s4 + $0x30] sm:$0xff]
    %v328 = vld [vmem:[%s4 + $0x38] sm:$0xff]
    %v330 = vsel %vm209, 0.0, 0
    %332 = vmatprep.subr.mxu0 %v322
    %333 = vmatpush1.msra.mxu0 %v321
    %334 = vmatprep.subr.mxu0 %v324
    %335 = vmatpush1.msra.mxu0 %v323
    %336 = vmatprep.subr.mxu0 %v326
    %337 = vmatpush1.msra.mxu0 %v325
    %338 = vmatprep.subr.mxu0 %v328
    %339 = vmatpush1.msra.mxu0 %v327
    %340 = vmatprep.subr.mxu0 0.0
    %341 = vmatpush1.msra.mxu0 0.0
    %342 = vmatprep.subr.mxu0 0.0
    %343 = vmatpush1.msra.mxu0 0.0
    %344 = vmatprep.subr.mxu0 0.0
    %345 = vmatpush1.msra.mxu0 0.0
    %346 = vmatprep.subr.mxu0 0.0
    %347 = vmatpush1.msra.mxu0 0.0
    %348 = vmatprep.subr.mxu0 0.0
    %349 = vmatpush1.msra.mxu0 0.0
    %350 = vmatprep.subr.mxu0 0.0
    %351 = vmatpush1.msra.mxu0 0.0
    %352 = vmatprep.subr.mxu0 0.0
    %353 = vmatpush1.msra.mxu0 0.0
    %354 = vmatprep.subr.mxu0 0.0
    %355 = vmatpush1.msra.mxu0 0.0
    %356 = vmatprep.subr.mxu0 0.0
    %357 = vmatpush1.msra.mxu0 0.0
    %358 = vmatprep.subr.mxu0 0.0
    %359 = vmatpush1.msra.mxu0 0.0
    %360 = vmatprep.subr.mxu0 0.0
    %361 = vmatpush1.msra.mxu0 0.0
    %362 = vmatprep.subr.mxu0 0.0
    %363 = vmatpush1.msra.mxu0 0.0
    %364 = vmatprep.subr.mxu0 0.0
    %365 = vmatpush1.msra.mxu0 0.0
    %366 = vmatprep.subr.mxu0 0.0
    %367 = vmatpush1.msra.mxu0 0.0
    %368 = vmatprep.subr.mxu0 0.0
    %369 = vmatpush1.msra.mxu0 0.0
    %370 = vmatprep.subr.mxu0 0.0
    %371 = vmatpush1.msra.mxu0 0.0
    %372 = vmatprep.subr.mxu0 0.0
    %373 = vmatpush1.msra.mxu0 0.0
    %374 = vmatprep.subr.mxu0 0.0
    %375 = vmatpush1.msra.mxu0 0.0
    %376 = vmatprep.subr.mxu0 0.0
    %377 = vmatpush1.msra.mxu0 0.0
    %378 = vmatprep.subr.mxu0 0.0
    %379 = vmatpush1.msra.mxu0 0.0
    %380 = vmatprep.subr.mxu0 0.0
    %381 = vmatpush1.msra.mxu0 0.0
    %382 = vmatprep.subr.mxu0 0.0
    %383 = vmatpush1.msra.mxu0 0.0
    %384 = vmatprep.subr.mxu0 0.0
    %385 = vmatpush1.msra.mxu0 0.0
    %386 = vmatprep.subr.mxu0 0.0
    %387 = vmatpush1.msra.mxu0 0.0
    %388 = vmatprep.subr.mxu0 0.0
    %389 = vmatpush1.msra.mxu0 0.0
    %390 = vmatprep.subr.mxu0 0.0
    %391 = vmatpush1.msra.mxu0 0.0
    %392 = vmatprep.subr.mxu0 0.0
    %393 = vmatpush1.msra.mxu0 0.0
    %394 = vmatprep.subr.mxu0 0.0
    %395 = vmatpush1.msra.mxu0 0.0
    %396 = vmatprep.mubr.f32.mxu0 0.0
    %397 = vmatmul.mubr.f32.gmra.mrb[0].mxu0 %v330
    %v398 = vpop.f32.mrb[0].mxu0
    %v399 = vadd.f32 0.0, %v398
    %v400 = vpop.f32.mrb[0].mxu0
    %v401 = vadd.f32 0.0, %v400
    %402 = vdwg.mxu0
    %v403 = vsel %vm188, 1, 0
    %vm404 = vcmp.eq.s32.totalorder %v403, 1
    %v405 = vsel %vm404, %v399, %v401
    %v406 = vadd.f32 %v320, %v405
    %v407 = vxor.u32 %v406, 2147483648
    %v408 = vmul.f32 %v407, 1.442695
    %v409 = vpow.pop %v408
    %v410 = vadd.f32 %v409, 1.0
    %v411 = vrcp.pop %v410
    %v412 = vmul.f32 1.0, %v411
    %v413 = vtanh.pop %v406
    %v414 = vmul.f32 %v412, 0.0
    %416 = vrot.lane.b32.xlu0 %v413, 64
    %v417 = vpop.permute.xlu0 %416
    %v419 = vmul.f32 %v412, %v417
    %421 = vrot.lane.b32.xlu0 %v419, 32
    %v422 = vpop.permute.xlu0 %421
    %v424 = vadd.f32 %v414, %v422
    %v425 = vtanh.pop %v424
    %427 = vrot.lane.b32.xlu0 %v425, 64
    %v428 = vpop.permute.xlu0 %427
    %v430 = vmul.f32 %v412, %v428
    %v431 = vsel %vm188, 0, 9
    %vm432 = vcmp.lt.s32.totalorder %v431, %v185
    %v433 = vsel %vm432, 1, 0
    %434 = vset.pattern.permute.xlu0 0
    %435 = vperm.xlu0 %434, %v433
    %v436 = vpop.permute.xlu0 %435
    %vm437 = vcmp.eq.s32.totalorder %v436, 1
    %v438 = vsel %vm437, %v430, 0.0
    %v439 = vsel %vm437, %v424, 0.0
    %v441 = vrot.slane %v292, 4
    %v444 = vrot.slane %v318, 4
    %v446 = vsel %vm184, %v441, %v444
    %448 = vrot.lane.b32.xlu0 %v438, 32
    %v449 = vpop.permute.xlu0 %448
    %v450 = vsel %vm209, %v449, 0
    %452 = vmatprep.subr.mxu0 %v322
    %453 = vmatpush1.msra.mxu0 %v321
    %454 = vmatprep.subr.mxu0 %v324
    %455 = vmatpush1.msra.mxu0 %v323
    %456 = vmatprep.subr.mxu0 %v326
    %457 = vmatpush1.msra.mxu0 %v325
    %458 = vmatprep.subr.mxu0 %v328
    %459 = vmatpush1.msra.mxu0 %v327
    %460 = vmatprep.subr.mxu0 0.0
    %461 = vmatpush1.msra.mxu0 0.0
    %462 = vmatprep.subr.mxu0 0.0
    %463 = vmatpush1.msra.mxu0 0.0
    %464 = vmatprep.subr.mxu0 0.0
    %465 = vmatpush1.msra.mxu0 0.0
    %466 = vmatprep.subr.mxu0 0.0
    %467 = vmatpush1.msra.mxu0 0.0
    %468 = vmatprep.subr.mxu0 0.0
    %469 = vmatpush1.msra.mxu0 0.0
    %470 = vmatprep.subr.mxu0 0.0
    %471 = vmatpush1.msra.mxu0 0.0
    %472 = vmatprep.subr.mxu0 0.0
    %473 = vmatpush1.msra.mxu0 0.0
    %474 = vmatprep.subr.mxu0 0.0
    %475 = vmatpush1.msra.mxu0 0.0
    %476 = vmatprep.subr.mxu0 0.0
    %477 = vmatpush1.msra.mxu0 0.0
    %478 = vmatprep.subr.mxu0 0.0
    %479 = vmatpush1.msra.mxu0 0.0
    %480 = vmatprep.subr.mxu0 0.0
    %481 = vmatpush1.msra.mxu0 0.0
    %482 = vmatprep.subr.mxu0 0.0
    %483 = vmatpush1.msra.mxu0 0.0
    %484 = vmatprep.subr.mxu0 0.0
    %485 = vmatpush1.msra.mxu0 0.0
    %486 = vmatprep.subr.mxu0 0.0
    %487 = vmatpush1.msra.mxu0 0.0
    %488 = vmatprep.subr.mxu0 0.0
    %489 = vmatpush1.msra.mxu0 0.0
    %490 = vmatprep.subr.mxu0 0.0
    %491 = vmatpush1.msra.mxu0 0.0
    %492 = vmatprep.subr.mxu0 0.0
    %493 = vmatpush1.msra.mxu0 0.0
    %494 = vmatprep.subr.mxu0 0.0
    %495 = vmatpush1.msra.mxu0 0.0
    %496 = vmatprep.subr.mxu0 0.0
    %497 = vmatpush1.msra.mxu0 0.0
    %498 = vmatprep.subr.mxu0 0.0
    %499 = vmatpush1.msra.mxu0 0.0
    %500 = vmatprep.subr.mxu0 0.0
    %501 = vmatpush1.msra.mxu0 0.0
    %502 = vmatprep.subr.mxu0 0.0
    %503 = vmatpush1.msra.mxu0 0.0
    %504 = vmatprep.subr.mxu0 0.0
    %505 = vmatpush1.msra.mxu0 0.0
    %506 = vmatprep.subr.mxu0 0.0
    %507 = vmatpush1.msra.mxu0 0.0
    %508 = vmatprep.subr.mxu0 0.0
    %509 = vmatpush1.msra.mxu0 0.0
    %510 = vmatprep.subr.mxu0 0.0
    %511 = vmatpush1.msra.mxu0 0.0
    %512 = vmatprep.subr.mxu0 0.0
    %513 = vmatpush1.msra.mxu0 0.0
    %514 = vmatprep.subr.mxu0 0.0
    %515 = vmatpush1.msra.mxu0 0.0
    %516 = vmatprep.mubr.f32.mxu0 0.0
    %517 = vmatmul.mubr.f32.gmra.mrb[0].mxu0 %v450
    %v518 = vpop.f32.mrb[0].mxu0
    %v519 = vadd.f32 0.0, %v518
    %v520 = vpop.f32.mrb[0].mxu0
    %v521 = vadd.f32 0.0, %v520
    %522 = vdwg.mxu0
    %v523 = vsel %vm404, %v519, %v521
    %v524 = vadd.f32 %v446, %v523
    %v525 = vxor.u32 %v524, 2147483648
    %v526 = vmul.f32 %v525, 1.442695
    %v527 = vpow.pop %v526
    %v528 = vadd.f32 %v527, 1.0
    %v529 = vrcp.pop %v528
    %v530 = vmul.f32 1.0, %v529
    %v531 = vtanh.pop %v524
    %v532 = vmul.f32 %v530, %v439
    %534 = vrot.lane.b32.xlu0 %v531, 64
    %v535 = vpop.permute.xlu0 %534
    %v537 = vmul.f32 %v530, %v535
    %539 = vrot.lane.b32.xlu0 %v537, 32
    %v540 = vpop.permute.xlu0 %539
    %v542 = vadd.f32 %v532, %v540
    %v543 = vtanh.pop %v542
    %545 = vrot.lane.b32.xlu0 %v543, 64
    %v546 = vpop.permute.xlu0 %545
    %v548 = vmul.f32 %v530, %v546
    %v549 = vsel %vm188, 1, 8
    %vm550 = vcmp.lt.s32.totalorder %v549, %v185
    %v551 = vsel %vm550, 1, 0
    %552 = vset.pattern.permute.xlu0 0
    %553 = vperm.xlu0 %552, %v551
    %v554 = vpop.permute.xlu0 %553
    %vm555 = vcmp.eq.s32.totalorder %v554, 1
    %v556 = vsel %vm555, %v548, %v438
    %v557 = vsel %vm555, %v542, %v439
    %v558 = vsel %vm184, %v298, %v312
    %560 = vrot.lane.b32.xlu0 %v556, 32
    %v561 = vpop.permute.xlu0 %560
    %v562 = vsel %vm209, %v561, 0
    %564 = vmatprep.subr.mxu0 %v322
    %565 = vmatpush1.msra.mxu0 %v321
    %566 = vmatprep.subr.mxu0 %v324
    %567 = vmatpush1.msra.mxu0 %v323
    %568 = vmatprep.subr.mxu0 %v326
    %569 = vmatpush1.msra.mxu0 %v325
    %570 = vmatprep.subr.mxu0 %v328
    %571 = vmatpush1.msra.mxu0 %v327
    %572 = vmatprep.subr.mxu0 0.0
    %573 = vmatpush1.msra.mxu0 0.0
    %574 = vmatprep.subr.mxu0 0.0
    %575 = vmatpush1.msra.mxu0 0.0
    %576 = vmatprep.subr.mxu0 0.0
    %577 = vmatpush1.msra.mxu0 0.0
    %578 = vmatprep.subr.mxu0 0.0
    %579 = vmatpush1.msra.mxu0 0.0
    %580 = vmatprep.subr.mxu0 0.0
    %581 = vmatpush1.msra.mxu0 0.0
    %582 = vmatprep.subr.mxu0 0.0
    %583 = vmatpush1.msra.mxu0 0.0
    %584 = vmatprep.subr.mxu0 0.0
    %585 = vmatpush1.msra.mxu0 0.0
    %586 = vmatprep.subr.mxu0 0.0
    %587 = vmatpush1.msra.mxu0 0.0
    %588 = vmatprep.subr.mxu0 0.0
    %589 = vmatpush1.msra.mxu0 0.0
    %590 = vmatprep.subr.mxu0 0.0
    %591 = vmatpush1.msra.mxu0 0.0
    %592 = vmatprep.subr.mxu0 0.0
    %593 = vmatpush1.msra.mxu0 0.0
    %594 = vmatprep.subr.mxu0 0.0
    %595 = vmatpush1.msra.mxu0 0.0
    %596 = vmatprep.subr.mxu0 0.0
    %597 = vmatpush1.msra.mxu0 0.0
    %598 = vmatprep.subr.mxu0 0.0
    %599 = vmatpush1.msra.mxu0 0.0
    %600 = vmatprep.subr.mxu0 0.0
    %601 = vmatpush1.msra.mxu0 0.0
    %602 = vmatprep.subr.mxu0 0.0
    %603 = vmatpush1.msra.mxu0 0.0
    %604 = vmatprep.subr.mxu0 0.0
    %605 = vmatpush1.msra.mxu0 0.0
    %606 = vmatprep.subr.mxu0 0.0
    %607 = vmatpush1.msra.mxu0 0.0
    %608 = vmatprep.subr.mxu0 0.0
    %609 = vmatpush1.msra.mxu0 0.0
    %610 = vmatprep.subr.mxu0 0.0
    %611 = vmatpush1.msra.mxu0 0.0
    %612 = vmatprep.subr.mxu0 0.0
    %613 = vmatpush1.msra.mxu0 0.0
    %614 = vmatprep.subr.mxu0 0.0
    %615 = vmatpush1.msra.mxu0 0.0
    %616 = vmatprep.subr.mxu0 0.0
    %617 = vmatpush1.msra.mxu0 0.0
    %618 = vmatprep.subr.mxu0 0.0
    %619 = vmatpush1.msra.mxu0 0.0
    %620 = vmatprep.subr.mxu0 0.0
    %621 = vmatpush1.msra.mxu0 0.0
    %622 = vmatprep.subr.mxu0 0.0
    %623 = vmatpush1.msra.mxu0 0.0
    %624 = vmatprep.subr.mxu0 0.0
    %625 = vmatpush1.msra.mxu0 0.0
    %626 = vmatprep.subr.mxu0 0.0
    %627 = vmatpush1.msra.mxu0 0.0
    %628 = vmatprep.mubr.f32.mxu0 0.0
    %629 = vmatmul.mubr.f32.gmra.mrb[0].mxu0 %v562
    %v630 = vpop.f32.mrb[0].mxu0
    %v631 = vadd.f32 0.0, %v630
    %v632 = vpop.f32.mrb[0].mxu0
    %v633 = vadd.f32 0.0, %v632
    %634 = vdwg.mxu0
    %v635 = vsel %vm404, %v631, %v633
    %v636 = vadd.f32 %v558, %v635
    %v637 = vxor.u32 %v636, 2147483648
    %v638 = vmul.f32 %v637, 1.442695
    %v639 = vpow.pop %v638
    %v640 = vadd.f32 %v639, 1.0
    %v641 = vrcp.pop %v640
    %v642 = vmul.f32 1.0, %v641
    %v643 = vtanh.pop %v636
    %v644 = vmul.f32 %v642, %v557
    %646 = vrot.lane.b32.xlu0 %v643, 64
    %v647 = vpop.permute.xlu0 %646
    %v649 = vmul.f32 %v642, %v647
    %651 = vrot.lane.b32.xlu0 %v649, 32
    %v652 = vpop.permute.xlu0 %651
    %v654 = vadd.f32 %v644, %v652
    %v655 = vtanh.pop %v654
    %657 = vrot.lane.b32.xlu0 %v655, 64
    %v658 = vpop.permute.xlu0 %657
    %v660 = vmul.f32 %v642, %v658
    %v661 = vsel %vm188, 2, 7
    %vm662 = vcmp.lt.s32.totalorder %v661, %v185
    %v663 = vsel %vm662, 1, 0
    %664 = vset.pattern.permute.xlu0 0
    %665 = vperm.xlu0 %664, %v663
    %v666 = vpop.permute.xlu0 %665
    %vm667 = vcmp.eq.s32.totalorder %v666, 1
    %v668 = vsel %vm667, %v660, %v556
    %v669 = vsel %vm667, %v654, %v557
    %v671 = vrot.slane %v298, 4
    %v674 = vrot.slane %v312, 4
    %v676 = vsel %vm184, %v671, %v674
    %678 = vrot.lane.b32.xlu0 %v668, 32
    %v679 = vpop.permute.xlu0 %678
    %v680 = vsel %vm209, %v679, 0
    %682 = vmatprep.subr.mxu0 %v322
    %683 = vmatpush1.msra.mxu0 %v321
    %684 = vmatprep.subr.mxu0 %v324
    %685 = vmatpush1.msra.mxu0 %v323
    %686 = vmatprep.subr.mxu0 %v326
    %687 = vmatpush1.msra.mxu0 %v325
    %688 = vmatprep.subr.mxu0 %v328
    %689 = vmatpush1.msra.mxu0 %v327
    %690 = vmatprep.subr.mxu0 0.0
    %691 = vmatpush1.msra.mxu0 0.0
    %692 = vmatprep.subr.mxu0 0.0
    %693 = vmatpush1.msra.mxu0 0.0
    %694 = vmatprep.subr.mxu0 0.0
    %695 = vmatpush1.msra.mxu0 0.0
    %696 = vmatprep.subr.mxu0 0.0
    %697 = vmatpush1.msra.mxu0 0.0
    %698 = vmatprep.subr.mxu0 0.0
    %699 = vmatpush1.msra.mxu0 0.0
    %700 = vmatprep.subr.mxu0 0.0
    %701 = vmatpush1.msra.mxu0 0.0
    %702 = vmatprep.subr.mxu0 0.0
    %703 = vmatpush1.msra.mxu0 0.0
    %704 = vmatprep.subr.mxu0 0.0
    %705 = vmatpush1.msra.mxu0 0.0
    %706 = vmatprep.subr.mxu0 0.0
    %707 = vmatpush1.msra.mxu0 0.0
    %708 = vmatprep.subr.mxu0 0.0
    %709 = vmatpush1.msra.mxu0 0.0
    %710 = vmatprep.subr.mxu0 0.0
    %711 = vmatpush1.msra.mxu0 0.0
    %712 = vmatprep.subr.mxu0 0.0
    %713 = vmatpush1.msra.mxu0 0.0
    %714 = vmatprep.subr.mxu0 0.0
    %715 = vmatpush1.msra.mxu0 0.0
    %716 = vmatprep.subr.mxu0 0.0
    %717 = vmatpush1.msra.mxu0 0.0
    %718 = vmatprep.subr.mxu0 0.0
    %719 = vmatpush1.msra.mxu0 0.0
    %720 = vmatprep.subr.mxu0 0.0
    %721 = vmatpush1.msra.mxu0 0.0
    %722 = vmatprep.subr.mxu0 0.0
    %723 = vmatpush1.msra.mxu0 0.0
    %724 = vmatprep.subr.mxu0 0.0
    %725 = vmatpush1.msra.mxu0 0.0
    %726 = vmatprep.subr.mxu0 0.0
    %727 = vmatpush1.msra.mxu0 0.0
    %728 = vmatprep.subr.mxu0 0.0
    %729 = vmatpush1.msra.mxu0 0.0
    %730 = vmatprep.subr.mxu0 0.0
    %731 = vmatpush1.msra.mxu0 0.0
    %732 = vmatprep.subr.mxu0 0.0
    %733 = vmatpush1.msra.mxu0 0.0
    %734 = vmatprep.subr.mxu0 0.0
    %735 = vmatpush1.msra.mxu0 0.0
    %736 = vmatprep.subr.mxu0 0.0
    %737 = vmatpush1.msra.mxu0 0.0
    %738 = vmatprep.subr.mxu0 0.0
    %739 = vmatpush1.msra.mxu0 0.0
    %740 = vmatprep.subr.mxu0 0.0
    %741 = vmatpush1.msra.mxu0 0.0
    %742 = vmatprep.subr.mxu0 0.0
    %743 = vmatpush1.msra.mxu0 0.0
    %744 = vmatprep.subr.mxu0 0.0
    %745 = vmatpush1.msra.mxu0 0.0
    %746 = vmatprep.mubr.f32.mxu0 0.0
    %747 = vmatmul.mubr.f32.gmra.mrb[0].mxu0 %v680
    %v748 = vpop.f32.mrb[0].mxu0
    %v749 = vadd.f32 0.0, %v748
    %v750 = vpop.f32.mrb[0].mxu0
    %v751 = vadd.f32 0.0, %v750
    %752 = vdwg.mxu0
    %v753 = vsel %vm404, %v749, %v751
    %v754 = vadd.f32 %v676, %v753
    %v755 = vxor.u32 %v754, 2147483648
    %v756 = vmul.f32 %v755, 1.442695
    %v757 = vpow.pop %v756
    %v758 = vadd.f32 %v757, 1.0
    %v759 = vrcp.pop %v758
    %v760 = vmul.f32 1.0, %v759
    %v761 = vtanh.pop %v754
    %v762 = vmul.f32 %v760, %v669
    %764 = vrot.lane.b32.xlu0 %v761, 64
    %v765 = vpop.permute.xlu0 %764
    %v767 = vmul.f32 %v760, %v765
    %769 = vrot.lane.b32.xlu0 %v767, 32
    %v770 = vpop.permute.xlu0 %769
    %v772 = vadd.f32 %v762, %v770
    %v773 = vtanh.pop %v772
    %775 = vrot.lane.b32.xlu0 %v773, 64
    %v776 = vpop.permute.xlu0 %775
    %v778 = vmul.f32 %v760, %v776
    %v779 = vsel %vm188, 3, 6
    %vm780 = vcmp.lt.s32.totalorder %v779, %v185
    %v781 = vsel %vm780, 1, 0
    %782 = vset.pattern.permute.xlu0 0
    %783 = vperm.xlu0 %782, %v781
    %v784 = vpop.permute.xlu0 %783
    %vm785 = vcmp.eq.s32.totalorder %v784, 1
    %v786 = vsel %vm785, %v778, %v668
    %v787 = vsel %vm785, %v772, %v669
    %v788 = vsel %vm184, %v304, %v306
    %790 = vrot.lane.b32.xlu0 %v786, 32
    %v791 = vpop.permute.xlu0 %790
    %v792 = vsel %vm209, %v791, 0
    %794 = vmatprep.subr.mxu0 %v322
    %795 = vmatpush1.msra.mxu0 %v321
    %796 = vmatprep.subr.mxu0 %v324
    %797 = vmatpush1.msra.mxu0 %v323
    %798 = vmatprep.subr.mxu0 %v326
    %799 = vmatpush1.msra.mxu0 %v325
    %800 = vmatprep.subr.mxu0 %v328
    %801 = vmatpush1.msra.mxu0 %v327
    %802 = vmatprep.subr.mxu0 0.0
    %803 = vmatpush1.msra.mxu0 0.0
    %804 = vmatprep.subr.mxu0 0.0
    %805 = vmatpush1.msra.mxu0 0.0
    %806 = vmatprep.subr.mxu0 0.0
    %807 = vmatpush1.msra.mxu0 0.0
    %808 = vmatprep.subr.mxu0 0.0
    %809 = vmatpush1.msra.mxu0 0.0
    %810 = vmatprep.subr.mxu0 0.0
    %811 = vmatpush1.msra.mxu0 0.0
    %812 = vmatprep.subr.mxu0 0.0
    %813 = vmatpush1.msra.mxu0 0.0
    %814 = vmatprep.subr.mxu0 0.0
    %815 = vmatpush1.msra.mxu0 0.0
    %816 = vmatprep.subr.mxu0 0.0
    %817 = vmatpush1.msra.mxu0 0.0
    %818 = vmatprep.subr.mxu0 0.0
    %819 = vmatpush1.msra.mxu0 0.0
    %820 = vmatprep.subr.mxu0 0.0
    %821 = vmatpush1.msra.mxu0 0.0
    %822 = vmatprep.subr.mxu0 0.0
    %823 = vmatpush1.msra.mxu0 0.0
    %824 = vmatprep.subr.mxu0 0.0
    %825 = vmatpush1.msra.mxu0 0.0
    %826 = vmatprep.subr.mxu0 0.0
    %827 = vmatpush1.msra.mxu0 0.0
    %828 = vmatprep.subr.mxu0 0.0
    %829 = vmatpush1.msra.mxu0 0.0
    %830 = vmatprep.subr.mxu0 0.0
    %831 = vmatpush1.msra.mxu0 0.0
    %832 = vmatprep.subr.mxu0 0.0
    %833 = vmatpush1.msra.mxu0 0.0
    %834 = vmatprep.subr.mxu0 0.0
    %835 = vmatpush1.msra.mxu0 0.0
    %836 = vmatprep.subr.mxu0 0.0
    %837 = vmatpush1.msra.mxu0 0.0
    %838 = vmatprep.subr.mxu0 0.0
    %839 = vmatpush1.msra.mxu0 0.0
    %840 = vmatprep.subr.mxu0 0.0
    %841 = vmatpush1.msra.mxu0 0.0
    %842 = vmatprep.subr.mxu0 0.0
    %843 = vmatpush1.msra.mxu0 0.0
    %844 = vmatprep.subr.mxu0 0.0
    %845 = vmatpush1.msra.mxu0 0.0
    %846 = vmatprep.subr.mxu0 0.0
    %847 = vmatpush1.msra.mxu0 0.0
    %848 = vmatprep.subr.mxu0 0.0
    %849 = vmatpush1.msra.mxu0 0.0
    %850 = vmatprep.subr.mxu0 0.0
    %851 = vmatpush1.msra.mxu0 0.0
    %852 = vmatprep.subr.mxu0 0.0
    %853 = vmatpush1.msra.mxu0 0.0
    %854 = vmatprep.subr.mxu0 0.0
    %855 = vmatpush1.msra.mxu0 0.0
    %856 = vmatprep.subr.mxu0 0.0
    %857 = vmatpush1.msra.mxu0 0.0
    %858 = vmatprep.mubr.f32.mxu0 0.0
    %859 = vmatmul.mubr.f32.gmra.mrb[0].mxu0 %v792
    %v860 = vpop.f32.mrb[0].mxu0
    %v861 = vadd.f32 0.0, %v860
    %v862 = vpop.f32.mrb[0].mxu0
    %v863 = vadd.f32 0.0, %v862
    %864 = vdwg.mxu0
    %v865 = vsel %vm404, %v861, %v863
    %v866 = vadd.f32 %v788, %v865
    %v867 = vxor.u32 %v866, 2147483648
    %v868 = vmul.f32 %v867, 1.442695
    %v869 = vpow.pop %v868
    %v870 = vadd.f32 %v869, 1.0
    %v871 = vrcp.pop %v870
    %v872 = vmul.f32 1.0, %v871
    %v873 = vtanh.pop %v866
    %v874 = vmul.f32 %v872, %v787
    %876 = vrot.lane.b32.xlu0 %v873, 64
    %v877 = vpop.permute.xlu0 %876
    %v879 = vmul.f32 %v872, %v877
    %881 = vrot.lane.b32.xlu0 %v879, 32
    %v882 = vpop.permute.xlu0 %881
    %v884 = vadd.f32 %v874, %v882
    %v885 = vtanh.pop %v884
    %887 = vrot.lane.b32.xlu0 %v885, 64
    %v888 = vpop.permute.xlu0 %887
    %v890 = vmul.f32 %v872, %v888
    %v891 = vsel %vm188, 4, 5
    %vm892 = vcmp.lt.s32.totalorder %v891, %v185
    %v893 = vsel %vm892, 1, 0
    %894 = vset.pattern.permute.xlu0 0
    %895 = vperm.xlu0 %894, %v893
    %v896 = vpop.permute.xlu0 %895
    %vm897 = vcmp.eq.s32.totalorder %v896, 1
    %v898 = vsel %vm897, %v890, %v786
    %v899 = vsel %vm897, %v884, %v787
    %v901 = vrot.slane %v304, 4
    %v904 = vrot.slane %v306, 4
    %v906 = vsel %vm184, %v901, %v904
    %908 = vrot.lane.b32.xlu0 %v898, 32
    %v909 = vpop.permute.xlu0 %908
    %v910 = vsel %vm209, %v909, 0
    %912 = vmatprep.subr.mxu0 %v322
    %913 = vmatpush1.msra.mxu0 %v321
    %914 = vmatprep.subr.mxu0 %v324
    %915 = vmatpush1.msra.mxu0 %v323
    %916 = vmatprep.subr.mxu0 %v326
    %917 = vmatpush1.msra.mxu0 %v325
    %918 = vmatprep.subr.mxu0 %v328
    %919 = vmatpush1.msra.mxu0 %v327
    %920 = vmatprep.subr.mxu0 0.0
    %921 = vmatpush1.msra.mxu0 0.0
    %922 = vmatprep.subr.mxu0 0.0
    %923 = vmatpush1.msra.mxu0 0.0
    %924 = vmatprep.subr.mxu0 0.0
    %925 = vmatpush1.msra.mxu0 0.0
    %926 = vmatprep.subr.mxu0 0.0
    %927 = vmatpush1.msra.mxu0 0.0
    %928 = vmatprep.subr.mxu0 0.0
    %929 = vmatpush1.msra.mxu0 0.0
    %930 = vmatprep.subr.mxu0 0.0
    %931 = vmatpush1.msra.mxu0 0.0
    %932 = vmatprep.subr.mxu0 0.0
    %933 = vmatpush1.msra.mxu0 0.0
    %934 = vmatprep.subr.mxu0 0.0
    %935 = vmatpush1.msra.mxu0 0.0
    %936 = vmatprep.subr.mxu0 0.0
    %937 = vmatpush1.msra.mxu0 0.0
    %938 = vmatprep.subr.mxu0 0.0
    %939 = vmatpush1.msra.mxu0 0.0
    %940 = vmatprep.subr.mxu0 0.0
    %941 = vmatpush1.msra.mxu0 0.0
    %942 = vmatprep.subr.mxu0 0.0
    %943 = vmatpush1.msra.mxu0 0.0
    %944 = vmatprep.subr.mxu0 0.0
    %945 = vmatpush1.msra.mxu0 0.0
    %946 = vmatprep.subr.mxu0 0.0
    %947 = vmatpush1.msra.mxu0 0.0
    %948 = vmatprep.subr.mxu0 0.0
    %949 = vmatpush1.msra.mxu0 0.0
    %950 = vmatprep.subr.mxu0 0.0
    %951 = vmatpush1.msra.mxu0 0.0
    %952 = vmatprep.subr.mxu0 0.0
    %953 = vmatpush1.msra.mxu0 0.0
    %954 = vmatprep.subr.mxu0 0.0
    %955 = vmatpush1.msra.mxu0 0.0
    %956 = vmatprep.subr.mxu0 0.0
    %957 = vmatpush1.msra.mxu0 0.0
    %958 = vmatprep.subr.mxu0 0.0
    %959 = vmatpush1.msra.mxu0 0.0
    %960 = vmatprep.subr.mxu0 0.0
    %961 = vmatpush1.msra.mxu0 0.0
    %962 = vmatprep.subr.mxu0 0.0
    %963 = vmatpush1.msra.mxu0 0.0
    %964 = vmatprep.subr.mxu0 0.0
    %965 = vmatpush1.msra.mxu0 0.0
    %966 = vmatprep.subr.mxu0 0.0
    %967 = vmatpush1.msra.mxu0 0.0
    %968 = vmatprep.subr.mxu0 0.0
    %969 = vmatpush1.msra.mxu0 0.0
    %970 = vmatprep.subr.mxu0 0.0
    %971 = vmatpush1.msra.mxu0 0.0
    %972 = vmatprep.subr.mxu0 0.0
    %973 = vmatpush1.msra.mxu0 0.0
    %974 = vmatprep.subr.mxu0 0.0
    %975 = vmatpush1.msra.mxu0 0.0
    %976 = vmatprep.mubr.f32.mxu0 0.0
    %977 = vmatmul.mubr.f32.gmra.mrb[0].mxu0 %v910
    %v978 = vpop.f32.mrb[0].mxu0
    %v979 = vadd.f32 0.0, %v978
    %v980 = vpop.f32.mrb[0].mxu0
    %v981 = vadd.f32 0.0, %v980
    %982 = vdwg.mxu0
    %v983 = vsel %vm404, %v979, %v981
    %v984 = vadd.f32 %v906, %v983
    %v985 = vxor.u32 %v984, 2147483648
    %v986 = vmul.f32 %v985, 1.442695
    %v987 = vpow.pop %v986
    %v988 = vadd.f32 %v987, 1.0
    %v989 = vrcp.pop %v988
    %v990 = vmul.f32 1.0, %v989
    %v991 = vtanh.pop %v984
    %v992 = vmul.f32 %v990, %v899
    %994 = vrot.lane.b32.xlu0 %v991, 64
    %v995 = vpop.permute.xlu0 %994
    %v997 = vmul.f32 %v990, %v995
    %999 = vrot.lane.b32.xlu0 %v997, 32
    %v1000 = vpop.permute.xlu0 %999
    %v1002 = vadd.f32 %v992, %v1000
    %v1003 = vtanh.pop %v1002
    %1005 = vrot.lane.b32.xlu0 %v1003, 64
    %v1006 = vpop.permute.xlu0 %1005
    %v1008 = vmul.f32 %v990, %v1006
    %v1009 = vsel %vm188, 5, 4
    %vm1010 = vcmp.lt.s32.totalorder %v1009, %v185
    %v1011 = vsel %vm1010, 1, 0
    %1012 = vset.pattern.permute.xlu0 0
    %1013 = vperm.xlu0 %1012, %v1011
    %v1014 = vpop.permute.xlu0 %1013
    %vm1015 = vcmp.eq.s32.totalorder %v1014, 1
    %v1016 = vsel %vm1015, %v1008, %v898
    %v1017 = vsel %vm1015, %v1002, %v899
    %v1018 = vsel %vm184, %v310, %v300
    %1020 = vrot.lane.b32.xlu0 %v1016, 32
    %v1021 = vpop.permute.xlu0 %1020
    %v1022 = vsel %vm209, %v1021, 0
    %1024 = vmatprep.subr.mxu0 %v322
    %1025 = vmatpush1.msra.mxu0 %v321
    %1026 = vmatprep.subr.mxu0 %v324
    %1027 = vmatpush1.msra.mxu0 %v323
    %1028 = vmatprep.subr.mxu0 %v326
    %1029 = vmatpush1.msra.mxu0 %v325
    %1030 = vmatprep.subr.mxu0 %v328
    %1031 = vmatpush1.msra.mxu0 %v327
    %1032 = vmatprep.subr.mxu0 0.0
    %1033 = vmatpush1.msra.mxu0 0.0
    %1034 = vmatprep.subr.mxu0 0.0
    %1035 = vmatpush1.msra.mxu0 0.0
    %1036 = vmatprep.subr.mxu0 0.0
    %1037 = vmatpush1.msra.mxu0 0.0
    %1038 = vmatprep.subr.mxu0 0.0
    %1039 = vmatpush1.msra.mxu0 0.0
    %1040 = vmatprep.subr.mxu0 0.0
    %1041 = vmatpush1.msra.mxu0 0.0
    %1042 = vmatprep.subr.mxu0 0.0
    %1043 = vmatpush1.msra.mxu0 0.0
    %1044 = vmatprep.subr.mxu0 0.0
    %1045 = vmatpush1.msra.mxu0 0.0
    %1046 = vmatprep.subr.mxu0 0.0
    %1047 = vmatpush1.msra.mxu0 0.0
    %1048 = vmatprep.subr.mxu0 0.0
    %1049 = vmatpush1.msra.mxu0 0.0
    %1050 = vmatprep.subr.mxu0 0.0
    %1051 = vmatpush1.msra.mxu0 0.0
    %1052 = vmatprep.subr.mxu0 0.0
    %1053 = vmatpush1.msra.mxu0 0.0
    %1054 = vmatprep.subr.mxu0 0.0
    %1055 = vmatpush1.msra.mxu0 0.0
    %1056 = vmatprep.subr.mxu0 0.0
    %1057 = vmatpush1.msra.mxu0 0.0
    %1058 = vmatprep.subr.mxu0 0.0
    %1059 = vmatpush1.msra.mxu0 0.0
    %1060 = vmatprep.subr.mxu0 0.0
    %1061 = vmatpush1.msra.mxu0 0.0
    %1062 = vmatprep.subr.mxu0 0.0
    %1063 = vmatpush1.msra.mxu0 0.0
    %1064 = vmatprep.subr.mxu0 0.0
    %1065 = vmatpush1.msra.mxu0 0.0
    %1066 = vmatprep.subr.mxu0 0.0
    %1067 = vmatpush1.msra.mxu0 0.0
    %1068 = vmatprep.subr.mxu0 0.0
    %1069 = vmatpush1.msra.mxu0 0.0
    %1070 = vmatprep.subr.mxu0 0.0
    %1071 = vmatpush1.msra.mxu0 0.0
    %1072 = vmatprep.subr.mxu0 0.0
    %1073 = vmatpush1.msra.mxu0 0.0
    %1074 = vmatprep.subr.mxu0 0.0
    %1075 = vmatpush1.msra.mxu0 0.0
    %1076 = vmatprep.subr.mxu0 0.0
    %1077 = vmatpush1.msra.mxu0 0.0
    %1078 = vmatprep.subr.mxu0 0.0
    %1079 = vmatpush1.msra.mxu0 0.0
    %1080 = vmatprep.subr.mxu0 0.0
    %1081 = vmatpush1.msra.mxu0 0.0
    %1082 = vmatprep.subr.mxu0 0.0
    %1083 = vmatpush1.msra.mxu0 0.0
    %1084 = vmatprep.subr.mxu0 0.0
    %1085 = vmatpush1.msra.mxu0 0.0
    %1086 = vmatprep.subr.mxu0 0.0
    %1087 = vmatpush1.msra.mxu0 0.0
    %1088 = vmatprep.mubr.f32.mxu0 0.0
    %1089 = vmatmul.mubr.f32.gmra.mrb[0].mxu0 %v1022
    %v1090 = vpop.f32.mrb[0].mxu0
    %v1091 = vadd.f32 0.0, %v1090
    %v1092 = vpop.f32.mrb[0].mxu0
    %v1093 = vadd.f32 0.0, %v1092
    %1094 = vdwg.mxu0
    %v1095 = vsel %vm404, %v1091, %v1093
    %v1096 = vadd.f32 %v1018, %v1095
    %v1097 = vxor.u32 %v1096, 2147483648
    %v1098 = vmul.f32 %v1097, 1.442695
    %v1099 = vpow.pop %v1098
    %v1100 = vadd.f32 %v1099, 1.0
    %v1101 = vrcp.pop %v1100
    %v1102 = vmul.f32 1.0, %v1101
    %v1103 = vtanh.pop %v1096
    %v1104 = vmul.f32 %v1102, %v1017
    %1106 = vrot.lane.b32.xlu0 %v1103, 64
    %v1107 = vpop.permute.xlu0 %1106
    %v1109 = vmul.f32 %v1102, %v1107
    %1111 = vrot.lane.b32.xlu0 %v1109, 32
    %v1112 = vpop.permute.xlu0 %1111
    %v1114 = vadd.f32 %v1104, %v1112
    %v1115 = vtanh.pop %v1114
    %1117 = vrot.lane.b32.xlu0 %v1115, 64
    %v1118 = vpop.permute.xlu0 %1117
    %v1120 = vmul.f32 %v1102, %v1118
    %v1121 = vsel %vm188, 6, 3
    %vm1122 = vcmp.lt.s32.totalorder %v1121, %v185
    %v1123 = vsel %vm1122, 1, 0
    %1124 = vset.pattern.permute.xlu0 0
    %1125 = vperm.xlu0 %1124, %v1123
    %v1126 = vpop.permute.xlu0 %1125
    %vm1127 = vcmp.eq.s32.totalorder %v1126, 1
    %v1128 = vsel %vm1127, %v1120, %v1016
    %v1129 = vsel %vm1127, %v1114, %v1017
    %v1131 = vrot.slane %v310, 4
    %v1134 = vrot.slane %v300, 4
    %v1136 = vsel %vm184, %v1131, %v1134
    %1138 = vrot.lane.b32.xlu0 %v1128, 32
    %v1139 = vpop.permute.xlu0 %1138
    %v1140 = vsel %vm209, %v1139, 0
    %1142 = vmatprep.subr.mxu0 %v322
    %1143 = vmatpush1.msra.mxu0 %v321
    %1144 = vmatprep.subr.mxu0 %v324
    %1145 = vmatpush1.msra.mxu0 %v323
    %1146 = vmatprep.subr.mxu0 %v326
    %1147 = vmatpush1.msra.mxu0 %v325
    %1148 = vmatprep.subr.mxu0 %v328
    %1149 = vmatpush1.msra.mxu0 %v327
    %1150 = vmatprep.subr.mxu0 0.0
    %1151 = vmatpush1.msra.mxu0 0.0
    %1152 = vmatprep.subr.mxu0 0.0
    %1153 = vmatpush1.msra.mxu0 0.0
    %1154 = vmatprep.subr.mxu0 0.0
    %1155 = vmatpush1.msra.mxu0 0.0
    %1156 = vmatprep.subr.mxu0 0.0
    %1157 = vmatpush1.msra.mxu0 0.0
    %1158 = vmatprep.subr.mxu0 0.0
    %1159 = vmatpush1.msra.mxu0 0.0
    %1160 = vmatprep.subr.mxu0 0.0
    %1161 = vmatpush1.msra.mxu0 0.0
    %1162 = vmatprep.subr.mxu0 0.0
    %1163 = vmatpush1.msra.mxu0 0.0
    %1164 = vmatprep.subr.mxu0 0.0
    %1165 = vmatpush1.msra.mxu0 0.0
    %1166 = vmatprep.subr.mxu0 0.0
    %1167 = vmatpush1.msra.mxu0 0.0
    %1168 = vmatprep.subr.mxu0 0.0
    %1169 = vmatpush1.msra.mxu0 0.0
    %1170 = vmatprep.subr.mxu0 0.0
    %1171 = vmatpush1.msra.mxu0 0.0
    %1172 = vmatprep.subr.mxu0 0.0
    %1173 = vmatpush1.msra.mxu0 0.0
    %1174 = vmatprep.subr.mxu0 0.0
    %1175 = vmatpush1.msra.mxu0 0.0
    %1176 = vmatprep.subr.mxu0 0.0
    %1177 = vmatpush1.msra.mxu0 0.0
    %1178 = vmatprep.subr.mxu0 0.0
    %1179 = vmatpush1.msra.mxu0 0.0
    %1180 = vmatprep.subr.mxu0 0.0
    %1181 = vmatpush1.msra.mxu0 0.0
    %1182 = vmatprep.subr.mxu0 0.0
    %1183 = vmatpush1.msra.mxu0 0.0
    %1184 = vmatprep.subr.mxu0 0.0
    %1185 = vmatpush1.msra.mxu0 0.0
    %1186 = vmatprep.subr.mxu0 0.0
    %1187 = vmatpush1.msra.mxu0 0.0
    %1188 = vmatprep.subr.mxu0 0.0
    %1189 = vmatpush1.msra.mxu0 0.0
    %1190 = vmatprep.subr.mxu0 0.0
    %1191 = vmatpush1.msra.mxu0 0.0
    %1192 = vmatprep.subr.mxu0 0.0
    %1193 = vmatpush1.msra.mxu0 0.0
    %1194 = vmatprep.subr.mxu0 0.0
    %1195 = vmatpush1.msra.mxu0 0.0
    %1196 = vmatprep.subr.mxu0 0.0
    %1197 = vmatpush1.msra.mxu0 0.0
    %1198 = vmatprep.subr.mxu0 0.0
    %1199 = vmatpush1.msra.mxu0 0.0
    %1200 = vmatprep.subr.mxu0 0.0
    %1201 = vmatpush1.msra.mxu0 0.0
    %1202 = vmatprep.subr.mxu0 0.0
    %1203 = vmatpush1.msra.mxu0 0.0
    %1204 = vmatprep.subr.mxu0 0.0
    %1205 = vmatpush1.msra.mxu0 0.0
    %1206 = vmatprep.mubr.f32.mxu0 0.0
    %1207 = vmatmul.mubr.f32.gmra.mrb[0].mxu0 %v1140
    %v1208 = vpop.f32.mrb[0].mxu0
    %v1209 = vadd.f32 0.0, %v1208
    %v1210 = vpop.f32.mrb[0].mxu0
    %v1211 = vadd.f32 0.0, %v1210
    %1212 = vdwg.mxu0
    %v1213 = vsel %vm404, %v1209, %v1211
    %v1214 = vadd.f32 %v1136, %v1213
    %v1215 = vxor.u32 %v1214, 2147483648
    %v1216 = vmul.f32 %v1215, 1.442695
    %v1217 = vpow.pop %v1216
    %v1218 = vadd.f32 %v1217, 1.0
    %v1219 = vrcp.pop %v1218
    %v1220 = vmul.f32 1.0, %v1219
    %v1221 = vtanh.pop %v1214
    %v1222 = vmul.f32 %v1220, %v1129
    %1224 = vrot.lane.b32.xlu0 %v1221, 64
    %v1225 = vpop.permute.xlu0 %1224
    %v1227 = vmul.f32 %v1220, %v1225
    %1229 = vrot.lane.b32.xlu0 %v1227, 32
    %v1230 = vpop.permute.xlu0 %1229
    %v1232 = vadd.f32 %v1222, %v1230
    %v1233 = vtanh.pop %v1232
    %1235 = vrot.lane.b32.xlu0 %v1233, 64
    %v1236 = vpop.permute.xlu0 %1235
    %v1238 = vmul.f32 %v1220, %v1236
    %v1239 = vsel %vm188, 7, 2
    %vm1240 = vcmp.lt.s32.totalorder %v1239, %v185
    %v1241 = vsel %vm1240, 1, 0
    %1242 = vset.pattern.permute.xlu0 0
    %1243 = vperm.xlu0 %1242, %v1241
    %v1244 = vpop.permute.xlu0 %1243
    %vm1245 = vcmp.eq.s32.totalorder %v1244, 1
    %v1246 = vsel %vm1245, %v1238, %v1128
    %v1247 = vsel %vm1245, %v1232, %v1129
    %v1248 = vsel %vm184, %v316, %v294
    %1250 = vrot.lane.b32.xlu0 %v1246, 32
    %v1251 = vpop.permute.xlu0 %1250
    %v1252 = vsel %vm209, %v1251, 0
    %1254 = vmatprep.subr.mxu0 %v322
    %1255 = vmatpush1.msra.mxu0 %v321
    %1256 = vmatprep.subr.mxu0 %v324
    %1257 = vmatpush1.msra.mxu0 %v323
    %1258 = vmatprep.subr.mxu0 %v326
    %1259 = vmatpush1.msra.mxu0 %v325
    %1260 = vmatprep.subr.mxu0 %v328
    %1261 = vmatpush1.msra.mxu0 %v327
    %1262 = vmatprep.subr.mxu0 0.0
    %1263 = vmatpush1.msra.mxu0 0.0
    %1264 = vmatprep.subr.mxu0 0.0
    %1265 = vmatpush1.msra.mxu0 0.0
    %1266 = vmatprep.subr.mxu0 0.0
    %1267 = vmatpush1.msra.mxu0 0.0
    %1268 = vmatprep.subr.mxu0 0.0
    %1269 = vmatpush1.msra.mxu0 0.0
    %1270 = vmatprep.subr.mxu0 0.0
    %1271 = vmatpush1.msra.mxu0 0.0
    %1272 = vmatprep.subr.mxu0 0.0
    %1273 = vmatpush1.msra.mxu0 0.0
    %1274 = vmatprep.subr.mxu0 0.0
    %1275 = vmatpush1.msra.mxu0 0.0
    %1276 = vmatprep.subr.mxu0 0.0
    %1277 = vmatpush1.msra.mxu0 0.0
    %1278 = vmatprep.subr.mxu0 0.0
    %1279 = vmatpush1.msra.mxu0 0.0
    %1280 = vmatprep.subr.mxu0 0.0
    %1281 = vmatpush1.msra.mxu0 0.0
    %1282 = vmatprep.subr.mxu0 0.0
    %1283 = vmatpush1.msra.mxu0 0.0
    %1284 = vmatprep.subr.mxu0 0.0
    %1285 = vmatpush1.msra.mxu0 0.0
    %1286 = vmatprep.subr.mxu0 0.0
    %1287 = vmatpush1.msra.mxu0 0.0
    %1288 = vmatprep.subr.mxu0 0.0
    %1289 = vmatpush1.msra.mxu0 0.0
    %1290 = vmatprep.subr.mxu0 0.0
    %1291 = vmatpush1.msra.mxu0 0.0
    %1292 = vmatprep.subr.mxu0 0.0
    %1293 = vmatpush1.msra.mxu0 0.0
    %1294 = vmatprep.subr.mxu0 0.0
    %1295 = vmatpush1.msra.mxu0 0.0
    %1296 = vmatprep.subr.mxu0 0.0
    %1297 = vmatpush1.msra.mxu0 0.0
    %1298 = vmatprep.subr.mxu0 0.0
    %1299 = vmatpush1.msra.mxu0 0.0
    %1300 = vmatprep.subr.mxu0 0.0
    %1301 = vmatpush1.msra.mxu0 0.0
    %1302 = vmatprep.subr.mxu0 0.0
    %1303 = vmatpush1.msra.mxu0 0.0
    %1304 = vmatprep.subr.mxu0 0.0
    %1305 = vmatpush1.msra.mxu0 0.0
    %1306 = vmatprep.subr.mxu0 0.0
    %1307 = vmatpush1.msra.mxu0 0.0
    %1308 = vmatprep.subr.mxu0 0.0
    %1309 = vmatpush1.msra.mxu0 0.0
    %1310 = vmatprep.subr.mxu0 0.0
    %1311 = vmatpush1.msra.mxu0 0.0
    %1312 = vmatprep.subr.mxu0 0.0
    %1313 = vmatpush1.msra.mxu0 0.0
    %1314 = vmatprep.subr.mxu0 0.0
    %1315 = vmatpush1.msra.mxu0 0.0
    %1316 = vmatprep.subr.mxu0 0.0
    %1317 = vmatpush1.msra.mxu0 0.0
    %1318 = vmatprep.mubr.f32.mxu0 0.0
    %1319 = vmatmul.mubr.f32.gmra.mrb[0].mxu0 %v1252
    %v1320 = vpop.f32.mrb[0].mxu0
    %v1321 = vadd.f32 0.0, %v1320
    %v1322 = vpop.f32.mrb[0].mxu0
    %v1323 = vadd.f32 0.0, %v1322
    %1324 = vdwg.mxu0
    %v1325 = vsel %vm404, %v1321, %v1323
    %v1326 = vadd.f32 %v1248, %v1325
    %v1327 = vxor.u32 %v1326, 2147483648
    %v1328 = vmul.f32 %v1327, 1.442695
    %v1329 = vpow.pop %v1328
    %v1330 = vadd.f32 %v1329, 1.0
    %v1331 = vrcp.pop %v1330
    %v1332 = vmul.f32 1.0, %v1331
    %v1333 = vtanh.pop %v1326
    %v1334 = vmul.f32 %v1332, %v1247
    %1336 = vrot.lane.b32.xlu0 %v1333, 64
    %v1337 = vpop.permute.xlu0 %1336
    %v1339 = vmul.f32 %v1332, %v1337
    %1341 = vrot.lane.b32.xlu0 %v1339, 32
    %v1342 = vpop.permute.xlu0 %1341
    %v1344 = vadd.f32 %v1334, %v1342
    %v1345 = vtanh.pop %v1344
    %1347 = vrot.lane.b32.xlu0 %v1345, 64
    %v1348 = vpop.permute.xlu0 %1347
    %v1350 = vmul.f32 %v1332, %v1348
    %v1351 = vsel %vm188, 8, 1
    %vm1352 = vcmp.lt.s32.totalorder %v1351, %v185
    %v1353 = vsel %vm1352, 1, 0
    %1354 = vset.pattern.permute.xlu0 0
    %1355 = vperm.xlu0 %1354, %v1353
    %v1356 = vpop.permute.xlu0 %1355
    %vm1357 = vcmp.eq.s32.totalorder %v1356, 1
    %v1358 = vsel %vm1357, %v1350, %v1246
    %v1359 = vsel %vm1357, %v1344, %v1247
    %v1361 = vrot.slane %v316, 4
    %v1364 = vrot.slane %v294, 4
    %v1366 = vsel %vm184, %v1361, %v1364
    %1368 = vrot.lane.b32.xlu0 %v1358, 32
    %v1369 = vpop.permute.xlu0 %1368
    %v1370 = vsel %vm209, %v1369, 0
    %1372 = vmatprep.subr.mxu0 %v322
    %1373 = vmatpush1.msra.mxu0 %v321
    %1374 = vmatprep.subr.mxu0 %v324
    %1375 = vmatpush1.msra.mxu0 %v323
    %1376 = vmatprep.subr.mxu0 %v326
    %1377 = vmatpush1.msra.mxu0 %v325
    %1378 = vmatprep.subr.mxu0 %v328
    %1379 = vmatpush1.msra.mxu0 %v327
    %1380 = vmatprep.subr.mxu0 0.0
    %1381 = vmatpush1.msra.mxu0 0.0
    %1382 = vmatprep.subr.mxu0 0.0
    %1383 = vmatpush1.msra.mxu0 0.0
    %1384 = vmatprep.subr.mxu0 0.0
    %1385 = vmatpush1.msra.mxu0 0.0
    %1386 = vmatprep.subr.mxu0 0.0
    %1387 = vmatpush1.msra.mxu0 0.0
    %1388 = vmatprep.subr.mxu0 0.0
    %1389 = vmatpush1.msra.mxu0 0.0
    %1390 = vmatprep.subr.mxu0 0.0
    %1391 = vmatpush1.msra.mxu0 0.0
    %1392 = vmatprep.subr.mxu0 0.0
    %1393 = vmatpush1.msra.mxu0 0.0
    %1394 = vmatprep.subr.mxu0 0.0
    %1395 = vmatpush1.msra.mxu0 0.0
    %1396 = vmatprep.subr.mxu0 0.0
    %1397 = vmatpush1.msra.mxu0 0.0
    %1398 = vmatprep.subr.mxu0 0.0
    %1399 = vmatpush1.msra.mxu0 0.0
    %1400 = vmatprep.subr.mxu0 0.0
    %1401 = vmatpush1.msra.mxu0 0.0
    %1402 = vmatprep.subr.mxu0 0.0
    %1403 = vmatpush1.msra.mxu0 0.0
    %1404 = vmatprep.subr.mxu0 0.0
    %1405 = vmatpush1.msra.mxu0 0.0
    %1406 = vmatprep.subr.mxu0 0.0
    %1407 = vmatpush1.msra.mxu0 0.0
    %1408 = vmatprep.subr.mxu0 0.0
    %1409 = vmatpush1.msra.mxu0 0.0
    %1410 = vmatprep.subr.mxu0 0.0
    %1411 = vmatpush1.msra.mxu0 0.0
    %1412 = vmatprep.subr.mxu0 0.0
    %1413 = vmatpush1.msra.mxu0 0.0
    %1414 = vmatprep.subr.mxu0 0.0
    %1415 = vmatpush1.msra.mxu0 0.0
    %1416 = vmatprep.subr.mxu0 0.0
    %1417 = vmatpush1.msra.mxu0 0.0
    %1418 = vmatprep.subr.mxu0 0.0
    %1419 = vmatpush1.msra.mxu0 0.0
    %1420 = vmatprep.subr.mxu0 0.0
    %1421 = vmatpush1.msra.mxu0 0.0
    %1422 = vmatprep.subr.mxu0 0.0
    %1423 = vmatpush1.msra.mxu0 0.0
    %1424 = vmatprep.subr.mxu0 0.0
    %1425 = vmatpush1.msra.mxu0 0.0
    %1426 = vmatprep.subr.mxu0 0.0
    %1427 = vmatpush1.msra.mxu0 0.0
    %1428 = vmatprep.subr.mxu0 0.0
    %1429 = vmatpush1.msra.mxu0 0.0
    %1430 = vmatprep.subr.mxu0 0.0
    %1431 = vmatpush1.msra.mxu0 0.0
    %1432 = vmatprep.subr.mxu0 0.0
    %1433 = vmatpush1.msra.mxu0 0.0
    %1434 = vmatprep.subr.mxu0 0.0
    %1435 = vmatpush1.msra.mxu0 0.0
    %1436 = vmatprep.mubr.f32.mxu0 0.0
    %1437 = vmatmul.mubr.f32.gmra.mrb[0].mxu0 %v1370
    %v1438 = vpop.f32.mrb[0].mxu0
    %v1439 = vadd.f32 0.0, %v1438
    %v1440 = vpop.f32.mrb[0].mxu0
    %v1441 = vadd.f32 0.0, %v1440
    %1442 = vdwg.mxu0
    %v1443 = vsel %vm404, %v1439, %v1441
    %v1444 = vadd.f32 %v1366, %v1443
    %v1445 = vxor.u32 %v1444, 2147483648
    %v1446 = vmul.f32 %v1445, 1.442695
    %v1447 = vpow.pop %v1446
    %v1448 = vadd.f32 %v1447, 1.0
    %v1449 = vrcp.pop %v1448
    %v1450 = vmul.f32 1.0, %v1449
    %v1451 = vtanh.pop %v1444
    %v1452 = vmul.f32 %v1450, %v1359
    %1454 = vrot.lane.b32.xlu0 %v1451, 64
    %v1455 = vpop.permute.xlu0 %1454
    %v1457 = vmul.f32 %v1450, %v1455
    %1459 = vrot.lane.b32.xlu0 %v1457, 32
    %v1460 = vpop.permute.xlu0 %1459
    %v1462 = vadd.f32 %v1452, %v1460
    %v1463 = vtanh.pop %v1462
    %1465 = vrot.lane.b32.xlu0 %v1463, 64
    %v1466 = vpop.permute.xlu0 %1465
    %v1468 = vmul.f32 %v1450, %v1466
    %v1469 = vsel %vm188, 9, 0
    %vm1470 = vcmp.lt.s32.totalorder %v1469, %v185
    %v1471 = vsel %vm1470, 1, 0
    %1472 = vset.pattern.permute.xlu0 0
    %1473 = vperm.xlu0 %1472, %v1471
    %v1474 = vpop.permute.xlu0 %1473
    %vm1475 = vcmp.eq.s32.totalorder %v1474, 1
    %v1476 = vsel %vm1475, %v1468, %v1358
    %v1479 = vrot.slane %v1476, 4
    %1480 = vrot.lane.b32.xlu0 %v1479, 64
    %v1481 = vpop.permute.xlu0 %1480
    %v1483 = vsel %vm209, %v449, %v1481
    %v1485 = vrot.slane %v1358, 4
    %1486 = vrot.lane.b32.xlu0 %v1485, 64
    %v1487 = vpop.permute.xlu0 %1486
    %v1489 = vsel %vm209, %v561, %v1487
    %v1491 = vrot.slane %v1246, 4
    %1492 = vrot.lane.b32.xlu0 %v1491, 64
    %v1493 = vpop.permute.xlu0 %1492
    %v1495 = vsel %vm209, %v679, %v1493
    %v1497 = vrot.slane %v1128, 4
    %1498 = vrot.lane.b32.xlu0 %v1497, 64
    %v1499 = vpop.permute.xlu0 %1498
    %v1501 = vsel %vm209, %v791, %v1499
    %v1503 = vrot.slane %v1016, 4
    %1504 = vrot.lane.b32.xlu0 %v1503, 64
    %v1505 = vpop.permute.xlu0 %1504
    %v1507 = vsel %vm209, %v909, %v1505
    %v1509 = vrot.slane %v898, 4
    %1510 = vrot.lane.b32.xlu0 %v1509, 64
    %v1511 = vpop.permute.xlu0 %1510
    %v1513 = vsel %vm209, %v1021, %v1511
    %v1515 = vrot.slane %v786, 4
    %1516 = vrot.lane.b32.xlu0 %v1515, 64
    %v1517 = vpop.permute.xlu0 %1516
    %v1519 = vsel %vm209, %v1139, %v1517
    %v1521 = vrot.slane %v668, 4
    %1522 = vrot.lane.b32.xlu0 %v1521, 64
    %v1523 = vpop.permute.xlu0 %1522
    %v1525 = vsel %vm209, %v1251, %v1523
    %v1527 = vrot.slane %v556, 4
    %1528 = vrot.lane.b32.xlu0 %v1527, 64
    %v1529 = vpop.permute.xlu0 %1528
    %v1531 = vsel %vm209, %v1369, %v1529
    %1532 = vrot.lane.b32.xlu0 %v1476, 32
    %v1533 = vpop.permute.xlu0 %1532
    %v1535 = vrot.slane %v438, 4
    %1536 = vrot.lane.b32.xlu0 %v1535, 64
    %v1537 = vpop.permute.xlu0 %1536
    %v1539 = vsel %vm209, %v1533, %v1537
    %v1541 = vrot.slane %v1489, 4
    %v1544 = vrot.slane %v1501, 4
    %v1547 = vrot.slane %v1513, 4
    %v1550 = vrot.slane %v1525, 4
    %v1553 = vrot.slane %v1539, 4
    %v1555 = vsel %vm184, %v1483, %v1541
    %v1556 = vsel %vm184, %v1495, %v1544
    %v1557 = vsel %vm184, %v1507, %v1547
    %v1558 = vsel %vm184, %v1519, %v1550
    %v1559 = vsel %vm184, %v1531, %v1553
    %v1560 = vld [vmem:[%s6] sm:$0xff]
    %v1561 = vld [vmem:[%s6 + $0x8] sm:$0xff]
    %v1562 = vld [vmem:[%s6 + $0x10] sm:$0xff]
    %v1563 = vld [vmem:[%s6 + $0x18] sm:$0xff]
    %v1564 = vld [vmem:[%s6 + $0x20] sm:$0xff]
    %v1565 = vld [vmem:[%s6 + $0x28] sm:$0xff]
    %v1566 = vld [vmem:[%s6 + $0x30] sm:$0xff]
    %v1567 = vld [vmem:[%s6 + $0x38] sm:$0xff]
    %v1568 = vld [vmem:[%s6 + $0x40] sm:$0xff]
    %v1569 = vld [vmem:[%s6 + $0x48] sm:$0xff]
    %v1570 = vld [vmem:[%s6 + $0x50] sm:$0xff]
    %v1571 = vld [vmem:[%s6 + $0x58] sm:$0xff]
    %v1572 = vld [vmem:[%s6 + $0x60] sm:$0xff]
    %v1573 = vld [vmem:[%s6 + $0x68] sm:$0xff]
    %v1574 = vld [vmem:[%s6 + $0x70] sm:$0xff]
    %v1575 = vld [vmem:[%s6 + $0x78] sm:$0xff]
    %v1576 = vld [vmem:[%s8] sm:$0x3]
    %v1578 = vlaneseq
    %v1579 = vshrl.u32 %v1578, 7
    %v1580 = vsub.s32 0, %v1579
    %v1581 = vrot.slane %v1576, %v1580
    %v1582 = vlaneseq
    %v1583 = vshrl.u32 %v1582, 7
    %v1584 = vsub.s32 1, %v1583
    %v1585 = vrot.slane %v1576, %v1584
    %vm1588 = vcmask 523264
    %v1590 = vsel %vm1588, %v1555, 0
    %v1593 = vsel %vm1588, %v1556, 0
    %v1596 = vsel %vm1588, %v1557, 0
    %v1599 = vsel %vm1588, %v1558, 0
    %v1602 = vsel %vm1588, %v1559, 0
    %1604 = vmatprep.subr.mxu0 %v1561
    %1605 = vmatpush1.msra.mxu0 %v1560
    %1606 = vmatprep.subr.mxu0 %v1563
    %1607 = vmatpush1.msra.mxu0 %v1562
    %1608 = vmatprep.subr.mxu0 %v1565
    %1609 = vmatpush1.msra.mxu0 %v1564
    %1610 = vmatprep.subr.mxu0 %v1567
    %1611 = vmatpush1.msra.mxu0 %v1566
    %1612 = vmatprep.subr.mxu0 %v1569
    %1613 = vmatpush1.msra.mxu0 %v1568
    %1614 = vmatprep.subr.mxu0 %v1571
    %1615 = vmatpush1.msra.mxu0 %v1570
    %1616 = vmatprep.subr.mxu0 %v1573
    %1617 = vmatpush1.msra.mxu0 %v1572
    %1618 = vmatprep.subr.mxu0 %v1575
    %1619 = vmatpush1.msra.mxu0 %v1574
    %1620 = vmatprep.subr.mxu0 0.0
    %1621 = vmatpush1.msra.mxu0 0.0
    %1622 = vmatprep.subr.mxu0 0.0
    %1623 = vmatpush1.msra.mxu0 0.0
    %1624 = vmatprep.subr.mxu0 0.0
    %1625 = vmatpush1.msra.mxu0 0.0
    %1626 = vmatprep.subr.mxu0 0.0
    %1627 = vmatpush1.msra.mxu0 0.0
    %1628 = vmatprep.subr.mxu0 0.0
    %1629 = vmatpush1.msra.mxu0 0.0
    %1630 = vmatprep.subr.mxu0 0.0
    %1631 = vmatpush1.msra.mxu0 0.0
    %1632 = vmatprep.subr.mxu0 0.0
    %1633 = vmatpush1.msra.mxu0 0.0
    %1634 = vmatprep.subr.mxu0 0.0
    %1635 = vmatpush1.msra.mxu0 0.0
    %1636 = vmatprep.subr.mxu0 0.0
    %1637 = vmatpush1.msra.mxu0 0.0
    %1638 = vmatprep.subr.mxu0 0.0
    %1639 = vmatpush1.msra.mxu0 0.0
    %1640 = vmatprep.subr.mxu0 0.0
    %1641 = vmatpush1.msra.mxu0 0.0
    %1642 = vmatprep.subr.mxu0 0.0
    %1643 = vmatpush1.msra.mxu0 0.0
    %1644 = vmatprep.subr.mxu0 0.0
    %1645 = vmatpush1.msra.mxu0 0.0
    %1646 = vmatprep.subr.mxu0 0.0
    %1647 = vmatpush1.msra.mxu0 0.0
    %1648 = vmatprep.subr.mxu0 0.0
    %1649 = vmatpush1.msra.mxu0 0.0
    %1650 = vmatprep.subr.mxu0 0.0
    %1651 = vmatpush1.msra.mxu0 0.0
    %1652 = vmatprep.subr.mxu0 0.0
    %1653 = vmatpush1.msra.mxu0 0.0
    %1654 = vmatprep.subr.mxu0 0.0
    %1655 = vmatpush1.msra.mxu0 0.0
    %1656 = vmatprep.subr.mxu0 0.0
    %1657 = vmatpush1.msra.mxu0 0.0
    %1658 = vmatprep.subr.mxu0 0.0
    %1659 = vmatpush1.msra.mxu0 0.0
    %1660 = vmatprep.subr.mxu0 0.0
    %1661 = vmatpush1.msra.mxu0 0.0
    %1662 = vmatprep.subr.mxu0 0.0
    %1663 = vmatpush1.msra.mxu0 0.0
    %1664 = vmatprep.subr.mxu0 0.0
    %1665 = vmatpush1.msra.mxu0 0.0
    %1666 = vmatprep.subr.mxu0 0.0
    %1667 = vmatpush1.msra.mxu0 0.0
    %1668 = vmatprep.mubr.f32.mxu0 0.0
    %1669 = vmatmul.mubr.f32.gmra.mrb[0].mxu0 %v1590
    %v1670 = vpop.f32.mrb[0].mxu0
    %v1671 = vadd.f32 %v1581, %v1670
    %v1672 = vpop.f32.mrb[0].mxu0
    %v1673 = vadd.f32 %v1585, %v1672
    %1674 = vmatprep.mubr.f32.mxu0 0.0
    %1675 = vmatmul.mubr.f32.gmra.mrb[0].mxu0 %v1593
    %v1676 = vpop.f32.mrb[0].mxu0
    %v1677 = vadd.f32 %v1581, %v1676
    %v1678 = vpop.f32.mrb[0].mxu0
    %v1679 = vadd.f32 %v1585, %v1678
    %1680 = vmatprep.mubr.f32.mxu0 0.0
    %1681 = vmatmul.mubr.f32.gmra.mrb[0].mxu0 %v1596
    %v1682 = vpop.f32.mrb[0].mxu0
    %v1683 = vadd.f32 %v1581, %v1682
    %v1684 = vpop.f32.mrb[0].mxu0
    %v1685 = vadd.f32 %v1585, %v1684
    %1686 = vmatprep.mubr.f32.mxu0 0.0
    %1687 = vmatmul.mubr.f32.gmra.mrb[0].mxu0 %v1599
    %v1688 = vpop.f32.mrb[0].mxu0
    %v1689 = vadd.f32 %v1581, %v1688
    %v1690 = vpop.f32.mrb[0].mxu0
    %v1691 = vadd.f32 %v1585, %v1690
    %1692 = vmatprep.mubr.f32.mxu0 0.0
    %1693 = vmatmul.mubr.f32.gmra.mrb[0].mxu0 %v1602
    %v1694 = vpop.f32.mrb[0].mxu0
    %v1695 = vadd.f32 %v1581, %v1694
    %v1696 = vpop.f32.mrb[0].mxu0
    %v1697 = vadd.f32 %v1585, %v1696
    %1698 = vdwg.mxu0
    %v1699 = vsel %vm184, %v1671, %v1697
    %v1700 = vld [vmem:[%s7] sm:$0xff]
    %v1701 = vld [vmem:[%s7 + $0x8] sm:$0xff]
    %v1702 = vld [vmem:[%s7 + $0x10] sm:$0xff]
    %v1703 = vld [vmem:[%s7 + $0x18] sm:$0xff]
    %v1704 = vld [vmem:[%s7 + $0x20] sm:$0xff]
    %v1705 = vld [vmem:[%s7 + $0x28] sm:$0xff]
    %v1706 = vld [vmem:[%s7 + $0x30] sm:$0xff]
    %v1707 = vld [vmem:[%s7 + $0x38] sm:$0xff]
    %1708 = vmatprep.subr.mxu0 %v1701
    %1709 = vmatpush1.msra.mxu0 %v1700
    %1710 = vmatprep.subr.mxu0 %v1703
    %1711 = vmatpush1.msra.mxu0 %v1702
    %1712 = vmatprep.subr.mxu0 %v1705
    %1713 = vmatpush1.msra.mxu0 %v1704
    %1714 = vmatprep.subr.mxu0 %v1707
    %1715 = vmatpush1.msra.mxu0 %v1706
    %1716 = vmatprep.subr.mxu0 0.0
    %1717 = vmatpush1.msra.mxu0 0.0
    %1718 = vmatprep.subr.mxu0 0.0
    %1719 = vmatpush1.msra.mxu0 0.0
    %1720 = vmatprep.subr.mxu0 0.0
    %1721 = vmatpush1.msra.mxu0 0.0
    %1722 = vmatprep.subr.mxu0 0.0
    %1723 = vmatpush1.msra.mxu0 0.0
    %1724 = vmatprep.subr.mxu0 0.0
    %1725 = vmatpush1.msra.mxu0 0.0
    %1726 = vmatprep.subr.mxu0 0.0
    %1727 = vmatpush1.msra.mxu0 0.0
    %1728 = vmatprep.subr.mxu0 0.0
    %1729 = vmatpush1.msra.mxu0 0.0
    %1730 = vmatprep.subr.mxu0 0.0
    %1731 = vmatpush1.msra.mxu0 0.0
    %1732 = vmatprep.subr.mxu0 0.0
    %1733 = vmatpush1.msra.mxu0 0.0
    %1734 = vmatprep.subr.mxu0 0.0
    %1735 = vmatpush1.msra.mxu0 0.0
    %1736 = vmatprep.subr.mxu0 0.0
    %1737 = vmatpush1.msra.mxu0 0.0
    %1738 = vmatprep.subr.mxu0 0.0
    %1739 = vmatpush1.msra.mxu0 0.0
    %1740 = vmatprep.subr.mxu0 0.0
    %1741 = vmatpush1.msra.mxu0 0.0
    %1742 = vmatprep.subr.mxu0 0.0
    %1743 = vmatpush1.msra.mxu0 0.0
    %1744 = vmatprep.subr.mxu0 0.0
    %1745 = vmatpush1.msra.mxu0 0.0
    %1746 = vmatprep.subr.mxu0 0.0
    %1747 = vmatpush1.msra.mxu0 0.0
    %1748 = vmatprep.subr.mxu0 0.0
    %1749 = vmatpush1.msra.mxu0 0.0
    %1750 = vmatprep.subr.mxu0 0.0
    %1751 = vmatpush1.msra.mxu0 0.0
    %1752 = vmatprep.subr.mxu0 0.0
    %1753 = vmatpush1.msra.mxu0 0.0
    %1754 = vmatprep.subr.mxu0 0.0
    %1755 = vmatpush1.msra.mxu0 0.0
    %1756 = vmatprep.subr.mxu0 0.0
    %1757 = vmatpush1.msra.mxu0 0.0
    %1758 = vmatprep.subr.mxu0 0.0
    %1759 = vmatpush1.msra.mxu0 0.0
    %1760 = vmatprep.subr.mxu0 0.0
    %1761 = vmatpush1.msra.mxu0 0.0
    %1762 = vmatprep.subr.mxu0 0.0
    %1763 = vmatpush1.msra.mxu0 0.0
    %1764 = vmatprep.subr.mxu0 0.0
    %1765 = vmatpush1.msra.mxu0 0.0
    %1766 = vmatprep.subr.mxu0 0.0
    %1767 = vmatpush1.msra.mxu0 0.0
    %1768 = vmatprep.subr.mxu0 0.0
    %1769 = vmatpush1.msra.mxu0 0.0
    %1770 = vmatprep.subr.mxu0 0.0
    %1771 = vmatpush1.msra.mxu0 0.0
    %1772 = vmatprep.mubr.f32.mxu0 0.0
    %1773 = vmatmul.mubr.f32.gmra.mrb[0].mxu0 %v330
    %v1774 = vpop.f32.mrb[0].mxu0
    %v1775 = vadd.f32 0.0, %v1774
    %v1776 = vpop.f32.mrb[0].mxu0
    %v1777 = vadd.f32 0.0, %v1776
    %1778 = vdwg.mxu0
    %v1779 = vsel %vm404, %v1775, %v1777
    %v1780 = vadd.f32 %v1699, %v1779
    %v1781 = vxor.u32 %v1780, 2147483648
    %v1782 = vmul.f32 %v1781, 1.442695
    %v1783 = vpow.pop %v1782
    %v1784 = vadd.f32 %v1783, 1.0
    %v1785 = vrcp.pop %v1784
    %v1786 = vmul.f32 1.0, %v1785
    %v1787 = vtanh.pop %v1780
    %v1788 = vmul.f32 %v1786, 0.0
    %1790 = vrot.lane.b32.xlu0 %v1787, 64
    %v1791 = vpop.permute.xlu0 %1790
    %v1793 = vmul.f32 %v1786, %v1791
    %1795 = vrot.lane.b32.xlu0 %v1793, 32
    %v1796 = vpop.permute.xlu0 %1795
    %v1798 = vadd.f32 %v1788, %v1796
    %v1799 = vtanh.pop %v1798
    %1801 = vrot.lane.b32.xlu0 %v1799, 64
    %v1802 = vpop.permute.xlu0 %1801
    %v1804 = vmul.f32 %v1786, %v1802
    %v1805 = vsel %vm437, %v1804, 0.0
    %v1806 = vsel %vm437, %v1798, 0.0
    %v1808 = vrot.slane %v1671, 4
    %v1811 = vrot.slane %v1697, 4
    %v1813 = vsel %vm184, %v1808, %v1811
    %1815 = vrot.lane.b32.xlu0 %v1805, 32
    %v1816 = vpop.permute.xlu0 %1815
    %v1817 = vsel %vm209, %v1816, 0
    %1819 = vmatprep.subr.mxu0 %v1701
    %1820 = vmatpush1.msra.mxu0 %v1700
    %1821 = vmatprep.subr.mxu0 %v1703
    %1822 = vmatpush1.msra.mxu0 %v1702
    %1823 = vmatprep.subr.mxu0 %v1705
    %1824 = vmatpush1.msra.mxu0 %v1704
    %1825 = vmatprep.subr.mxu0 %v1707
    %1826 = vmatpush1.msra.mxu0 %v1706
    %1827 = vmatprep.subr.mxu0 0.0
    %1828 = vmatpush1.msra.mxu0 0.0
    %1829 = vmatprep.subr.mxu0 0.0
    %1830 = vmatpush1.msra.mxu0 0.0
    %1831 = vmatprep.subr.mxu0 0.0
    %1832 = vmatpush1.msra.mxu0 0.0
    %1833 = vmatprep.subr.mxu0 0.0
    %1834 = vmatpush1.msra.mxu0 0.0
    %1835 = vmatprep.subr.mxu0 0.0
    %1836 = vmatpush1.msra.mxu0 0.0
    %1837 = vmatprep.subr.mxu0 0.0
    %1838 = vmatpush1.msra.mxu0 0.0
    %1839 = vmatprep.subr.mxu0 0.0
    %1840 = vmatpush1.msra.mxu0 0.0
    %1841 = vmatprep.subr.mxu0 0.0
    %1842 = vmatpush1.msra.mxu0 0.0
    %1843 = vmatprep.subr.mxu0 0.0
    %1844 = vmatpush1.msra.mxu0 0.0
    %1845 = vmatprep.subr.mxu0 0.0
    %1846 = vmatpush1.msra.mxu0 0.0
    %1847 = vmatprep.subr.mxu0 0.0
    %1848 = vmatpush1.msra.mxu0 0.0
    %1849 = vmatprep.subr.mxu0 0.0
    %1850 = vmatpush1.msra.mxu0 0.0
    %1851 = vmatprep.subr.mxu0 0.0
    %1852 = vmatpush1.msra.mxu0 0.0
    %1853 = vmatprep.subr.mxu0 0.0
    %1854 = vmatpush1.msra.mxu0 0.0
    %1855 = vmatprep.subr.mxu0 0.0
    %1856 = vmatpush1.msra.mxu0 0.0
    %1857 = vmatprep.subr.mxu0 0.0
    %1858 = vmatpush1.msra.mxu0 0.0
    %1859 = vmatprep.subr.mxu0 0.0
    %1860 = vmatpush1.msra.mxu0 0.0
    %1861 = vmatprep.subr.mxu0 0.0
    %1862 = vmatpush1.msra.mxu0 0.0
    %1863 = vmatprep.subr.mxu0 0.0
    %1864 = vmatpush1.msra.mxu0 0.0
    %1865 = vmatprep.subr.mxu0 0.0
    %1866 = vmatpush1.msra.mxu0 0.0
    %1867 = vmatprep.subr.mxu0 0.0
    %1868 = vmatpush1.msra.mxu0 0.0
    %1869 = vmatprep.subr.mxu0 0.0
    %1870 = vmatpush1.msra.mxu0 0.0
    %1871 = vmatprep.subr.mxu0 0.0
    %1872 = vmatpush1.msra.mxu0 0.0
    %1873 = vmatprep.subr.mxu0 0.0
    %1874 = vmatpush1.msra.mxu0 0.0
    %1875 = vmatprep.subr.mxu0 0.0
    %1876 = vmatpush1.msra.mxu0 0.0
    %1877 = vmatprep.subr.mxu0 0.0
    %1878 = vmatpush1.msra.mxu0 0.0
    %1879 = vmatprep.subr.mxu0 0.0
    %1880 = vmatpush1.msra.mxu0 0.0
    %1881 = vmatprep.subr.mxu0 0.0
    %1882 = vmatpush1.msra.mxu0 0.0
    %1883 = vmatprep.mubr.f32.mxu0 0.0
    %1884 = vmatmul.mubr.f32.gmra.mrb[0].mxu0 %v1817
    %v1885 = vpop.f32.mrb[0].mxu0
    %v1886 = vadd.f32 0.0, %v1885
    %v1887 = vpop.f32.mrb[0].mxu0
    %v1888 = vadd.f32 0.0, %v1887
    %1889 = vdwg.mxu0
    %v1890 = vsel %vm404, %v1886, %v1888
    %v1891 = vadd.f32 %v1813, %v1890
    %v1892 = vxor.u32 %v1891, 2147483648
    %v1893 = vmul.f32 %v1892, 1.442695
    %v1894 = vpow.pop %v1893
    %v1895 = vadd.f32 %v1894, 1.0
    %v1896 = vrcp.pop %v1895
    %v1897 = vmul.f32 1.0, %v1896
    %v1898 = vtanh.pop %v1891
    %v1899 = vmul.f32 %v1897, %v1806
    %1901 = vrot.lane.b32.xlu0 %v1898, 64
    %v1902 = vpop.permute.xlu0 %1901
    %v1904 = vmul.f32 %v1897, %v1902
    %1906 = vrot.lane.b32.xlu0 %v1904, 32
    %v1907 = vpop.permute.xlu0 %1906
    %v1909 = vadd.f32 %v1899, %v1907
    %v1910 = vtanh.pop %v1909
    %1912 = vrot.lane.b32.xlu0 %v1910, 64
    %v1913 = vpop.permute.xlu0 %1912
    %v1915 = vmul.f32 %v1897, %v1913
    %v1916 = vsel %vm555, %v1915, %v1805
    %v1917 = vsel %vm555, %v1909, %v1806
    %v1918 = vsel %vm184, %v1677, %v1691
    %1920 = vrot.lane.b32.xlu0 %v1916, 32
    %v1921 = vpop.permute.xlu0 %1920
    %v1922 = vsel %vm209, %v1921, 0
    %1924 = vmatprep.subr.mxu0 %v1701
    %1925 = vmatpush1.msra.mxu0 %v1700
    %1926 = vmatprep.subr.mxu0 %v1703
    %1927 = vmatpush1.msra.mxu0 %v1702
    %1928 = vmatprep.subr.mxu0 %v1705
    %1929 = vmatpush1.msra.mxu0 %v1704
    %1930 = vmatprep.subr.mxu0 %v1707
    %1931 = vmatpush1.msra.mxu0 %v1706
    %1932 = vmatprep.subr.mxu0 0.0
    %1933 = vmatpush1.msra.mxu0 0.0
    %1934 = vmatprep.subr.mxu0 0.0
    %1935 = vmatpush1.msra.mxu0 0.0
    %1936 = vmatprep.subr.mxu0 0.0
    %1937 = vmatpush1.msra.mxu0 0.0
    %1938 = vmatprep.subr.mxu0 0.0
    %1939 = vmatpush1.msra.mxu0 0.0
    %1940 = vmatprep.subr.mxu0 0.0
    %1941 = vmatpush1.msra.mxu0 0.0
    %1942 = vmatprep.subr.mxu0 0.0
    %1943 = vmatpush1.msra.mxu0 0.0
    %1944 = vmatprep.subr.mxu0 0.0
    %1945 = vmatpush1.msra.mxu0 0.0
    %1946 = vmatprep.subr.mxu0 0.0
    %1947 = vmatpush1.msra.mxu0 0.0
    %1948 = vmatprep.subr.mxu0 0.0
    %1949 = vmatpush1.msra.mxu0 0.0
    %1950 = vmatprep.subr.mxu0 0.0
    %1951 = vmatpush1.msra.mxu0 0.0
    %1952 = vmatprep.subr.mxu0 0.0
    %1953 = vmatpush1.msra.mxu0 0.0
    %1954 = vmatprep.subr.mxu0 0.0
    %1955 = vmatpush1.msra.mxu0 0.0
    %1956 = vmatprep.subr.mxu0 0.0
    %1957 = vmatpush1.msra.mxu0 0.0
    %1958 = vmatprep.subr.mxu0 0.0
    %1959 = vmatpush1.msra.mxu0 0.0
    %1960 = vmatprep.subr.mxu0 0.0
    %1961 = vmatpush1.msra.mxu0 0.0
    %1962 = vmatprep.subr.mxu0 0.0
    %1963 = vmatpush1.msra.mxu0 0.0
    %1964 = vmatprep.subr.mxu0 0.0
    %1965 = vmatpush1.msra.mxu0 0.0
    %1966 = vmatprep.subr.mxu0 0.0
    %1967 = vmatpush1.msra.mxu0 0.0
    %1968 = vmatprep.subr.mxu0 0.0
    %1969 = vmatpush1.msra.mxu0 0.0
    %1970 = vmatprep.subr.mxu0 0.0
    %1971 = vmatpush1.msra.mxu0 0.0
    %1972 = vmatprep.subr.mxu0 0.0
    %1973 = vmatpush1.msra.mxu0 0.0
    %1974 = vmatprep.subr.mxu0 0.0
    %1975 = vmatpush1.msra.mxu0 0.0
    %1976 = vmatprep.subr.mxu0 0.0
    %1977 = vmatpush1.msra.mxu0 0.0
    %1978 = vmatprep.subr.mxu0 0.0
    %1979 = vmatpush1.msra.mxu0 0.0
    %1980 = vmatprep.subr.mxu0 0.0
    %1981 = vmatpush1.msra.mxu0 0.0
    %1982 = vmatprep.subr.mxu0 0.0
    %1983 = vmatpush1.msra.mxu0 0.0
    %1984 = vmatprep.subr.mxu0 0.0
    %1985 = vmatpush1.msra.mxu0 0.0
    %1986 = vmatprep.subr.mxu0 0.0
    %1987 = vmatpush1.msra.mxu0 0.0
    %1988 = vmatprep.mubr.f32.mxu0 0.0
    %1989 = vmatmul.mubr.f32.gmra.mrb[0].mxu0 %v1922
    %v1990 = vpop.f32.mrb[0].mxu0
    %v1991 = vadd.f32 0.0, %v1990
    %v1992 = vpop.f32.mrb[0].mxu0
    %v1993 = vadd.f32 0.0, %v1992
    %1994 = vdwg.mxu0
    %v1995 = vsel %vm404, %v1991, %v1993
    %v1996 = vadd.f32 %v1918, %v1995
    %v1997 = vxor.u32 %v1996, 2147483648
    %v1998 = vmul.f32 %v1997, 1.442695
    %v1999 = vpow.pop %v1998
    %v2000 = vadd.f32 %v1999, 1.0
    %v2001 = vrcp.pop %v2000
    %v2002 = vmul.f32 1.0, %v2001
    %v2003 = vtanh.pop %v1996
    %v2004 = vmul.f32 %v2002, %v1917
    %2006 = vrot.lane.b32.xlu0 %v2003, 64
    %v2007 = vpop.permute.xlu0 %2006
    %v2009 = vmul.f32 %v2002, %v2007
    %2011 = vrot.lane.b32.xlu0 %v2009, 32
    %v2012 = vpop.permute.xlu0 %2011
    %v2014 = vadd.f32 %v2004, %v2012
    %v2015 = vtanh.pop %v2014
    %2017 = vrot.lane.b32.xlu0 %v2015, 64
    %v2018 = vpop.permute.xlu0 %2017
    %v2020 = vmul.f32 %v2002, %v2018
    %v2021 = vsel %vm667, %v2020, %v1916
    %v2022 = vsel %vm667, %v2014, %v1917
    %v2024 = vrot.slane %v1677, 4
    %v2027 = vrot.slane %v1691, 4
    %v2029 = vsel %vm184, %v2024, %v2027
    %2031 = vrot.lane.b32.xlu0 %v2021, 32
    %v2032 = vpop.permute.xlu0 %2031
    %v2033 = vsel %vm209, %v2032, 0
    %2035 = vmatprep.subr.mxu0 %v1701
    %2036 = vmatpush1.msra.mxu0 %v1700
    %2037 = vmatprep.subr.mxu0 %v1703
    %2038 = vmatpush1.msra.mxu0 %v1702
    %2039 = vmatprep.subr.mxu0 %v1705
    %2040 = vmatpush1.msra.mxu0 %v1704
    %2041 = vmatprep.subr.mxu0 %v1707
    %2042 = vmatpush1.msra.mxu0 %v1706
    %2043 = vmatprep.subr.mxu0 0.0
    %2044 = vmatpush1.msra.mxu0 0.0
    %2045 = vmatprep.subr.mxu0 0.0
    %2046 = vmatpush1.msra.mxu0 0.0
    %2047 = vmatprep.subr.mxu0 0.0
    %2048 = vmatpush1.msra.mxu0 0.0
    %2049 = vmatprep.subr.mxu0 0.0
    %2050 = vmatpush1.msra.mxu0 0.0
    %2051 = vmatprep.subr.mxu0 0.0
    %2052 = vmatpush1.msra.mxu0 0.0
    %2053 = vmatprep.subr.mxu0 0.0
    %2054 = vmatpush1.msra.mxu0 0.0
    %2055 = vmatprep.subr.mxu0 0.0
    %2056 = vmatpush1.msra.mxu0 0.0
    %2057 = vmatprep.subr.mxu0 0.0
    %2058 = vmatpush1.msra.mxu0 0.0
    %2059 = vmatprep.subr.mxu0 0.0
    %2060 = vmatpush1.msra.mxu0 0.0
    %2061 = vmatprep.subr.mxu0 0.0
    %2062 = vmatpush1.msra.mxu0 0.0
    %2063 = vmatprep.subr.mxu0 0.0
    %2064 = vmatpush1.msra.mxu0 0.0
    %2065 = vmatprep.subr.mxu0 0.0
    %2066 = vmatpush1.msra.mxu0 0.0
    %2067 = vmatprep.subr.mxu0 0.0
    %2068 = vmatpush1.msra.mxu0 0.0
    %2069 = vmatprep.subr.mxu0 0.0
    %2070 = vmatpush1.msra.mxu0 0.0
    %2071 = vmatprep.subr.mxu0 0.0
    %2072 = vmatpush1.msra.mxu0 0.0
    %2073 = vmatprep.subr.mxu0 0.0
    %2074 = vmatpush1.msra.mxu0 0.0
    %2075 = vmatprep.subr.mxu0 0.0
    %2076 = vmatpush1.msra.mxu0 0.0
    %2077 = vmatprep.subr.mxu0 0.0
    %2078 = vmatpush1.msra.mxu0 0.0
    %2079 = vmatprep.subr.mxu0 0.0
    %2080 = vmatpush1.msra.mxu0 0.0
    %2081 = vmatprep.subr.mxu0 0.0
    %2082 = vmatpush1.msra.mxu0 0.0
    %2083 = vmatprep.subr.mxu0 0.0
    %2084 = vmatpush1.msra.mxu0 0.0
    %2085 = vmatprep.subr.mxu0 0.0
    %2086 = vmatpush1.msra.mxu0 0.0
    %2087 = vmatprep.subr.mxu0 0.0
    %2088 = vmatpush1.msra.mxu0 0.0
    %2089 = vmatprep.subr.mxu0 0.0
    %2090 = vmatpush1.msra.mxu0 0.0
    %2091 = vmatprep.subr.mxu0 0.0
    %2092 = vmatpush1.msra.mxu0 0.0
    %2093 = vmatprep.subr.mxu0 0.0
    %2094 = vmatpush1.msra.mxu0 0.0
    %2095 = vmatprep.subr.mxu0 0.0
    %2096 = vmatpush1.msra.mxu0 0.0
    %2097 = vmatprep.subr.mxu0 0.0
    %2098 = vmatpush1.msra.mxu0 0.0
    %2099 = vmatprep.mubr.f32.mxu0 0.0
    %2100 = vmatmul.mubr.f32.gmra.mrb[0].mxu0 %v2033
    %v2101 = vpop.f32.mrb[0].mxu0
    %v2102 = vadd.f32 0.0, %v2101
    %v2103 = vpop.f32.mrb[0].mxu0
    %v2104 = vadd.f32 0.0, %v2103
    %2105 = vdwg.mxu0
    %v2106 = vsel %vm404, %v2102, %v2104
    %v2107 = vadd.f32 %v2029, %v2106
    %v2108 = vxor.u32 %v2107, 2147483648
    %v2109 = vmul.f32 %v2108, 1.442695
    %v2110 = vpow.pop %v2109
    %v2111 = vadd.f32 %v2110, 1.0
    %v2112 = vrcp.pop %v2111
    %v2113 = vmul.f32 1.0, %v2112
    %v2114 = vtanh.pop %v2107
    %v2115 = vmul.f32 %v2113, %v2022
    %2117 = vrot.lane.b32.xlu0 %v2114, 64
    %v2118 = vpop.permute.xlu0 %2117
    %v2120 = vmul.f32 %v2113, %v2118
    %2122 = vrot.lane.b32.xlu0 %v2120, 32
    %v2123 = vpop.permute.xlu0 %2122
    %v2125 = vadd.f32 %v2115, %v2123
    %v2126 = vtanh.pop %v2125
    %2128 = vrot.lane.b32.xlu0 %v2126, 64
    %v2129 = vpop.permute.xlu0 %2128
    %v2131 = vmul.f32 %v2113, %v2129
    %v2132 = vsel %vm785, %v2131, %v2021
    %v2133 = vsel %vm785, %v2125, %v2022
    %v2134 = vsel %vm184, %v1683, %v1685
    %2136 = vrot.lane.b32.xlu0 %v2132, 32
    %v2137 = vpop.permute.xlu0 %2136
    %v2138 = vsel %vm209, %v2137, 0
    %2140 = vmatprep.subr.mxu0 %v1701
    %2141 = vmatpush1.msra.mxu0 %v1700
    %2142 = vmatprep.subr.mxu0 %v1703
    %2143 = vmatpush1.msra.mxu0 %v1702
    %2144 = vmatprep.subr.mxu0 %v1705
    %2145 = vmatpush1.msra.mxu0 %v1704
    %2146 = vmatprep.subr.mxu0 %v1707
    %2147 = vmatpush1.msra.mxu0 %v1706
    %2148 = vmatprep.subr.mxu0 0.0
    %2149 = vmatpush1.msra.mxu0 0.0
    %2150 = vmatprep.subr.mxu0 0.0
    %2151 = vmatpush1.msra.mxu0 0.0
    %2152 = vmatprep.subr.mxu0 0.0
    %2153 = vmatpush1.msra.mxu0 0.0
    %2154 = vmatprep.subr.mxu0 0.0
    %2155 = vmatpush1.msra.mxu0 0.0
    %2156 = vmatprep.subr.mxu0 0.0
    %2157 = vmatpush1.msra.mxu0 0.0
    %2158 = vmatprep.subr.mxu0 0.0
    %2159 = vmatpush1.msra.mxu0 0.0
    %2160 = vmatprep.subr.mxu0 0.0
    %2161 = vmatpush1.msra.mxu0 0.0
    %2162 = vmatprep.subr.mxu0 0.0
    %2163 = vmatpush1.msra.mxu0 0.0
    %2164 = vmatprep.subr.mxu0 0.0
    %2165 = vmatpush1.msra.mxu0 0.0
    %2166 = vmatprep.subr.mxu0 0.0
    %2167 = vmatpush1.msra.mxu0 0.0
    %2168 = vmatprep.subr.mxu0 0.0
    %2169 = vmatpush1.msra.mxu0 0.0
    %2170 = vmatprep.subr.mxu0 0.0
    %2171 = vmatpush1.msra.mxu0 0.0
    %2172 = vmatprep.subr.mxu0 0.0
    %2173 = vmatpush1.msra.mxu0 0.0
    %2174 = vmatprep.subr.mxu0 0.0
    %2175 = vmatpush1.msra.mxu0 0.0
    %2176 = vmatprep.subr.mxu0 0.0
    %2177 = vmatpush1.msra.mxu0 0.0
    %2178 = vmatprep.subr.mxu0 0.0
    %2179 = vmatpush1.msra.mxu0 0.0
    %2180 = vmatprep.subr.mxu0 0.0
    %2181 = vmatpush1.msra.mxu0 0.0
    %2182 = vmatprep.subr.mxu0 0.0
    %2183 = vmatpush1.msra.mxu0 0.0
    %2184 = vmatprep.subr.mxu0 0.0
    %2185 = vmatpush1.msra.mxu0 0.0
    %2186 = vmatprep.subr.mxu0 0.0
    %2187 = vmatpush1.msra.mxu0 0.0
    %2188 = vmatprep.subr.mxu0 0.0
    %2189 = vmatpush1.msra.mxu0 0.0
    %2190 = vmatprep.subr.mxu0 0.0
    %2191 = vmatpush1.msra.mxu0 0.0
    %2192 = vmatprep.subr.mxu0 0.0
    %2193 = vmatpush1.msra.mxu0 0.0
    %2194 = vmatprep.subr.mxu0 0.0
    %2195 = vmatpush1.msra.mxu0 0.0
    %2196 = vmatprep.subr.mxu0 0.0
    %2197 = vmatpush1.msra.mxu0 0.0
    %2198 = vmatprep.subr.mxu0 0.0
    %2199 = vmatpush1.msra.mxu0 0.0
    %2200 = vmatprep.subr.mxu0 0.0
    %2201 = vmatpush1.msra.mxu0 0.0
    %2202 = vmatprep.subr.mxu0 0.0
    %2203 = vmatpush1.msra.mxu0 0.0
    %2204 = vmatprep.mubr.f32.mxu0 0.0
    %2205 = vmatmul.mubr.f32.gmra.mrb[0].mxu0 %v2138
    %v2206 = vpop.f32.mrb[0].mxu0
    %v2207 = vadd.f32 0.0, %v2206
    %v2208 = vpop.f32.mrb[0].mxu0
    %v2209 = vadd.f32 0.0, %v2208
    %2210 = vdwg.mxu0
    %v2211 = vsel %vm404, %v2207, %v2209
    %v2212 = vadd.f32 %v2134, %v2211
    %v2213 = vxor.u32 %v2212, 2147483648
    %v2214 = vmul.f32 %v2213, 1.442695
    %v2215 = vpow.pop %v2214
    %v2216 = vadd.f32 %v2215, 1.0
    %v2217 = vrcp.pop %v2216
    %v2218 = vmul.f32 1.0, %v2217
    %v2219 = vtanh.pop %v2212
    %v2220 = vmul.f32 %v2218, %v2133
    %2222 = vrot.lane.b32.xlu0 %v2219, 64
    %v2223 = vpop.permute.xlu0 %2222
    %v2225 = vmul.f32 %v2218, %v2223
    %2227 = vrot.lane.b32.xlu0 %v2225, 32
    %v2228 = vpop.permute.xlu0 %2227
    %v2230 = vadd.f32 %v2220, %v2228
    %v2231 = vtanh.pop %v2230
    %2233 = vrot.lane.b32.xlu0 %v2231, 64
    %v2234 = vpop.permute.xlu0 %2233
    %v2236 = vmul.f32 %v2218, %v2234
    %v2237 = vsel %vm897, %v2236, %v2132
    %v2238 = vsel %vm897, %v2230, %v2133
    %v2240 = vrot.slane %v1683, 4
    %v2243 = vrot.slane %v1685, 4
    %v2245 = vsel %vm184, %v2240, %v2243
    %2247 = vrot.lane.b32.xlu0 %v2237, 32
    %v2248 = vpop.permute.xlu0 %2247
    %v2249 = vsel %vm209, %v2248, 0
    %2251 = vmatprep.subr.mxu0 %v1701
    %2252 = vmatpush1.msra.mxu0 %v1700
    %2253 = vmatprep.subr.mxu0 %v1703
    %2254 = vmatpush1.msra.mxu0 %v1702
    %2255 = vmatprep.subr.mxu0 %v1705
    %2256 = vmatpush1.msra.mxu0 %v1704
    %2257 = vmatprep.subr.mxu0 %v1707
    %2258 = vmatpush1.msra.mxu0 %v1706
    %2259 = vmatprep.subr.mxu0 0.0
    %2260 = vmatpush1.msra.mxu0 0.0
    %2261 = vmatprep.subr.mxu0 0.0
    %2262 = vmatpush1.msra.mxu0 0.0
    %2263 = vmatprep.subr.mxu0 0.0
    %2264 = vmatpush1.msra.mxu0 0.0
    %2265 = vmatprep.subr.mxu0 0.0
    %2266 = vmatpush1.msra.mxu0 0.0
    %2267 = vmatprep.subr.mxu0 0.0
    %2268 = vmatpush1.msra.mxu0 0.0
    %2269 = vmatprep.subr.mxu0 0.0
    %2270 = vmatpush1.msra.mxu0 0.0
    %2271 = vmatprep.subr.mxu0 0.0
    %2272 = vmatpush1.msra.mxu0 0.0
    %2273 = vmatprep.subr.mxu0 0.0
    %2274 = vmatpush1.msra.mxu0 0.0
    %2275 = vmatprep.subr.mxu0 0.0
    %2276 = vmatpush1.msra.mxu0 0.0
    %2277 = vmatprep.subr.mxu0 0.0
    %2278 = vmatpush1.msra.mxu0 0.0
    %2279 = vmatprep.subr.mxu0 0.0
    %2280 = vmatpush1.msra.mxu0 0.0
    %2281 = vmatprep.subr.mxu0 0.0
    %2282 = vmatpush1.msra.mxu0 0.0
    %2283 = vmatprep.subr.mxu0 0.0
    %2284 = vmatpush1.msra.mxu0 0.0
    %2285 = vmatprep.subr.mxu0 0.0
    %2286 = vmatpush1.msra.mxu0 0.0
    %2287 = vmatprep.subr.mxu0 0.0
    %2288 = vmatpush1.msra.mxu0 0.0
    %2289 = vmatprep.subr.mxu0 0.0
    %2290 = vmatpush1.msra.mxu0 0.0
    %2291 = vmatprep.subr.mxu0 0.0
    %2292 = vmatpush1.msra.mxu0 0.0
    %2293 = vmatprep.subr.mxu0 0.0
    %2294 = vmatpush1.msra.mxu0 0.0
    %2295 = vmatprep.subr.mxu0 0.0
    %2296 = vmatpush1.msra.mxu0 0.0
    %2297 = vmatprep.subr.mxu0 0.0
    %2298 = vmatpush1.msra.mxu0 0.0
    %2299 = vmatprep.subr.mxu0 0.0
    %2300 = vmatpush1.msra.mxu0 0.0
    %2301 = vmatprep.subr.mxu0 0.0
    %2302 = vmatpush1.msra.mxu0 0.0
    %2303 = vmatprep.subr.mxu0 0.0
    %2304 = vmatpush1.msra.mxu0 0.0
    %2305 = vmatprep.subr.mxu0 0.0
    %2306 = vmatpush1.msra.mxu0 0.0
    %2307 = vmatprep.subr.mxu0 0.0
    %2308 = vmatpush1.msra.mxu0 0.0
    %2309 = vmatprep.subr.mxu0 0.0
    %2310 = vmatpush1.msra.mxu0 0.0
    %2311 = vmatprep.subr.mxu0 0.0
    %2312 = vmatpush1.msra.mxu0 0.0
    %2313 = vmatprep.subr.mxu0 0.0
    %2314 = vmatpush1.msra.mxu0 0.0
    %2315 = vmatprep.mubr.f32.mxu0 0.0
    %2316 = vmatmul.mubr.f32.gmra.mrb[0].mxu0 %v2249
    %v2317 = vpop.f32.mrb[0].mxu0
    %v2318 = vadd.f32 0.0, %v2317
    %v2319 = vpop.f32.mrb[0].mxu0
    %v2320 = vadd.f32 0.0, %v2319
    %2321 = vdwg.mxu0
    %v2322 = vsel %vm404, %v2318, %v2320
    %v2323 = vadd.f32 %v2245, %v2322
    %v2324 = vxor.u32 %v2323, 2147483648
    %v2325 = vmul.f32 %v2324, 1.442695
    %v2326 = vpow.pop %v2325
    %v2327 = vadd.f32 %v2326, 1.0
    %v2328 = vrcp.pop %v2327
    %v2329 = vmul.f32 1.0, %v2328
    %v2330 = vtanh.pop %v2323
    %v2331 = vmul.f32 %v2329, %v2238
    %2333 = vrot.lane.b32.xlu0 %v2330, 64
    %v2334 = vpop.permute.xlu0 %2333
    %v2336 = vmul.f32 %v2329, %v2334
    %2338 = vrot.lane.b32.xlu0 %v2336, 32
    %v2339 = vpop.permute.xlu0 %2338
    %v2341 = vadd.f32 %v2331, %v2339
    %v2342 = vtanh.pop %v2341
    %2344 = vrot.lane.b32.xlu0 %v2342, 64
    %v2345 = vpop.permute.xlu0 %2344
    %v2347 = vmul.f32 %v2329, %v2345
    %v2348 = vsel %vm1015, %v2347, %v2237
    %v2349 = vsel %vm1015, %v2341, %v2238
    %v2350 = vsel %vm184, %v1689, %v1679
    %2352 = vrot.lane.b32.xlu0 %v2348, 32
    %v2353 = vpop.permute.xlu0 %2352
    %v2354 = vsel %vm209, %v2353, 0
    %2356 = vmatprep.subr.mxu0 %v1701
    %2357 = vmatpush1.msra.mxu0 %v1700
    %2358 = vmatprep.subr.mxu0 %v1703
    %2359 = vmatpush1.msra.mxu0 %v1702
    %2360 = vmatprep.subr.mxu0 %v1705
    %2361 = vmatpush1.msra.mxu0 %v1704
    %2362 = vmatprep.subr.mxu0 %v1707
    %2363 = vmatpush1.msra.mxu0 %v1706
    %2364 = vmatprep.subr.mxu0 0.0
    %2365 = vmatpush1.msra.mxu0 0.0
    %2366 = vmatprep.subr.mxu0 0.0
    %2367 = vmatpush1.msra.mxu0 0.0
    %2368 = vmatprep.subr.mxu0 0.0
    %2369 = vmatpush1.msra.mxu0 0.0
    %2370 = vmatprep.subr.mxu0 0.0
    %2371 = vmatpush1.msra.mxu0 0.0
    %2372 = vmatprep.subr.mxu0 0.0
    %2373 = vmatpush1.msra.mxu0 0.0
    %2374 = vmatprep.subr.mxu0 0.0
    %2375 = vmatpush1.msra.mxu0 0.0
    %2376 = vmatprep.subr.mxu0 0.0
    %2377 = vmatpush1.msra.mxu0 0.0
    %2378 = vmatprep.subr.mxu0 0.0
    %2379 = vmatpush1.msra.mxu0 0.0
    %2380 = vmatprep.subr.mxu0 0.0
    %2381 = vmatpush1.msra.mxu0 0.0
    %2382 = vmatprep.subr.mxu0 0.0
    %2383 = vmatpush1.msra.mxu0 0.0
    %2384 = vmatprep.subr.mxu0 0.0
    %2385 = vmatpush1.msra.mxu0 0.0
    %2386 = vmatprep.subr.mxu0 0.0
    %2387 = vmatpush1.msra.mxu0 0.0
    %2388 = vmatprep.subr.mxu0 0.0
    %2389 = vmatpush1.msra.mxu0 0.0
    %2390 = vmatprep.subr.mxu0 0.0
    %2391 = vmatpush1.msra.mxu0 0.0
    %2392 = vmatprep.subr.mxu0 0.0
    %2393 = vmatpush1.msra.mxu0 0.0
    %2394 = vmatprep.subr.mxu0 0.0
    %2395 = vmatpush1.msra.mxu0 0.0
    %2396 = vmatprep.subr.mxu0 0.0
    %2397 = vmatpush1.msra.mxu0 0.0
    %2398 = vmatprep.subr.mxu0 0.0
    %2399 = vmatpush1.msra.mxu0 0.0
    %2400 = vmatprep.subr.mxu0 0.0
    %2401 = vmatpush1.msra.mxu0 0.0
    %2402 = vmatprep.subr.mxu0 0.0
    %2403 = vmatpush1.msra.mxu0 0.0
    %2404 = vmatprep.subr.mxu0 0.0
    %2405 = vmatpush1.msra.mxu0 0.0
    %2406 = vmatprep.subr.mxu0 0.0
    %2407 = vmatpush1.msra.mxu0 0.0
    %2408 = vmatprep.subr.mxu0 0.0
    %2409 = vmatpush1.msra.mxu0 0.0
    %2410 = vmatprep.subr.mxu0 0.0
    %2411 = vmatpush1.msra.mxu0 0.0
    %2412 = vmatprep.subr.mxu0 0.0
    %2413 = vmatpush1.msra.mxu0 0.0
    %2414 = vmatprep.subr.mxu0 0.0
    %2415 = vmatpush1.msra.mxu0 0.0
    %2416 = vmatprep.subr.mxu0 0.0
    %2417 = vmatpush1.msra.mxu0 0.0
    %2418 = vmatprep.subr.mxu0 0.0
    %2419 = vmatpush1.msra.mxu0 0.0
    %2420 = vmatprep.mubr.f32.mxu0 0.0
    %2421 = vmatmul.mubr.f32.gmra.mrb[0].mxu0 %v2354
    %v2422 = vpop.f32.mrb[0].mxu0
    %v2423 = vadd.f32 0.0, %v2422
    %v2424 = vpop.f32.mrb[0].mxu0
    %v2425 = vadd.f32 0.0, %v2424
    %2426 = vdwg.mxu0
    %v2427 = vsel %vm404, %v2423, %v2425
    %v2428 = vadd.f32 %v2350, %v2427
    %v2429 = vxor.u32 %v2428, 2147483648
    %v2430 = vmul.f32 %v2429, 1.442695
    %v2431 = vpow.pop %v2430
    %v2432 = vadd.f32 %v2431, 1.0
    %v2433 = vrcp.pop %v2432
    %v2434 = vmul.f32 1.0, %v2433
    %v2435 = vtanh.pop %v2428
    %v2436 = vmul.f32 %v2434, %v2349
    %2438 = vrot.lane.b32.xlu0 %v2435, 64
    %v2439 = vpop.permute.xlu0 %2438
    %v2441 = vmul.f32 %v2434, %v2439
    %2443 = vrot.lane.b32.xlu0 %v2441, 32
    %v2444 = vpop.permute.xlu0 %2443
    %v2446 = vadd.f32 %v2436, %v2444
    %v2447 = vtanh.pop %v2446
    %2449 = vrot.lane.b32.xlu0 %v2447, 64
    %v2450 = vpop.permute.xlu0 %2449
    %v2452 = vmul.f32 %v2434, %v2450
    %v2453 = vsel %vm1127, %v2452, %v2348
    %v2454 = vsel %vm1127, %v2446, %v2349
    %v2456 = vrot.slane %v1689, 4
    %v2459 = vrot.slane %v1679, 4
    %v2461 = vsel %vm184, %v2456, %v2459
    %2463 = vrot.lane.b32.xlu0 %v2453, 32
    %v2464 = vpop.permute.xlu0 %2463
    %v2465 = vsel %vm209, %v2464, 0
    %2467 = vmatprep.subr.mxu0 %v1701
    %2468 = vmatpush1.msra.mxu0 %v1700
    %2469 = vmatprep.subr.mxu0 %v1703
    %2470 = vmatpush1.msra.mxu0 %v1702
    %2471 = vmatprep.subr.mxu0 %v1705
    %2472 = vmatpush1.msra.mxu0 %v1704
    %2473 = vmatprep.subr.mxu0 %v1707
    %2474 = vmatpush1.msra.mxu0 %v1706
    %2475 = vmatprep.subr.mxu0 0.0
    %2476 = vmatpush1.msra.mxu0 0.0
    %2477 = vmatprep.subr.mxu0 0.0
    %2478 = vmatpush1.msra.mxu0 0.0
    %2479 = vmatprep.subr.mxu0 0.0
    %2480 = vmatpush1.msra.mxu0 0.0
    %2481 = vmatprep.subr.mxu0 0.0
    %2482 = vmatpush1.msra.mxu0 0.0
    %2483 = vmatprep.subr.mxu0 0.0
    %2484 = vmatpush1.msra.mxu0 0.0
    %2485 = vmatprep.subr.mxu0 0.0
    %2486 = vmatpush1.msra.mxu0 0.0
    %2487 = vmatprep.subr.mxu0 0.0
    %2488 = vmatpush1.msra.mxu0 0.0
    %2489 = vmatprep.subr.mxu0 0.0
    %2490 = vmatpush1.msra.mxu0 0.0
    %2491 = vmatprep.subr.mxu0 0.0
    %2492 = vmatpush1.msra.mxu0 0.0
    %2493 = vmatprep.subr.mxu0 0.0
    %2494 = vmatpush1.msra.mxu0 0.0
    %2495 = vmatprep.subr.mxu0 0.0
    %2496 = vmatpush1.msra.mxu0 0.0
    %2497 = vmatprep.subr.mxu0 0.0
    %2498 = vmatpush1.msra.mxu0 0.0
    %2499 = vmatprep.subr.mxu0 0.0
    %2500 = vmatpush1.msra.mxu0 0.0
    %2501 = vmatprep.subr.mxu0 0.0
    %2502 = vmatpush1.msra.mxu0 0.0
    %2503 = vmatprep.subr.mxu0 0.0
    %2504 = vmatpush1.msra.mxu0 0.0
    %2505 = vmatprep.subr.mxu0 0.0
    %2506 = vmatpush1.msra.mxu0 0.0
    %2507 = vmatprep.subr.mxu0 0.0
    %2508 = vmatpush1.msra.mxu0 0.0
    %2509 = vmatprep.subr.mxu0 0.0
    %2510 = vmatpush1.msra.mxu0 0.0
    %2511 = vmatprep.subr.mxu0 0.0
    %2512 = vmatpush1.msra.mxu0 0.0
    %2513 = vmatprep.subr.mxu0 0.0
    %2514 = vmatpush1.msra.mxu0 0.0
    %2515 = vmatprep.subr.mxu0 0.0
    %2516 = vmatpush1.msra.mxu0 0.0
    %2517 = vmatprep.subr.mxu0 0.0
    %2518 = vmatpush1.msra.mxu0 0.0
    %2519 = vmatprep.subr.mxu0 0.0
    %2520 = vmatpush1.msra.mxu0 0.0
    %2521 = vmatprep.subr.mxu0 0.0
    %2522 = vmatpush1.msra.mxu0 0.0
    %2523 = vmatprep.subr.mxu0 0.0
    %2524 = vmatpush1.msra.mxu0 0.0
    %2525 = vmatprep.subr.mxu0 0.0
    %2526 = vmatpush1.msra.mxu0 0.0
    %2527 = vmatprep.subr.mxu0 0.0
    %2528 = vmatpush1.msra.mxu0 0.0
    %2529 = vmatprep.subr.mxu0 0.0
    %2530 = vmatpush1.msra.mxu0 0.0
    %2531 = vmatprep.mubr.f32.mxu0 0.0
    %2532 = vmatmul.mubr.f32.gmra.mrb[0].mxu0 %v2465
    %v2533 = vpop.f32.mrb[0].mxu0
    %v2534 = vadd.f32 0.0, %v2533
    %v2535 = vpop.f32.mrb[0].mxu0
    %v2536 = vadd.f32 0.0, %v2535
    %2537 = vdwg.mxu0
    %v2538 = vsel %vm404, %v2534, %v2536
    %v2539 = vadd.f32 %v2461, %v2538
    %v2540 = vxor.u32 %v2539, 2147483648
    %v2541 = vmul.f32 %v2540, 1.442695
    %v2542 = vpow.pop %v2541
    %v2543 = vadd.f32 %v2542, 1.0
    %v2544 = vrcp.pop %v2543
    %v2545 = vmul.f32 1.0, %v2544
    %v2546 = vtanh.pop %v2539
    %v2547 = vmul.f32 %v2545, %v2454
    %2549 = vrot.lane.b32.xlu0 %v2546, 64
    %v2550 = vpop.permute.xlu0 %2549
    %v2552 = vmul.f32 %v2545, %v2550
    %2554 = vrot.lane.b32.xlu0 %v2552, 32
    %v2555 = vpop.permute.xlu0 %2554
    %v2557 = vadd.f32 %v2547, %v2555
    %v2558 = vtanh.pop %v2557
    %2560 = vrot.lane.b32.xlu0 %v2558, 64
    %v2561 = vpop.permute.xlu0 %2560
    %v2563 = vmul.f32 %v2545, %v2561
    %v2564 = vsel %vm1245, %v2563, %v2453
    %v2565 = vsel %vm1245, %v2557, %v2454
    %v2566 = vsel %vm184, %v1695, %v1673
    %2568 = vrot.lane.b32.xlu0 %v2564, 32
    %v2569 = vpop.permute.xlu0 %2568
    %v2570 = vsel %vm209, %v2569, 0
    %2572 = vmatprep.subr.mxu0 %v1701
    %2573 = vmatpush1.msra.mxu0 %v1700
    %2574 = vmatprep.subr.mxu0 %v1703
    %2575 = vmatpush1.msra.mxu0 %v1702
    %2576 = vmatprep.subr.mxu0 %v1705
    %2577 = vmatpush1.msra.mxu0 %v1704
    %2578 = vmatprep.subr.mxu0 %v1707
    %2579 = vmatpush1.msra.mxu0 %v1706
    %2580 = vmatprep.subr.mxu0 0.0
    %2581 = vmatpush1.msra.mxu0 0.0
    %2582 = vmatprep.subr.mxu0 0.0
    %2583 = vmatpush1.msra.mxu0 0.0
    %2584 = vmatprep.subr.mxu0 0.0
    %2585 = vmatpush1.msra.mxu0 0.0
    %2586 = vmatprep.subr.mxu0 0.0
    %2587 = vmatpush1.msra.mxu0 0.0
    %2588 = vmatprep.subr.mxu0 0.0
    %2589 = vmatpush1.msra.mxu0 0.0
    %2590 = vmatprep.subr.mxu0 0.0
    %2591 = vmatpush1.msra.mxu0 0.0
    %2592 = vmatprep.subr.mxu0 0.0
    %2593 = vmatpush1.msra.mxu0 0.0
    %2594 = vmatprep.subr.mxu0 0.0
    %2595 = vmatpush1.msra.mxu0 0.0
    %2596 = vmatprep.subr.mxu0 0.0
    %2597 = vmatpush1.msra.mxu0 0.0
    %2598 = vmatprep.subr.mxu0 0.0
    %2599 = vmatpush1.msra.mxu0 0.0
    %2600 = vmatprep.subr.mxu0 0.0
    %2601 = vmatpush1.msra.mxu0 0.0
    %2602 = vmatprep.subr.mxu0 0.0
    %2603 = vmatpush1.msra.mxu0 0.0
    %2604 = vmatprep.subr.mxu0 0.0
    %2605 = vmatpush1.msra.mxu0 0.0
    %2606 = vmatprep.subr.mxu0 0.0
    %2607 = vmatpush1.msra.mxu0 0.0
    %2608 = vmatprep.subr.mxu0 0.0
    %2609 = vmatpush1.msra.mxu0 0.0
    %2610 = vmatprep.subr.mxu0 0.0
    %2611 = vmatpush1.msra.mxu0 0.0
    %2612 = vmatprep.subr.mxu0 0.0
    %2613 = vmatpush1.msra.mxu0 0.0
    %2614 = vmatprep.subr.mxu0 0.0
    %2615 = vmatpush1.msra.mxu0 0.0
    %2616 = vmatprep.subr.mxu0 0.0
    %2617 = vmatpush1.msra.mxu0 0.0
    %2618 = vmatprep.subr.mxu0 0.0
    %2619 = vmatpush1.msra.mxu0 0.0
    %2620 = vmatprep.subr.mxu0 0.0
    %2621 = vmatpush1.msra.mxu0 0.0
    %2622 = vmatprep.subr.mxu0 0.0
    %2623 = vmatpush1.msra.mxu0 0.0
    %2624 = vmatprep.subr.mxu0 0.0
    %2625 = vmatpush1.msra.mxu0 0.0
    %2626 = vmatprep.subr.mxu0 0.0
    %2627 = vmatpush1.msra.mxu0 0.0
    %2628 = vmatprep.subr.mxu0 0.0
    %2629 = vmatpush1.msra.mxu0 0.0
    %2630 = vmatprep.subr.mxu0 0.0
    %2631 = vmatpush1.msra.mxu0 0.0
    %2632 = vmatprep.subr.mxu0 0.0
    %2633 = vmatpush1.msra.mxu0 0.0
    %2634 = vmatprep.subr.mxu0 0.0
    %2635 = vmatpush1.msra.mxu0 0.0
    %2636 = vmatprep.mubr.f32.mxu0 0.0
    %2637 = vmatmul.mubr.f32.gmra.mrb[0].mxu0 %v2570
    %v2638 = vpop.f32.mrb[0].mxu0
    %v2639 = vadd.f32 0.0, %v2638
    %v2640 = vpop.f32.mrb[0].mxu0
    %v2641 = vadd.f32 0.0, %v2640
    %2642 = vdwg.mxu0
    %v2643 = vsel %vm404, %v2639, %v2641
    %v2644 = vadd.f32 %v2566, %v2643
    %v2645 = vxor.u32 %v2644, 2147483648
    %v2646 = vmul.f32 %v2645, 1.442695
    %v2647 = vpow.pop %v2646
    %v2648 = vadd.f32 %v2647, 1.0
    %v2649 = vrcp.pop %v2648
    %v2650 = vmul.f32 1.0, %v2649
    %v2651 = vtanh.pop %v2644
    %v2652 = vmul.f32 %v2650, %v2565
    %2654 = vrot.lane.b32.xlu0 %v2651, 64
    %v2655 = vpop.permute.xlu0 %2654
    %v2657 = vmul.f32 %v2650, %v2655
    %2659 = vrot.lane.b32.xlu0 %v2657, 32
    %v2660 = vpop.permute.xlu0 %2659
    %v2662 = vadd.f32 %v2652, %v2660
    %v2663 = vtanh.pop %v2662
    %2665 = vrot.lane.b32.xlu0 %v2663, 64
    %v2666 = vpop.permute.xlu0 %2665
    %v2668 = vmul.f32 %v2650, %v2666
    %v2669 = vsel %vm1357, %v2668, %v2564
    %v2670 = vsel %vm1357, %v2662, %v2565
    %v2672 = vrot.slane %v1695, 4
    %v2675 = vrot.slane %v1673, 4
    %v2677 = vsel %vm184, %v2672, %v2675
    %2679 = vrot.lane.b32.xlu0 %v2669, 32
    %v2680 = vpop.permute.xlu0 %2679
    %v2681 = vsel %vm209, %v2680, 0
    %2683 = vmatprep.subr.mxu0 %v1701
    %2684 = vmatpush1.msra.mxu0 %v1700
    %2685 = vmatprep.subr.mxu0 %v1703
    %2686 = vmatpush1.msra.mxu0 %v1702
    %2687 = vmatprep.subr.mxu0 %v1705
    %2688 = vmatpush1.msra.mxu0 %v1704
    %2689 = vmatprep.subr.mxu0 %v1707
    %2690 = vmatpush1.msra.mxu0 %v1706
    %2691 = vmatprep.subr.mxu0 0.0
    %2692 = vmatpush1.msra.mxu0 0.0
    %2693 = vmatprep.subr.mxu0 0.0
    %2694 = vmatpush1.msra.mxu0 0.0
    %2695 = vmatprep.subr.mxu0 0.0
    %2696 = vmatpush1.msra.mxu0 0.0
    %2697 = vmatprep.subr.mxu0 0.0
    %2698 = vmatpush1.msra.mxu0 0.0
    %2699 = vmatprep.subr.mxu0 0.0
    %2700 = vmatpush1.msra.mxu0 0.0
    %2701 = vmatprep.subr.mxu0 0.0
    %2702 = vmatpush1.msra.mxu0 0.0
    %2703 = vmatprep.subr.mxu0 0.0
    %2704 = vmatpush1.msra.mxu0 0.0
    %2705 = vmatprep.subr.mxu0 0.0
    %2706 = vmatpush1.msra.mxu0 0.0
    %2707 = vmatprep.subr.mxu0 0.0
    %2708 = vmatpush1.msra.mxu0 0.0
    %2709 = vmatprep.subr.mxu0 0.0
    %2710 = vmatpush1.msra.mxu0 0.0
    %2711 = vmatprep.subr.mxu0 0.0
    %2712 = vmatpush1.msra.mxu0 0.0
    %2713 = vmatprep.subr.mxu0 0.0
    %2714 = vmatpush1.msra.mxu0 0.0
    %2715 = vmatprep.subr.mxu0 0.0
    %2716 = vmatpush1.msra.mxu0 0.0
    %2717 = vmatprep.subr.mxu0 0.0
    %2718 = vmatpush1.msra.mxu0 0.0
    %2719 = vmatprep.subr.mxu0 0.0
    %2720 = vmatpush1.msra.mxu0 0.0
    %2721 = vmatprep.subr.mxu0 0.0
    %2722 = vmatpush1.msra.mxu0 0.0
    %2723 = vmatprep.subr.mxu0 0.0
    %2724 = vmatpush1.msra.mxu0 0.0
    %2725 = vmatprep.subr.mxu0 0.0
    %2726 = vmatpush1.msra.mxu0 0.0
    %2727 = vmatprep.subr.mxu0 0.0
    %2728 = vmatpush1.msra.mxu0 0.0
    %2729 = vmatprep.subr.mxu0 0.0
    %2730 = vmatpush1.msra.mxu0 0.0
    %2731 = vmatprep.subr.mxu0 0.0
    %2732 = vmatpush1.msra.mxu0 0.0
    %2733 = vmatprep.subr.mxu0 0.0
    %2734 = vmatpush1.msra.mxu0 0.0
    %2735 = vmatprep.subr.mxu0 0.0
    %2736 = vmatpush1.msra.mxu0 0.0
    %2737 = vmatprep.subr.mxu0 0.0
    %2738 = vmatpush1.msra.mxu0 0.0
    %2739 = vmatprep.subr.mxu0 0.0
    %2740 = vmatpush1.msra.mxu0 0.0
    %2741 = vmatprep.subr.mxu0 0.0
    %2742 = vmatpush1.msra.mxu0 0.0
    %2743 = vmatprep.subr.mxu0 0.0
    %2744 = vmatpush1.msra.mxu0 0.0
    %2745 = vmatprep.subr.mxu0 0.0
    %2746 = vmatpush1.msra.mxu0 0.0
    %2747 = vmatprep.mubr.f32.mxu0 0.0
    %2748 = vmatmul.mubr.f32.gmra.mrb[0].mxu0 %v2681
    %v2749 = vpop.f32.mrb[0].mxu0
    %v2750 = vadd.f32 0.0, %v2749
    %v2751 = vpop.f32.mrb[0].mxu0
    %v2752 = vadd.f32 0.0, %v2751
    %2753 = vdwg.mxu0
    %v2754 = vsel %vm404, %v2750, %v2752
    %v2755 = vadd.f32 %v2677, %v2754
    %v2756 = vxor.u32 %v2755, 2147483648
    %v2757 = vmul.f32 %v2756, 1.442695
    %v2758 = vpow.pop %v2757
    %v2759 = vadd.f32 %v2758, 1.0
    %v2760 = vrcp.pop %v2759
    %v2761 = vmul.f32 1.0, %v2760
    %v2762 = vtanh.pop %v2755
    %v2763 = vmul.f32 %v2761, %v2670
    %2765 = vrot.lane.b32.xlu0 %v2762, 64
    %v2766 = vpop.permute.xlu0 %2765
    %v2768 = vmul.f32 %v2761, %v2766
    %2770 = vrot.lane.b32.xlu0 %v2768, 32
    %v2771 = vpop.permute.xlu0 %2770
    %v2773 = vadd.f32 %v2763, %v2771
    %v2774 = vtanh.pop %v2773
    %2776 = vrot.lane.b32.xlu0 %v2774, 64
    %v2777 = vpop.permute.xlu0 %2776
    %v2779 = vmul.f32 %v2761, %v2777
    %v2780 = vsel %vm1475, %v2779, %v2669
    %2782 = vrot.lane.b32.xlu0 %v2780, 96
    %v2783 = vpop.permute.xlu0 %2782
    %v2785 = vrot.slane %v2780, 4
    %v2787 = vsel %vm209, %v1533, %v1481
    %v2788 = vsel %vm1588, %v2787, %v2783
    %vm2789 = vcmask 785408
    %v2790 = vsel %vm2789, %v2788, %v2785
    %v2791 = vld [vmem:[%s9] sm:$0xff]
    %v2792 = vld [vmem:[%s9 + $0x8] sm:$0xff]
    %v2793 = vld [vmem:[%s9 + $0x10] sm:$0xff]
    %v2794 = vld [vmem:[%s9 + $0x18] sm:$0xff]
    %v2795 = vld [vmem:[%s9 + $0x20] sm:$0xff]
    %v2796 = vld [vmem:[%s9 + $0x28] sm:$0xff]
    %v2797 = vld [vmem:[%s9 + $0x30] sm:$0xff]
    %v2798 = vld [vmem:[%s9 + $0x38] sm:$0xff]
    %v2799 = vld [vmem:[%s9 + $0x40] sm:$0xff]
    %v2800 = vld [vmem:[%s9 + $0x48] sm:$0xff]
    %v2801 = vld [vmem:[%s9 + $0x50] sm:$0xff]
    %v2802 = vld [vmem:[%s9 + $0x58] sm:$0xff]
    %v2803 = vld [vmem:[%s9 + $0x60] sm:$0xff]
    %v2804 = vld [vmem:[%s9 + $0x68] sm:$0xff]
    %v2805 = vld [vmem:[%s9 + $0x70] sm:$0xff]
    %v2806 = vld [vmem:[%s9 + $0x78] sm:$0xff]
    %v2807 = vld [vmem:[%s10] sm:$0x1]
    %v2809 = vlaneseq
    %v2810 = vshrl.u32 %v2809, 7
    %v2811 = vsub.s32 0, %v2810
    %v2812 = vrot.slane %v2807, %v2811
    %2814 = vmatprep.subr.mxu0 0.0
    %2815 = vmatpush1.msra.mxu0 %v2791
    %2816 = vmatprep.subr.mxu0 0.0
    %2817 = vmatpush1.msra.mxu0 %v2792
    %2818 = vmatprep.subr.mxu0 0.0
    %2819 = vmatpush1.msra.mxu0 %v2793
    %2820 = vmatprep.subr.mxu0 0.0
    %2821 = vmatpush1.msra.mxu0 %v2794
    %2822 = vmatprep.subr.mxu0 0.0
    %2823 = vmatpush1.msra.mxu0 %v2795
    %2824 = vmatprep.subr.mxu0 0.0
    %2825 = vmatpush1.msra.mxu0 %v2796
    %2826 = vmatprep.subr.mxu0 0.0
    %2827 = vmatpush1.msra.mxu0 %v2797
    %2828 = vmatprep.subr.mxu0 0.0
    %2829 = vmatpush1.msra.mxu0 %v2798
    %2830 = vmatprep.subr.mxu0 0.0
    %2831 = vmatpush1.msra.mxu0 %v2799
    %2832 = vmatprep.subr.mxu0 0.0
    %2833 = vmatpush1.msra.mxu0 %v2800
    %2834 = vmatprep.subr.mxu0 0.0
    %2835 = vmatpush1.msra.mxu0 %v2801
    %2836 = vmatprep.subr.mxu0 0.0
    %2837 = vmatpush1.msra.mxu0 %v2802
    %2838 = vmatprep.subr.mxu0 0.0
    %2839 = vmatpush1.msra.mxu0 %v2803
    %2840 = vmatprep.subr.mxu0 0.0
    %2841 = vmatpush1.msra.mxu0 %v2804
    %2842 = vmatprep.subr.mxu0 0.0
    %2843 = vmatpush1.msra.mxu0 %v2805
    %2844 = vmatprep.subr.mxu0 0.0
    %2845 = vmatpush1.msra.mxu0 %v2806
    %2846 = vmatprep.subr.mxu0 0.0
    %2847 = vmatpush1.msra.mxu0 0.0
    %2848 = vmatprep.subr.mxu0 0.0
    %2849 = vmatpush1.msra.mxu0 0.0
    %2850 = vmatprep.subr.mxu0 0.0
    %2851 = vmatpush1.msra.mxu0 0.0
    %2852 = vmatprep.subr.mxu0 0.0
    %2853 = vmatpush1.msra.mxu0 0.0
    %2854 = vmatprep.subr.mxu0 0.0
    %2855 = vmatpush1.msra.mxu0 0.0
    %2856 = vmatprep.subr.mxu0 0.0
    %2857 = vmatpush1.msra.mxu0 0.0
    %2858 = vmatprep.subr.mxu0 0.0
    %2859 = vmatpush1.msra.mxu0 0.0
    %2860 = vmatprep.subr.mxu0 0.0
    %2861 = vmatpush1.msra.mxu0 0.0
    %2862 = vmatprep.subr.mxu0 0.0
    %2863 = vmatpush1.msra.mxu0 0.0
    %2864 = vmatprep.subr.mxu0 0.0
    %2865 = vmatpush1.msra.mxu0 0.0
    %2866 = vmatprep.subr.mxu0 0.0
    %2867 = vmatpush1.msra.mxu0 0.0
    %2868 = vmatprep.subr.mxu0 0.0
    %2869 = vmatpush1.msra.mxu0 0.0
    %2870 = vmatprep.subr.mxu0 0.0
    %2871 = vmatpush1.msra.mxu0 0.0
    %2872 = vmatprep.subr.mxu0 0.0
    %2873 = vmatpush1.msra.mxu0 0.0
    %2874 = vmatprep.subr.mxu0 0.0
    %2875 = vmatpush1.msra.mxu0 0.0
    %2876 = vmatprep.subr.mxu0 0.0
    %2877 = vmatpush1.msra.mxu0 0.0
    %2878 = vmatprep.mubr.f32.mxu0 0.0
    %2879 = vmatmul.mubr.f32.gmra.mrb[0].mxu0 %v2790
    %v2880 = vpop.f32.mrb[0].mxu0
    %v2881 = vadd.f32 %v2812, %v2880
    %v2882 = vpop.f32.mrb[0].mxu0
    %2883 = vdwg.mxu0
    %vm2884 = vcmask 27648
    %2885 = vst.msk [vmem:[#allocation2] sm:$0xf] %vm2884, %v2881
    // Predicated region
    $region46: #{text_classifier_forward.1} parent=1 // pred_check
      _
    $region47: #{text_classifier_forward.1} parent=1 // pred_check_branch
      %2887 = sbr.rel (0) target = $region49
    $region48: #{text_classifier_forward.1} parent=1 // pred_region
      %s2889 = ssub.s32 64, 64
      %2890 = vsyncadd [#allocation3], %s2889
      %s2892 = sshll.u32 [#allocation2], 4
      %s2893 = int_to_ptr.vmem [resolvable:$true] %s2892
      %2895 = dma.vmem_to_hbm [thread:$0]  %s2893, 64, %s11, [#allocation3]
    $region49: #{text_classifier_forward.1} parent=1 // pred_fallthru
      _
    // Predicated region
    $region50: #{text_classifier_forward.1} parent=1 // pred_check
      _
    $region51: #{text_classifier_forward.1} parent=1 // pred_check_branch
      %2897 = sbr.rel (0) target = $region53
    $region52: #{text_classifier_forward.1} parent=1 // pred_region
      %2898 = dma.done [#allocation3], 64
    $region53: #{text_classifier_forward.1} parent=1 // pred_fallthru
      _
    %2899 = vsyncpa [#allocation3], 1

</llo_original>
